<compile_context>
chip_gen: v6e
topology: v6e:2x2x1
jax: 0.10.0
libtpu: 0.0.40
codegen_flags: <defaults>
</compile_context>

<pallas_src>
import jax
import jax.numpy as jnp
from jax.experimental import pallas as pl
from jax.experimental.pallas import tpu as pltpu

# ------------------------- model dimensions (small, synthetic) -----------------
B, S, D, H, F, V = 2, 16, 32, 2, 64, 64
DH = D // H
MAX_POS = S + 4
BS = B * S


def _layernorm(x, g, b, eps=1e-5):
    mu = jnp.mean(x, axis=-1, keepdims=True)
    var = jnp.mean((x - mu) ** 2, axis=-1, keepdims=True)
    return (x - mu) * jax.lax.rsqrt(var + eps) * g + b


# ===================== fused kernel: blend -> encoder layer -> tanh pooler ======
def fused_kernel(nodes_ref, token_ref, attn_ref, emb_ref, pos_ref,
                 wqkv_ref, woT_ref, vec_ref, w1_ref, w2_ref, wp_ref,
                 out_ref):
    # all inputs are tiny and fully VMEM-resident: load once, index values.
    nodes = nodes_ref[...]        # (B, S, 1)  float {0,1}: position_idx == 0
    token = token_ref[...]        # (B, 1, S)  float {0,1}: position_idx >= 2
    attn = attn_ref[...]          # (B, S, S)  float {0,1}
    emb = emb_ref[...]            # (B, S, D)  gathered word embeddings
    pos = pos_ref[...]            # (B, S, D)  gathered position embeddings
    wqkv = wqkv_ref[...]          # (3H, D+1, DH): rows 0..D-1 weight, row D bias
    woT = woT_ref[...]            # (H, D, DH): wo[h*DH:(h+1)*DH, :].T
    vec = vec_ref[...]            # (7, D): ln/bias vectors
    w1 = w1_ref[...]              # (D+1, F)
    w2 = w2_ref[...]              # (F+1, D)
    wp = wp_ref[...]              # (D+1, D)

    emb_g, emb_b = vec[0:1], vec[1:2]
    bo = vec[2:3]
    ln1_g, ln1_b = vec[3:4], vec[4:5]
    ln2_g, ln2_b = vec[5:6], vec[6:7]

    def dot_t(a, b_):  # contract last axis of both (a @ b_.T) without a transpose
        return jax.lax.dot_general(a, b_, (((1,), (1,)), ((), ())),
                                   preferred_element_type=jnp.float32)

    # ---- graph-guided node averaging + positional embedding add (per batch) ----
    xs = []
    for b in range(B):
        m = nodes[b] * token[b] * attn[b]                              # (S, S)
        inv = pl.reciprocal(jnp.sum(m, -1, keepdims=True) + 1e-10, approx=True)
        avg = jnp.dot(m * inv, emb[b], preferred_element_type=jnp.float32)
        xs.append(emb[b] * (1.0 - nodes[b]) + avg * nodes[b] + pos[b])
    x = jnp.concatenate(xs, axis=0)                                    # (B*S, D)

    h0 = _layernorm(x, emb_g, emb_b)

    # ---- per-head Q/K/V over the whole (B*S, D) slab; heads come from the packed
    #      weight slab, so activations are never lane-sliced or lane-concatenated.
    q, k, v = [], [], []
    for h in range(H):
        wq_h, wk_h, wv_h = wqkv[h], wqkv[H + h], wqkv[2 * H + h]       # (D+1, DH)
        q.append(jnp.dot(h0, wq_h[:D], preferred_element_type=jnp.float32) + wq_h[D:])
        k.append(jnp.dot(h0, wk_h[:D], preferred_element_type=jnp.float32) + wk_h[D:])
        v.append(jnp.dot(h0, wv_h[:D], preferred_element_type=jnp.float32) + wv_h[D:])

    # ---- masked softmax attention; per-head output projections accumulated -----
    rows = []
    for b in range(B):
        bias = (attn[b] - 1.0) * 1e9                                   # 0 / -1e9
        acc = None
        for h in range(H):
            qh = q[h][b * S:(b + 1) * S]                               # sublane slice
            kh = k[h][b * S:(b + 1) * S]
            vh = v[h][b * S:(b + 1) * S]
            s = dot_t(qh, kh) + bias           # 1/sqrt(DH) already folded into wq/bq
            s = s - jnp.max(s, -1, keepdims=True)
            p = jnp.exp(s)
            p = p * pl.reciprocal(jnp.sum(p, -1, keepdims=True), approx=True)
            ctx = jnp.dot(p, vh, preferred_element_type=jnp.float32)   # (S, DH)
            proj = dot_t(ctx, woT[h])                                  # (S, D)
            acc = proj if acc is None else acc + proj
        rows.append(acc)
    attn_out = jnp.concatenate(rows, axis=0) + bo                      # (B*S, D)

    h1 = _layernorm(h0 + attn_out, ln1_g, ln1_b)

    ff = jnp.dot(h1, w1[:D], preferred_element_type=jnp.float32) + w1[D:]
    ff = jax.nn.gelu(ff, approximate=True)
    ff = jnp.dot(ff, w2[:F], preferred_element_type=jnp.float32) + w2[F:]
    h2 = _layernorm(h1 + ff, ln2_g, ln2_b)

    # ---- tanh pooler on the first token of each sequence; single (B, D) store ---
    cls = jnp.concatenate([h2[b * S:b * S + 1] for b in range(B)], axis=0)   # (B, D)
    out_ref[...] = jnp.tanh(jnp.dot(cls, wp[:D], preferred_element_type=jnp.float32)
                            + wp[D:])


def fused_forward(nodes_f, token_f, attn_f, emb, pos, packed):
    args = (nodes_f, token_f, attn_f, emb, pos,
            packed['wqkv_h'], packed['woT_h'], packed['vecD'],
            packed['w1b'], packed['w2b'], packed['wpb'])
    return pl.pallas_call(
        fused_kernel,
        out_shape=jax.ShapeDtypeStruct((B, D), jnp.float32),
        in_specs=[pl.BlockSpec(memory_space=pltpu.MemorySpace.VMEM) for _ in args],
        out_specs=pl.BlockSpec(memory_space=pltpu.MemorySpace.VMEM),
    )(*args)


# ===================== weight packing (fold scale + biases, split heads) ========
def pack_params(p):
    scale = 1.0 / (DH ** 0.5)

    def head_cols(w, b, s=1.0):
        blocks = []
        for h in range(H):
            wh = w[:, h * DH:(h + 1) * DH] * s            # (D, DH)
            bh = b[:, h * DH:(h + 1) * DH] * s            # (1, DH)
            blocks.append(jnp.concatenate([wh, bh], axis=0))
        return jnp.stack(blocks, axis=0)                  # (H, D+1, DH)

    wqkv_h = jnp.concatenate([head_cols(p['wq'], p['bq'], scale),
                              head_cols(p['wk'], p['bk']),
                              head_cols(p['wv'], p['bv'])], axis=0)   # (3H, D+1, DH)
    woT_h = jnp.stack([p['wo'][h * DH:(h + 1) * DH, :].T for h in range(H)], axis=0)
    vecD = jnp.concatenate([p['emb_ln_g'], p['emb_ln_b'], p['bo'],
                            p['ln1_g'], p['ln1_b'],
                            p['ln2_g'], p['ln2_b']], axis=0)          # (7, D)
    w1b = jnp.concatenate([p['w1'], p['b1']], axis=0)                 # (D+1, F)
    w2b = jnp.concatenate([p['w2'], p['b2']], axis=0)                 # (F+1, D)
    wpb = jnp.concatenate([p['wp'], p['bp']], axis=0)                 # (D+1, D)
    return dict(wqkv_h=wqkv_h, woT_h=woT_h, vecD=vecD, w1b=w1b, w2b=w2b, wpb=wpb)


# ===================== wrapper mirroring Second_Stage_Model.forward ============
def second_stage_forward(params, code_inputs=None, attn_mask=None,
                         position_idx=None, nl_inputs=None):
    packed = pack_params(params)   # in a real pipeline this is packed once, offline
    if code_inputs is not None:
        nodes = (position_idx == 0).astype(jnp.float32)[:, :, None]
        token = (position_idx >= 2).astype(jnp.float32)[:, None, :]
        attn = attn_mask.astype(jnp.float32)
        emb = jnp.take(params['word_emb'], code_inputs, axis=0)       # gather (glue)
        pos = jnp.take(params['pos_emb'], position_idx, axis=0)
        return fused_forward(nodes, token, attn, emb, pos, packed)
    else:
        mask2d = (nl_inputs != 1)
        # RoBERTa-style position ids (padding_idx = 1)
        position_idx = (jnp.cumsum(mask2d, axis=1) * mask2d + 1).astype(jnp.int32)
        emb = jnp.take(params['word_emb'], nl_inputs, axis=0)
        pos = jnp.take(params['pos_emb'], position_idx, axis=0)
        b_, s_ = nl_inputs.shape
        attn = jnp.broadcast_to(mask2d[:, None, :].astype(jnp.float32), (b_, s_, s_))
        nodes = jnp.zeros((b_, s_, 1), jnp.float32)      # no graph nodes -> blend is identity
        token = jnp.zeros((b_, 1, s_), jnp.float32)
        return fused_forward(nodes, token, attn, emb, pos, packed)


# ===================== pure-JAX reference (for correctness check) ==============
def ref_forward(params, code_inputs, attn_mask, position_idx):
    nodes = (position_idx == 0).astype(jnp.float32)
    token = (position_idx >= 2).astype(jnp.float32)
    attn = attn_mask.astype(jnp.float32)
    emb = params['word_emb'][code_inputs]
    m = nodes[:, :, None] * token[:, None, :] * attn
    m = m / (m.sum(-1, keepdims=True) + 1e-10)
    avg = jnp.einsum('abc,acd->abd', m, emb)
    emb = emb * (1.0 - nodes)[:, :, None] + avg * nodes[:, :, None]
    x = emb + params['pos_emb'][position_idx]
    bias = (1.0 - attn) * -1e9
    h0 = _layernorm(x, params['emb_ln_g'], params['emb_ln_b'])
    q = h0 @ params['wq'] + params['bq']
    k = h0 @ params['wk'] + params['bk']
    v = h0 @ params['wv'] + params['bv']
    qh, kh, vh = (t.reshape(B, S, H, DH) for t in (q, k, v))
    s = jnp.einsum('bqhd,bkhd->bhqk', qh, kh) / (DH ** 0.5) + bias[:, None]
    p = jax.nn.softmax(s, axis=-1)
    ctx = jnp.einsum('bhqk,bkhd->bqhd', p, vh).reshape(B, S, D)
    attn_out = ctx @ params['wo'] + params['bo']
    h1 = _layernorm(h0 + attn_out, params['ln1_g'], params['ln1_b'])
    ff = jax.nn.gelu(h1 @ params['w1'] + params['b1'], approximate=True)
    ff = ff @ params['w2'] + params['b2']
    h2 = _layernorm(h1 + ff, params['ln2_g'], params['ln2_b'])
    return jnp.tanh(h2[:, 0] @ params['wp'] + params['bp'])


# ===================== deterministic parameter init =============================
def init_params(key):
    ks = jax.random.split(key, 10)
    w = lambda k, shape, s: jax.random.normal(k, shape, jnp.float32) * s
    ones = lambda shape: jnp.ones(shape, jnp.float32)
    zeros = lambda shape: jnp.zeros(shape, jnp.float32)
    return {
        'word_emb': w(ks[0], (V, D), 1.0),
        'pos_emb':  w(ks[1], (MAX_POS, D), 1.0),
        'emb_ln_g': ones((1, D)), 'emb_ln_b': zeros((1, D)),
        'wq': w(ks[2], (D, D), 0.1), 'bq': zeros((1, D)),
        'wk': w(ks[3], (D, D), 0.1), 'bk': zeros((1, D)),
        'wv': w(ks[4], (D, D), 0.1), 'bv': zeros((1, D)),
        'wo': w(ks[5], (D, D), 0.1), 'bo': zeros((1, D)),
        'ln1_g': ones((1, D)), 'ln1_b': zeros((1, D)),
        'w1': w(ks[6], (D, F), 0.1), 'b1': zeros((1, F)),
        'w2': w(ks[7], (F, D), 0.1), 'b2': zeros((1, D)),
        'ln2_g': ones((1, D)), 'ln2_b': zeros((1, D)),
        'wp': w(ks[8], (D, D), 0.1), 'bp': zeros((1, D)),
    }


if __name__ == "__main__":
    root = jax.random.PRNGKey(0)
    kp, kc = jax.random.split(root)
    params = init_params(kp)

    code_inputs = jax.random.randint(kc, (B, S), 2, V, dtype=jnp.int32)
    # GraphCodeBERT-style position_idx: tokens get >=2, DFG nodes get 0, pad gets 1.
    pos_pattern = jnp.concatenate([jnp.arange(2, 12, dtype=jnp.int32),
                                   jnp.zeros(4, jnp.int32),
                                   jnp.ones(2, jnp.int32)])
    position_idx = jnp.tile(pos_pattern[None, :], (B, 1))
    valid = position_idx != 1
    attn_mask = valid[:, :, None] & valid[:, None, :]              # (B, S, S) bool

    out = second_stage_forward(params, code_inputs=code_inputs,
                               attn_mask=attn_mask, position_idx=position_idx)
    out = jax.block_until_ready(out)

    ref = ref_forward(params, code_inputs, attn_mask, position_idx)
    err = float(jnp.max(jnp.abs(out - ref)))
    assert out.shape == (B, D), out.shape
    # All-f32 path; the only source of error vs. the exact-division reference is the
    # EUP approximate reciprocal (pl.reciprocal(approx=True)) used for the softmax and
    # blend-mask normalizations (with exact division this matches to <1e-5).
    assert err < 1e-2, f"max abs error {err}"
    # TODO(synk): dropout / multi-layer pretrained encoder omitted (eval-mode,
    # synthetic 1-layer encoder with deterministic weights).
    print("KERNEL_OK")
</pallas_src>

<mosaic_0001>
module attributes {stable_mosaic.version = 11 : i64} {
  func.func @fused_kernel(%arg0: memref<2x16x1xf32, #tpu.memory_space<vmem>>, %arg1: memref<2x1x16xf32, #tpu.memory_space<vmem>>, %arg2: memref<2x16x16xf32, #tpu.memory_space<vmem>>, %arg3: memref<2x16x32xf32, #tpu.memory_space<vmem>>, %arg4: memref<2x16x32xf32, #tpu.memory_space<vmem>>, %arg5: memref<6x33x16xf32, #tpu.memory_space<vmem>>, %arg6: memref<2x32x16xf32, #tpu.memory_space<vmem>>, %arg7: memref<7x32xf32, #tpu.memory_space<vmem>>, %arg8: memref<33x64xf32, #tpu.memory_space<vmem>>, %arg9: memref<65x32xf32, #tpu.memory_space<vmem>>, %arg10: memref<33x32xf32, #tpu.memory_space<vmem>>, %arg11: memref<2x32xf32, #tpu.memory_space<vmem>>) attributes {dimension_semantics = [], scalar_prefetch = 0 : i64, scratch_operands = 0 : i64, tpu.core_type = #tpu.core_type<tc>} {
    %c0 = arith.constant 0 : index
    %c0_0 = arith.constant 0 : index
    %c0_1 = arith.constant 0 : index
    %0 = vector.load %arg0[%c0, %c0_0, %c0_1] : memref<2x16x1xf32, #tpu.memory_space<vmem>>, vector<2x16x1xf32>
    %c0_2 = arith.constant 0 : index
    %c0_3 = arith.constant 0 : index
    %c0_4 = arith.constant 0 : index
    %1 = vector.load %arg1[%c0_2, %c0_3, %c0_4] : memref<2x1x16xf32, #tpu.memory_space<vmem>>, vector<2x1x16xf32>
    %c0_5 = arith.constant 0 : index
    %c0_6 = arith.constant 0 : index
    %c0_7 = arith.constant 0 : index
    %2 = vector.load %arg2[%c0_5, %c0_6, %c0_7] : memref<2x16x16xf32, #tpu.memory_space<vmem>>, vector<2x16x16xf32>
    %c0_8 = arith.constant 0 : index
    %c0_9 = arith.constant 0 : index
    %c0_10 = arith.constant 0 : index
    %3 = vector.load %arg3[%c0_8, %c0_9, %c0_10] : memref<2x16x32xf32, #tpu.memory_space<vmem>>, vector<2x16x32xf32>
    %c0_11 = arith.constant 0 : index
    %c0_12 = arith.constant 0 : index
    %c0_13 = arith.constant 0 : index
    %4 = vector.load %arg4[%c0_11, %c0_12, %c0_13] : memref<2x16x32xf32, #tpu.memory_space<vmem>>, vector<2x16x32xf32>
    %c0_14 = arith.constant 0 : index
    %c0_15 = arith.constant 0 : index
    %c0_16 = arith.constant 0 : index
    %5 = vector.load %arg5[%c0_14, %c0_15, %c0_16] : memref<6x33x16xf32, #tpu.memory_space<vmem>>, vector<6x33x16xf32>
    %c0_17 = arith.constant 0 : index
    %c0_18 = arith.constant 0 : index
    %c0_19 = arith.constant 0 : index
    %6 = vector.load %arg6[%c0_17, %c0_18, %c0_19] : memref<2x32x16xf32, #tpu.memory_space<vmem>>, vector<2x32x16xf32>
    %c0_20 = arith.constant 0 : index
    %c0_21 = arith.constant 0 : index
    %7 = vector.load %arg7[%c0_20, %c0_21] : memref<7x32xf32, #tpu.memory_space<vmem>>, vector<7x32xf32>
    %c0_22 = arith.constant 0 : index
    %c0_23 = arith.constant 0 : index
    %8 = vector.load %arg8[%c0_22, %c0_23] : memref<33x64xf32, #tpu.memory_space<vmem>>, vector<33x64xf32>
    %c0_24 = arith.constant 0 : index
    %c0_25 = arith.constant 0 : index
    %9 = vector.load %arg9[%c0_24, %c0_25] : memref<65x32xf32, #tpu.memory_space<vmem>>, vector<65x32xf32>
    %c0_26 = arith.constant 0 : index
    %c0_27 = arith.constant 0 : index
    %10 = vector.load %arg10[%c0_26, %c0_27] : memref<33x32xf32, #tpu.memory_space<vmem>>, vector<33x32xf32>
    %11 = vector.extract_strided_slice %7 {offsets = [0, 0], sizes = [1, 32], strides = [1, 1]} : vector<7x32xf32> to vector<1x32xf32>
    %12 = vector.extract_strided_slice %7 {offsets = [1, 0], sizes = [1, 32], strides = [1, 1]} : vector<7x32xf32> to vector<1x32xf32>
    %13 = vector.extract_strided_slice %7 {offsets = [2, 0], sizes = [1, 32], strides = [1, 1]} : vector<7x32xf32> to vector<1x32xf32>
    %14 = vector.extract_strided_slice %7 {offsets = [3, 0], sizes = [1, 32], strides = [1, 1]} : vector<7x32xf32> to vector<1x32xf32>
    %15 = vector.extract_strided_slice %7 {offsets = [4, 0], sizes = [1, 32], strides = [1, 1]} : vector<7x32xf32> to vector<1x32xf32>
    %16 = vector.extract_strided_slice %7 {offsets = [5, 0], sizes = [1, 32], strides = [1, 1]} : vector<7x32xf32> to vector<1x32xf32>
    %17 = vector.extract_strided_slice %7 {offsets = [6, 0], sizes = [1, 32], strides = [1, 1]} : vector<7x32xf32> to vector<1x32xf32>
    %18 = vector.extract_strided_slice %0 {offsets = [0, 0, 0], sizes = [1, 16, 1], strides = [1, 1, 1]} : vector<2x16x1xf32> to vector<1x16x1xf32>
    %19 = vector.shape_cast %18 : vector<1x16x1xf32> to vector<16x1xf32>
    %20 = vector.extract_strided_slice %1 {offsets = [0, 0, 0], sizes = [1, 1, 16], strides = [1, 1, 1]} : vector<2x1x16xf32> to vector<1x1x16xf32>
    %21 = vector.shape_cast %20 : vector<1x1x16xf32> to vector<1x16xf32>
    %22 = vector.broadcast %19 : vector<16x1xf32> to vector<16x16xf32>
    %23 = vector.broadcast %21 : vector<1x16xf32> to vector<16x16xf32>
    %24 = arith.mulf %22, %23 : vector<16x16xf32>
    %25 = vector.extract_strided_slice %2 {offsets = [0, 0, 0], sizes = [1, 16, 16], strides = [1, 1, 1]} : vector<2x16x16xf32> to vector<1x16x16xf32>
    %26 = vector.shape_cast %25 : vector<1x16x16xf32> to vector<16x16xf32>
    %27 = arith.mulf %24, %26 : vector<16x16xf32>
    %cst = arith.constant dense<0.000000e+00> : vector<16xf32>
    %28 = vector.multi_reduction <add>, %27, %cst [1] : vector<16x16xf32> to vector<16xf32>
    %29 = vector.shape_cast %28 : vector<16xf32> to vector<16x1xf32>
    %cst_28 = arith.constant 1.000000e-10 : f32
    %30 = vector.broadcast %cst_28 : f32 to vector<16x1xf32>
    %31 = arith.addf %29, %30 : vector<16x1xf32>
    %32 = tpu.reciprocal %31 {approx = true} : vector<16x1xf32> -> vector<16x1xf32>
    %33 = vector.broadcast %32 : vector<16x1xf32> to vector<16x16xf32>
    %34 = arith.mulf %27, %33 : vector<16x16xf32>
    %35 = vector.extract_strided_slice %3 {offsets = [0, 0, 0], sizes = [1, 16, 32], strides = [1, 1, 1]} : vector<2x16x32xf32> to vector<1x16x32xf32>
    %36 = vector.shape_cast %35 : vector<1x16x32xf32> to vector<16x32xf32>
    %cst_29 = arith.constant dense<0.000000e+00> : vector<16x32xf32>
    %37 = tpu.matmul %34, %36, %cst_29 {dimension_numbers = #tpu.dot_dimension_numbers<[1], [0], [0], [1], [0, 0, 1, 1], [], []>} : vector<16x16xf32>, vector<16x32xf32>, vector<16x32xf32> -> vector<16x32xf32>
    %38 = vector.extract_strided_slice %3 {offsets = [0, 0, 0], sizes = [1, 16, 32], strides = [1, 1, 1]} : vector<2x16x32xf32> to vector<1x16x32xf32>
    %39 = vector.shape_cast %38 : vector<1x16x32xf32> to vector<16x32xf32>
    %40 = vector.extract_strided_slice %0 {offsets = [0, 0, 0], sizes = [1, 16, 1], strides = [1, 1, 1]} : vector<2x16x1xf32> to vector<1x16x1xf32>
    %41 = vector.shape_cast %40 : vector<1x16x1xf32> to vector<16x1xf32>
    %cst_30 = arith.constant 1.000000e+00 : f32
    %42 = vector.broadcast %cst_30 : f32 to vector<16x1xf32>
    %43 = arith.subf %42, %41 : vector<16x1xf32>
    %44 = vector.broadcast %43 : vector<16x1xf32> to vector<16x32xf32>
    %45 = arith.mulf %39, %44 : vector<16x32xf32>
    %46 = vector.extract_strided_slice %0 {offsets = [0, 0, 0], sizes = [1, 16, 1], strides = [1, 1, 1]} : vector<2x16x1xf32> to vector<1x16x1xf32>
    %47 = vector.shape_cast %46 : vector<1x16x1xf32> to vector<16x1xf32>
    %48 = vector.broadcast %47 : vector<16x1xf32> to vector<16x32xf32>
    %49 = arith.mulf %37, %48 : vector<16x32xf32>
    %50 = arith.addf %45, %49 : vector<16x32xf32>
    %51 = vector.extract_strided_slice %4 {offsets = [0, 0, 0], sizes = [1, 16, 32], strides = [1, 1, 1]} : vector<2x16x32xf32> to vector<1x16x32xf32>
    %52 = vector.shape_cast %51 : vector<1x16x32xf32> to vector<16x32xf32>
    %53 = arith.addf %50, %52 : vector<16x32xf32>
    %54 = vector.extract_strided_slice %0 {offsets = [1, 0, 0], sizes = [1, 16, 1], strides = [1, 1, 1]} : vector<2x16x1xf32> to vector<1x16x1xf32>
    %55 = vector.shape_cast %54 : vector<1x16x1xf32> to vector<16x1xf32>
    %56 = vector.extract_strided_slice %1 {offsets = [1, 0, 0], sizes = [1, 1, 16], strides = [1, 1, 1]} : vector<2x1x16xf32> to vector<1x1x16xf32>
    %57 = vector.shape_cast %56 : vector<1x1x16xf32> to vector<1x16xf32>
    %58 = vector.broadcast %55 : vector<16x1xf32> to vector<16x16xf32>
    %59 = vector.broadcast %57 : vector<1x16xf32> to vector<16x16xf32>
    %60 = arith.mulf %58, %59 : vector<16x16xf32>
    %61 = vector.extract_strided_slice %2 {offsets = [1, 0, 0], sizes = [1, 16, 16], strides = [1, 1, 1]} : vector<2x16x16xf32> to vector<1x16x16xf32>
    %62 = vector.shape_cast %61 : vector<1x16x16xf32> to vector<16x16xf32>
    %63 = arith.mulf %60, %62 : vector<16x16xf32>
    %cst_31 = arith.constant dense<0.000000e+00> : vector<16xf32>
    %64 = vector.multi_reduction <add>, %63, %cst_31 [1] : vector<16x16xf32> to vector<16xf32>
    %65 = vector.shape_cast %64 : vector<16xf32> to vector<16x1xf32>
    %cst_32 = arith.constant 1.000000e-10 : f32
    %66 = vector.broadcast %cst_32 : f32 to vector<16x1xf32>
    %67 = arith.addf %65, %66 : vector<16x1xf32>
    %68 = tpu.reciprocal %67 {approx = true} : vector<16x1xf32> -> vector<16x1xf32>
    %69 = vector.broadcast %68 : vector<16x1xf32> to vector<16x16xf32>
    %70 = arith.mulf %63, %69 : vector<16x16xf32>
    %71 = vector.extract_strided_slice %3 {offsets = [1, 0, 0], sizes = [1, 16, 32], strides = [1, 1, 1]} : vector<2x16x32xf32> to vector<1x16x32xf32>
    %72 = vector.shape_cast %71 : vector<1x16x32xf32> to vector<16x32xf32>
    %cst_33 = arith.constant dense<0.000000e+00> : vector<16x32xf32>
    %73 = tpu.matmul %70, %72, %cst_33 {dimension_numbers = #tpu.dot_dimension_numbers<[1], [0], [0], [1], [0, 0, 1, 1], [], []>} : vector<16x16xf32>, vector<16x32xf32>, vector<16x32xf32> -> vector<16x32xf32>
    %74 = vector.extract_strided_slice %3 {offsets = [1, 0, 0], sizes = [1, 16, 32], strides = [1, 1, 1]} : vector<2x16x32xf32> to vector<1x16x32xf32>
    %75 = vector.shape_cast %74 : vector<1x16x32xf32> to vector<16x32xf32>
    %76 = vector.extract_strided_slice %0 {offsets = [1, 0, 0], sizes = [1, 16, 1], strides = [1, 1, 1]} : vector<2x16x1xf32> to vector<1x16x1xf32>
    %77 = vector.shape_cast %76 : vector<1x16x1xf32> to vector<16x1xf32>
    %cst_34 = arith.constant 1.000000e+00 : f32
    %78 = vector.broadcast %cst_34 : f32 to vector<16x1xf32>
    %79 = arith.subf %78, %77 : vector<16x1xf32>
    %80 = vector.broadcast %79 : vector<16x1xf32> to vector<16x32xf32>
    %81 = arith.mulf %75, %80 : vector<16x32xf32>
    %82 = vector.extract_strided_slice %0 {offsets = [1, 0, 0], sizes = [1, 16, 1], strides = [1, 1, 1]} : vector<2x16x1xf32> to vector<1x16x1xf32>
    %83 = vector.shape_cast %82 : vector<1x16x1xf32> to vector<16x1xf32>
    %84 = vector.broadcast %83 : vector<16x1xf32> to vector<16x32xf32>
    %85 = arith.mulf %73, %84 : vector<16x32xf32>
    %86 = arith.addf %81, %85 : vector<16x32xf32>
    %87 = vector.extract_strided_slice %4 {offsets = [1, 0, 0], sizes = [1, 16, 32], strides = [1, 1, 1]} : vector<2x16x32xf32> to vector<1x16x32xf32>
    %88 = vector.shape_cast %87 : vector<1x16x32xf32> to vector<16x32xf32>
    %89 = arith.addf %86, %88 : vector<16x32xf32>
    %90 = tpu.concatenate %53, %89 in 0 : vector<16x32xf32>, vector<16x32xf32> -> vector<32x32xf32>
    %cst_35 = arith.constant dense<0.000000e+00> : vector<32xf32>
    %91 = vector.multi_reduction <add>, %90, %cst_35 [1] : vector<32x32xf32> to vector<32xf32>
    %92 = vector.shape_cast %91 : vector<32xf32> to vector<32x1xf32>
    %cst_36 = arith.constant 3.200000e+01 : f32
    %93 = vector.broadcast %cst_36 : f32 to vector<32x1xf32>
    %94 = arith.divf %92, %93 : vector<32x1xf32>
    %95 = vector.broadcast %94 : vector<32x1xf32> to vector<32x32xf32>
    %96 = arith.subf %90, %95 : vector<32x32xf32>
    %97 = arith.mulf %96, %96 : vector<32x32xf32>
    %cst_37 = arith.constant dense<0.000000e+00> : vector<32xf32>
    %98 = vector.multi_reduction <add>, %97, %cst_37 [1] : vector<32x32xf32> to vector<32xf32>
    %99 = vector.shape_cast %98 : vector<32xf32> to vector<32x1xf32>
    %cst_38 = arith.constant 3.200000e+01 : f32
    %100 = vector.broadcast %cst_38 : f32 to vector<32x1xf32>
    %101 = arith.divf %99, %100 : vector<32x1xf32>
    %102 = vector.broadcast %94 : vector<32x1xf32> to vector<32x32xf32>
    %103 = arith.subf %90, %102 : vector<32x32xf32>
    %cst_39 = arith.constant 9.99999974E-6 : f32
    %104 = vector.broadcast %cst_39 : f32 to vector<32x1xf32>
    %105 = arith.addf %101, %104 : vector<32x1xf32>
    %106 = math.rsqrt %105 : vector<32x1xf32>
    %107 = vector.broadcast %106 : vector<32x1xf32> to vector<32x32xf32>
    %108 = arith.mulf %103, %107 : vector<32x32xf32>
    %109 = vector.broadcast %11 : vector<1x32xf32> to vector<32x32xf32>
    %110 = arith.mulf %108, %109 : vector<32x32xf32>
    %111 = vector.broadcast %12 : vector<1x32xf32> to vector<32x32xf32>
    %112 = arith.addf %110, %111 : vector<32x32xf32>
    %113 = vector.extract_strided_slice %5 {offsets = [0, 0, 0], sizes = [1, 33, 16], strides = [1, 1, 1]} : vector<6x33x16xf32> to vector<1x33x16xf32>
    %114 = vector.shape_cast %113 : vector<1x33x16xf32> to vector<33x16xf32>
    %115 = vector.extract_strided_slice %5 {offsets = [2, 0, 0], sizes = [1, 33, 16], strides = [1, 1, 1]} : vector<6x33x16xf32> to vector<1x33x16xf32>
    %116 = vector.shape_cast %115 : vector<1x33x16xf32> to vector<33x16xf32>
    %117 = vector.extract_strided_slice %5 {offsets = [4, 0, 0], sizes = [1, 33, 16], strides = [1, 1, 1]} : vector<6x33x16xf32> to vector<1x33x16xf32>
    %118 = vector.shape_cast %117 : vector<1x33x16xf32> to vector<33x16xf32>
    %119 = vector.extract_strided_slice %114 {offsets = [0, 0], sizes = [32, 16], strides = [1, 1]} : vector<33x16xf32> to vector<32x16xf32>
    %cst_40 = arith.constant dense<0.000000e+00> : vector<32x16xf32>
    %120 = tpu.matmul %112, %119, %cst_40 {dimension_numbers = #tpu.dot_dimension_numbers<[1], [0], [0], [1], [0, 0, 1, 1], [], []>} : vector<32x32xf32>, vector<32x16xf32>, vector<32x16xf32> -> vector<32x16xf32>
    %121 = vector.extract_strided_slice %114 {offsets = [32, 0], sizes = [1, 16], strides = [1, 1]} : vector<33x16xf32> to vector<1x16xf32>
    %122 = vector.broadcast %121 : vector<1x16xf32> to vector<32x16xf32>
    %123 = arith.addf %120, %122 : vector<32x16xf32>
    %124 = vector.extract_strided_slice %116 {offsets = [0, 0], sizes = [32, 16], strides = [1, 1]} : vector<33x16xf32> to vector<32x16xf32>
    %cst_41 = arith.constant dense<0.000000e+00> : vector<32x16xf32>
    %125 = tpu.matmul %112, %124, %cst_41 {dimension_numbers = #tpu.dot_dimension_numbers<[1], [0], [0], [1], [0, 0, 1, 1], [], []>} : vector<32x32xf32>, vector<32x16xf32>, vector<32x16xf32> -> vector<32x16xf32>
    %126 = vector.extract_strided_slice %116 {offsets = [32, 0], sizes = [1, 16], strides = [1, 1]} : vector<33x16xf32> to vector<1x16xf32>
    %127 = vector.broadcast %126 : vector<1x16xf32> to vector<32x16xf32>
    %128 = arith.addf %125, %127 : vector<32x16xf32>
    %129 = vector.extract_strided_slice %118 {offsets = [0, 0], sizes = [32, 16], strides = [1, 1]} : vector<33x16xf32> to vector<32x16xf32>
    %cst_42 = arith.constant dense<0.000000e+00> : vector<32x16xf32>
    %130 = tpu.matmul %112, %129, %cst_42 {dimension_numbers = #tpu.dot_dimension_numbers<[1], [0], [0], [1], [0, 0, 1, 1], [], []>} : vector<32x32xf32>, vector<32x16xf32>, vector<32x16xf32> -> vector<32x16xf32>
    %131 = vector.extract_strided_slice %118 {offsets = [32, 0], sizes = [1, 16], strides = [1, 1]} : vector<33x16xf32> to vector<1x16xf32>
    %132 = vector.broadcast %131 : vector<1x16xf32> to vector<32x16xf32>
    %133 = arith.addf %130, %132 : vector<32x16xf32>
    %134 = vector.extract_strided_slice %5 {offsets = [1, 0, 0], sizes = [1, 33, 16], strides = [1, 1, 1]} : vector<6x33x16xf32> to vector<1x33x16xf32>
    %135 = vector.shape_cast %134 : vector<1x33x16xf32> to vector<33x16xf32>
    %136 = vector.extract_strided_slice %5 {offsets = [3, 0, 0], sizes = [1, 33, 16], strides = [1, 1, 1]} : vector<6x33x16xf32> to vector<1x33x16xf32>
    %137 = vector.shape_cast %136 : vector<1x33x16xf32> to vector<33x16xf32>
    %138 = vector.extract_strided_slice %5 {offsets = [5, 0, 0], sizes = [1, 33, 16], strides = [1, 1, 1]} : vector<6x33x16xf32> to vector<1x33x16xf32>
    %139 = vector.shape_cast %138 : vector<1x33x16xf32> to vector<33x16xf32>
    %140 = vector.extract_strided_slice %135 {offsets = [0, 0], sizes = [32, 16], strides = [1, 1]} : vector<33x16xf32> to vector<32x16xf32>
    %cst_43 = arith.constant dense<0.000000e+00> : vector<32x16xf32>
    %141 = tpu.matmul %112, %140, %cst_43 {dimension_numbers = #tpu.dot_dimension_numbers<[1], [0], [0], [1], [0, 0, 1, 1], [], []>} : vector<32x32xf32>, vector<32x16xf32>, vector<32x16xf32> -> vector<32x16xf32>
    %142 = vector.extract_strided_slice %135 {offsets = [32, 0], sizes = [1, 16], strides = [1, 1]} : vector<33x16xf32> to vector<1x16xf32>
    %143 = vector.broadcast %142 : vector<1x16xf32> to vector<32x16xf32>
    %144 = arith.addf %141, %143 : vector<32x16xf32>
    %145 = vector.extract_strided_slice %137 {offsets = [0, 0], sizes = [32, 16], strides = [1, 1]} : vector<33x16xf32> to vector<32x16xf32>
    %cst_44 = arith.constant dense<0.000000e+00> : vector<32x16xf32>
    %146 = tpu.matmul %112, %145, %cst_44 {dimension_numbers = #tpu.dot_dimension_numbers<[1], [0], [0], [1], [0, 0, 1, 1], [], []>} : vector<32x32xf32>, vector<32x16xf32>, vector<32x16xf32> -> vector<32x16xf32>
    %147 = vector.extract_strided_slice %137 {offsets = [32, 0], sizes = [1, 16], strides = [1, 1]} : vector<33x16xf32> to vector<1x16xf32>
    %148 = vector.broadcast %147 : vector<1x16xf32> to vector<32x16xf32>
    %149 = arith.addf %146, %148 : vector<32x16xf32>
    %150 = vector.extract_strided_slice %139 {offsets = [0, 0], sizes = [32, 16], strides = [1, 1]} : vector<33x16xf32> to vector<32x16xf32>
    %cst_45 = arith.constant dense<0.000000e+00> : vector<32x16xf32>
    %151 = tpu.matmul %112, %150, %cst_45 {dimension_numbers = #tpu.dot_dimension_numbers<[1], [0], [0], [1], [0, 0, 1, 1], [], []>} : vector<32x32xf32>, vector<32x16xf32>, vector<32x16xf32> -> vector<32x16xf32>
    %152 = vector.extract_strided_slice %139 {offsets = [32, 0], sizes = [1, 16], strides = [1, 1]} : vector<33x16xf32> to vector<1x16xf32>
    %153 = vector.broadcast %152 : vector<1x16xf32> to vector<32x16xf32>
    %154 = arith.addf %151, %153 : vector<32x16xf32>
    %155 = vector.extract_strided_slice %2 {offsets = [0, 0, 0], sizes = [1, 16, 16], strides = [1, 1, 1]} : vector<2x16x16xf32> to vector<1x16x16xf32>
    %156 = vector.shape_cast %155 : vector<1x16x16xf32> to vector<16x16xf32>
    %cst_46 = arith.constant 1.000000e+00 : f32
    %157 = vector.broadcast %cst_46 : f32 to vector<16x16xf32>
    %158 = arith.subf %156, %157 : vector<16x16xf32>
    %cst_47 = arith.constant 1.000000e+09 : f32
    %159 = vector.broadcast %cst_47 : f32 to vector<16x16xf32>
    %160 = arith.mulf %158, %159 : vector<16x16xf32>
    %161 = vector.extract_strided_slice %123 {offsets = [0, 0], sizes = [16, 16], strides = [1, 1]} : vector<32x16xf32> to vector<16x16xf32>
    %162 = vector.extract_strided_slice %128 {offsets = [0, 0], sizes = [16, 16], strides = [1, 1]} : vector<32x16xf32> to vector<16x16xf32>
    %163 = vector.extract_strided_slice %133 {offsets = [0, 0], sizes = [16, 16], strides = [1, 1]} : vector<32x16xf32> to vector<16x16xf32>
    %cst_48 = arith.constant dense<0.000000e+00> : vector<16x16xf32>
    %164 = tpu.matmul %161, %162, %cst_48 {dimension_numbers = #tpu.dot_dimension_numbers<[1], [1], [0], [0], [0, 0, 1, 0], [], []>} : vector<16x16xf32>, vector<16x16xf32>, vector<16x16xf32> -> vector<16x16xf32>
    %165 = arith.addf %164, %160 : vector<16x16xf32>
    %cst_49 = arith.constant dense<0xFF800000> : vector<16xf32>
    %166 = vector.multi_reduction <maximumf>, %165, %cst_49 [1] : vector<16x16xf32> to vector<16xf32>
    %167 = vector.shape_cast %166 : vector<16xf32> to vector<16x1xf32>
    %168 = vector.broadcast %167 : vector<16x1xf32> to vector<16x16xf32>
    %169 = arith.subf %165, %168 : vector<16x16xf32>
    %170 = math.exp %169 : vector<16x16xf32>
    %cst_50 = arith.constant dense<0.000000e+00> : vector<16xf32>
    %171 = vector.multi_reduction <add>, %170, %cst_50 [1] : vector<16x16xf32> to vector<16xf32>
    %172 = vector.shape_cast %171 : vector<16xf32> to vector<16x1xf32>
    %173 = tpu.reciprocal %172 {approx = true} : vector<16x1xf32> -> vector<16x1xf32>
    %174 = vector.broadcast %173 : vector<16x1xf32> to vector<16x16xf32>
    %175 = arith.mulf %170, %174 : vector<16x16xf32>
    %cst_51 = arith.constant dense<0.000000e+00> : vector<16x16xf32>
    %176 = tpu.matmul %175, %163, %cst_51 {dimension_numbers = #tpu.dot_dimension_numbers<[1], [0], [0], [1], [0, 0, 1, 1], [], []>} : vector<16x16xf32>, vector<16x16xf32>, vector<16x16xf32> -> vector<16x16xf32>
    %177 = vector.extract_strided_slice %6 {offsets = [0, 0, 0], sizes = [1, 32, 16], strides = [1, 1, 1]} : vector<2x32x16xf32> to vector<1x32x16xf32>
    %178 = vector.shape_cast %177 : vector<1x32x16xf32> to vector<32x16xf32>
    %cst_52 = arith.constant dense<0.000000e+00> : vector<16x32xf32>
    %179 = tpu.matmul %176, %178, %cst_52 {dimension_numbers = #tpu.dot_dimension_numbers<[1], [1], [0], [0], [0, 0, 1, 0], [], []>} : vector<16x16xf32>, vector<32x16xf32>, vector<16x32xf32> -> vector<16x32xf32>
    %180 = vector.extract_strided_slice %144 {offsets = [0, 0], sizes = [16, 16], strides = [1, 1]} : vector<32x16xf32> to vector<16x16xf32>
    %181 = vector.extract_strided_slice %149 {offsets = [0, 0], sizes = [16, 16], strides = [1, 1]} : vector<32x16xf32> to vector<16x16xf32>
    %182 = vector.extract_strided_slice %154 {offsets = [0, 0], sizes = [16, 16], strides = [1, 1]} : vector<32x16xf32> to vector<16x16xf32>
    %cst_53 = arith.constant dense<0.000000e+00> : vector<16x16xf32>
    %183 = tpu.matmul %180, %181, %cst_53 {dimension_numbers = #tpu.dot_dimension_numbers<[1], [1], [0], [0], [0, 0, 1, 0], [], []>} : vector<16x16xf32>, vector<16x16xf32>, vector<16x16xf32> -> vector<16x16xf32>
    %184 = arith.addf %183, %160 : vector<16x16xf32>
    %cst_54 = arith.constant dense<0xFF800000> : vector<16xf32>
    %185 = vector.multi_reduction <maximumf>, %184, %cst_54 [1] : vector<16x16xf32> to vector<16xf32>
    %186 = vector.shape_cast %185 : vector<16xf32> to vector<16x1xf32>
    %187 = vector.broadcast %186 : vector<16x1xf32> to vector<16x16xf32>
    %188 = arith.subf %184, %187 : vector<16x16xf32>
    %189 = math.exp %188 : vector<16x16xf32>
    %cst_55 = arith.constant dense<0.000000e+00> : vector<16xf32>
    %190 = vector.multi_reduction <add>, %189, %cst_55 [1] : vector<16x16xf32> to vector<16xf32>
    %191 = vector.shape_cast %190 : vector<16xf32> to vector<16x1xf32>
    %192 = tpu.reciprocal %191 {approx = true} : vector<16x1xf32> -> vector<16x1xf32>
    %193 = vector.broadcast %192 : vector<16x1xf32> to vector<16x16xf32>
    %194 = arith.mulf %189, %193 : vector<16x16xf32>
    %cst_56 = arith.constant dense<0.000000e+00> : vector<16x16xf32>
    %195 = tpu.matmul %194, %182, %cst_56 {dimension_numbers = #tpu.dot_dimension_numbers<[1], [0], [0], [1], [0, 0, 1, 1], [], []>} : vector<16x16xf32>, vector<16x16xf32>, vector<16x16xf32> -> vector<16x16xf32>
    %196 = vector.extract_strided_slice %6 {offsets = [1, 0, 0], sizes = [1, 32, 16], strides = [1, 1, 1]} : vector<2x32x16xf32> to vector<1x32x16xf32>
    %197 = vector.shape_cast %196 : vector<1x32x16xf32> to vector<32x16xf32>
    %cst_57 = arith.constant dense<0.000000e+00> : vector<16x32xf32>
    %198 = tpu.matmul %195, %197, %cst_57 {dimension_numbers = #tpu.dot_dimension_numbers<[1], [1], [0], [0], [0, 0, 1, 0], [], []>} : vector<16x16xf32>, vector<32x16xf32>, vector<16x32xf32> -> vector<16x32xf32>
    %199 = arith.addf %179, %198 : vector<16x32xf32>
    %200 = vector.extract_strided_slice %2 {offsets = [1, 0, 0], sizes = [1, 16, 16], strides = [1, 1, 1]} : vector<2x16x16xf32> to vector<1x16x16xf32>
    %201 = vector.shape_cast %200 : vector<1x16x16xf32> to vector<16x16xf32>
    %cst_58 = arith.constant 1.000000e+00 : f32
    %202 = vector.broadcast %cst_58 : f32 to vector<16x16xf32>
    %203 = arith.subf %201, %202 : vector<16x16xf32>
    %cst_59 = arith.constant 1.000000e+09 : f32
    %204 = vector.broadcast %cst_59 : f32 to vector<16x16xf32>
    %205 = arith.mulf %203, %204 : vector<16x16xf32>
    %206 = vector.extract_strided_slice %123 {offsets = [16, 0], sizes = [16, 16], strides = [1, 1]} : vector<32x16xf32> to vector<16x16xf32>
    %207 = vector.extract_strided_slice %128 {offsets = [16, 0], sizes = [16, 16], strides = [1, 1]} : vector<32x16xf32> to vector<16x16xf32>
    %208 = vector.extract_strided_slice %133 {offsets = [16, 0], sizes = [16, 16], strides = [1, 1]} : vector<32x16xf32> to vector<16x16xf32>
    %cst_60 = arith.constant dense<0.000000e+00> : vector<16x16xf32>
    %209 = tpu.matmul %206, %207, %cst_60 {dimension_numbers = #tpu.dot_dimension_numbers<[1], [1], [0], [0], [0, 0, 1, 0], [], []>} : vector<16x16xf32>, vector<16x16xf32>, vector<16x16xf32> -> vector<16x16xf32>
    %210 = arith.addf %209, %205 : vector<16x16xf32>
    %cst_61 = arith.constant dense<0xFF800000> : vector<16xf32>
    %211 = vector.multi_reduction <maximumf>, %210, %cst_61 [1] : vector<16x16xf32> to vector<16xf32>
    %212 = vector.shape_cast %211 : vector<16xf32> to vector<16x1xf32>
    %213 = vector.broadcast %212 : vector<16x1xf32> to vector<16x16xf32>
    %214 = arith.subf %210, %213 : vector<16x16xf32>
    %215 = math.exp %214 : vector<16x16xf32>
    %cst_62 = arith.constant dense<0.000000e+00> : vector<16xf32>
    %216 = vector.multi_reduction <add>, %215, %cst_62 [1] : vector<16x16xf32> to vector<16xf32>
    %217 = vector.shape_cast %216 : vector<16xf32> to vector<16x1xf32>
    %218 = tpu.reciprocal %217 {approx = true} : vector<16x1xf32> -> vector<16x1xf32>
    %219 = vector.broadcast %218 : vector<16x1xf32> to vector<16x16xf32>
    %220 = arith.mulf %215, %219 : vector<16x16xf32>
    %cst_63 = arith.constant dense<0.000000e+00> : vector<16x16xf32>
    %221 = tpu.matmul %220, %208, %cst_63 {dimension_numbers = #tpu.dot_dimension_numbers<[1], [0], [0], [1], [0, 0, 1, 1], [], []>} : vector<16x16xf32>, vector<16x16xf32>, vector<16x16xf32> -> vector<16x16xf32>
    %222 = vector.extract_strided_slice %6 {offsets = [0, 0, 0], sizes = [1, 32, 16], strides = [1, 1, 1]} : vector<2x32x16xf32> to vector<1x32x16xf32>
    %223 = vector.shape_cast %222 : vector<1x32x16xf32> to vector<32x16xf32>
    %cst_64 = arith.constant dense<0.000000e+00> : vector<16x32xf32>
    %224 = tpu.matmul %221, %223, %cst_64 {dimension_numbers = #tpu.dot_dimension_numbers<[1], [1], [0], [0], [0, 0, 1, 0], [], []>} : vector<16x16xf32>, vector<32x16xf32>, vector<16x32xf32> -> vector<16x32xf32>
    %225 = vector.extract_strided_slice %144 {offsets = [16, 0], sizes = [16, 16], strides = [1, 1]} : vector<32x16xf32> to vector<16x16xf32>
    %226 = vector.extract_strided_slice %149 {offsets = [16, 0], sizes = [16, 16], strides = [1, 1]} : vector<32x16xf32> to vector<16x16xf32>
    %227 = vector.extract_strided_slice %154 {offsets = [16, 0], sizes = [16, 16], strides = [1, 1]} : vector<32x16xf32> to vector<16x16xf32>
    %cst_65 = arith.constant dense<0.000000e+00> : vector<16x16xf32>
    %228 = tpu.matmul %225, %226, %cst_65 {dimension_numbers = #tpu.dot_dimension_numbers<[1], [1], [0], [0], [0, 0, 1, 0], [], []>} : vector<16x16xf32>, vector<16x16xf32>, vector<16x16xf32> -> vector<16x16xf32>
    %229 = arith.addf %228, %205 : vector<16x16xf32>
    %cst_66 = arith.constant dense<0xFF800000> : vector<16xf32>
    %230 = vector.multi_reduction <maximumf>, %229, %cst_66 [1] : vector<16x16xf32> to vector<16xf32>
    %231 = vector.shape_cast %230 : vector<16xf32> to vector<16x1xf32>
    %232 = vector.broadcast %231 : vector<16x1xf32> to vector<16x16xf32>
    %233 = arith.subf %229, %232 : vector<16x16xf32>
    %234 = math.exp %233 : vector<16x16xf32>
    %cst_67 = arith.constant dense<0.000000e+00> : vector<16xf32>
    %235 = vector.multi_reduction <add>, %234, %cst_67 [1] : vector<16x16xf32> to vector<16xf32>
    %236 = vector.shape_cast %235 : vector<16xf32> to vector<16x1xf32>
    %237 = tpu.reciprocal %236 {approx = true} : vector<16x1xf32> -> vector<16x1xf32>
    %238 = vector.broadcast %237 : vector<16x1xf32> to vector<16x16xf32>
    %239 = arith.mulf %234, %238 : vector<16x16xf32>
    %cst_68 = arith.constant dense<0.000000e+00> : vector<16x16xf32>
    %240 = tpu.matmul %239, %227, %cst_68 {dimension_numbers = #tpu.dot_dimension_numbers<[1], [0], [0], [1], [0, 0, 1, 1], [], []>} : vector<16x16xf32>, vector<16x16xf32>, vector<16x16xf32> -> vector<16x16xf32>
    %241 = vector.extract_strided_slice %6 {offsets = [1, 0, 0], sizes = [1, 32, 16], strides = [1, 1, 1]} : vector<2x32x16xf32> to vector<1x32x16xf32>
    %242 = vector.shape_cast %241 : vector<1x32x16xf32> to vector<32x16xf32>
    %cst_69 = arith.constant dense<0.000000e+00> : vector<16x32xf32>
    %243 = tpu.matmul %240, %242, %cst_69 {dimension_numbers = #tpu.dot_dimension_numbers<[1], [1], [0], [0], [0, 0, 1, 0], [], []>} : vector<16x16xf32>, vector<32x16xf32>, vector<16x32xf32> -> vector<16x32xf32>
    %244 = arith.addf %224, %243 : vector<16x32xf32>
    %245 = tpu.concatenate %199, %244 in 0 : vector<16x32xf32>, vector<16x32xf32> -> vector<32x32xf32>
    %246 = vector.broadcast %13 : vector<1x32xf32> to vector<32x32xf32>
    %247 = arith.addf %245, %246 : vector<32x32xf32>
    %248 = arith.addf %112, %247 : vector<32x32xf32>
    %cst_70 = arith.constant dense<0.000000e+00> : vector<32xf32>
    %249 = vector.multi_reduction <add>, %248, %cst_70 [1] : vector<32x32xf32> to vector<32xf32>
    %250 = vector.shape_cast %249 : vector<32xf32> to vector<32x1xf32>
    %cst_71 = arith.constant 3.200000e+01 : f32
    %251 = vector.broadcast %cst_71 : f32 to vector<32x1xf32>
    %252 = arith.divf %250, %251 : vector<32x1xf32>
    %253 = vector.broadcast %252 : vector<32x1xf32> to vector<32x32xf32>
    %254 = arith.subf %248, %253 : vector<32x32xf32>
    %255 = arith.mulf %254, %254 : vector<32x32xf32>
    %cst_72 = arith.constant dense<0.000000e+00> : vector<32xf32>
    %256 = vector.multi_reduction <add>, %255, %cst_72 [1] : vector<32x32xf32> to vector<32xf32>
    %257 = vector.shape_cast %256 : vector<32xf32> to vector<32x1xf32>
    %cst_73 = arith.constant 3.200000e+01 : f32
    %258 = vector.broadcast %cst_73 : f32 to vector<32x1xf32>
    %259 = arith.divf %257, %258 : vector<32x1xf32>
    %260 = vector.broadcast %252 : vector<32x1xf32> to vector<32x32xf32>
    %261 = arith.subf %248, %260 : vector<32x32xf32>
    %cst_74 = arith.constant 9.99999974E-6 : f32
    %262 = vector.broadcast %cst_74 : f32 to vector<32x1xf32>
    %263 = arith.addf %259, %262 : vector<32x1xf32>
    %264 = math.rsqrt %263 : vector<32x1xf32>
    %265 = vector.broadcast %264 : vector<32x1xf32> to vector<32x32xf32>
    %266 = arith.mulf %261, %265 : vector<32x32xf32>
    %267 = vector.broadcast %14 : vector<1x32xf32> to vector<32x32xf32>
    %268 = arith.mulf %266, %267 : vector<32x32xf32>
    %269 = vector.broadcast %15 : vector<1x32xf32> to vector<32x32xf32>
    %270 = arith.addf %268, %269 : vector<32x32xf32>
    %271 = vector.extract_strided_slice %8 {offsets = [0, 0], sizes = [32, 64], strides = [1, 1]} : vector<33x64xf32> to vector<32x64xf32>
    %cst_75 = arith.constant dense<0.000000e+00> : vector<32x64xf32>
    %272 = tpu.matmul %270, %271, %cst_75 {dimension_numbers = #tpu.dot_dimension_numbers<[1], [0], [0], [1], [0, 0, 1, 1], [], []>} : vector<32x32xf32>, vector<32x64xf32>, vector<32x64xf32> -> vector<32x64xf32>
    %273 = vector.extract_strided_slice %8 {offsets = [32, 0], sizes = [1, 64], strides = [1, 1]} : vector<33x64xf32> to vector<1x64xf32>
    %274 = vector.broadcast %273 : vector<1x64xf32> to vector<32x64xf32>
    %275 = arith.addf %272, %274 : vector<32x64xf32>
    %276 = arith.mulf %275, %275 : vector<32x64xf32>
    %277 = arith.mulf %275, %276 : vector<32x64xf32>
    %cst_76 = arith.constant 4.471500e-02 : f32
    %278 = vector.broadcast %cst_76 : f32 to vector<32x64xf32>
    %279 = arith.mulf %278, %277 : vector<32x64xf32>
    %280 = arith.addf %275, %279 : vector<32x64xf32>
    %cst_77 = arith.constant 0.797884583 : f32
    %281 = vector.broadcast %cst_77 : f32 to vector<32x64xf32>
    %282 = arith.mulf %281, %280 : vector<32x64xf32>
    %283 = math.tanh %282 : vector<32x64xf32>
    %cst_78 = arith.constant 1.000000e+00 : f32
    %284 = vector.broadcast %cst_78 : f32 to vector<32x64xf32>
    %285 = arith.addf %284, %283 : vector<32x64xf32>
    %cst_79 = arith.constant 5.000000e-01 : f32
    %286 = vector.broadcast %cst_79 : f32 to vector<32x64xf32>
    %287 = arith.mulf %286, %285 : vector<32x64xf32>
    %288 = arith.mulf %275, %287 : vector<32x64xf32>
    %289 = vector.extract_strided_slice %9 {offsets = [0, 0], sizes = [64, 32], strides = [1, 1]} : vector<65x32xf32> to vector<64x32xf32>
    %cst_80 = arith.constant dense<0.000000e+00> : vector<32x32xf32>
    %290 = tpu.matmul %288, %289, %cst_80 {dimension_numbers = #tpu.dot_dimension_numbers<[1], [0], [0], [1], [0, 0, 1, 1], [], []>} : vector<32x64xf32>, vector<64x32xf32>, vector<32x32xf32> -> vector<32x32xf32>
    %291 = vector.extract_strided_slice %9 {offsets = [64, 0], sizes = [1, 32], strides = [1, 1]} : vector<65x32xf32> to vector<1x32xf32>
    %292 = vector.broadcast %291 : vector<1x32xf32> to vector<32x32xf32>
    %293 = arith.addf %290, %292 : vector<32x32xf32>
    %294 = arith.addf %270, %293 : vector<32x32xf32>
    %cst_81 = arith.constant dense<0.000000e+00> : vector<32xf32>
    %295 = vector.multi_reduction <add>, %294, %cst_81 [1] : vector<32x32xf32> to vector<32xf32>
    %296 = vector.shape_cast %295 : vector<32xf32> to vector<32x1xf32>
    %cst_82 = arith.constant 3.200000e+01 : f32
    %297 = vector.broadcast %cst_82 : f32 to vector<32x1xf32>
    %298 = arith.divf %296, %297 : vector<32x1xf32>
    %299 = vector.broadcast %298 : vector<32x1xf32> to vector<32x32xf32>
    %300 = arith.subf %294, %299 : vector<32x32xf32>
    %301 = arith.mulf %300, %300 : vector<32x32xf32>
    %cst_83 = arith.constant dense<0.000000e+00> : vector<32xf32>
    %302 = vector.multi_reduction <add>, %301, %cst_83 [1] : vector<32x32xf32> to vector<32xf32>
    %303 = vector.shape_cast %302 : vector<32xf32> to vector<32x1xf32>
    %cst_84 = arith.constant 3.200000e+01 : f32
    %304 = vector.broadcast %cst_84 : f32 to vector<32x1xf32>
    %305 = arith.divf %303, %304 : vector<32x1xf32>
    %306 = vector.broadcast %298 : vector<32x1xf32> to vector<32x32xf32>
    %307 = arith.subf %294, %306 : vector<32x32xf32>
    %cst_85 = arith.constant 9.99999974E-6 : f32
    %308 = vector.broadcast %cst_85 : f32 to vector<32x1xf32>
    %309 = arith.addf %305, %308 : vector<32x1xf32>
    %310 = math.rsqrt %309 : vector<32x1xf32>
    %311 = vector.broadcast %310 : vector<32x1xf32> to vector<32x32xf32>
    %312 = arith.mulf %307, %311 : vector<32x32xf32>
    %313 = vector.broadcast %16 : vector<1x32xf32> to vector<32x32xf32>
    %314 = arith.mulf %312, %313 : vector<32x32xf32>
    %315 = vector.broadcast %17 : vector<1x32xf32> to vector<32x32xf32>
    %316 = arith.addf %314, %315 : vector<32x32xf32>
    %317 = vector.extract_strided_slice %316 {offsets = [0, 0], sizes = [1, 32], strides = [1, 1]} : vector<32x32xf32> to vector<1x32xf32>
    %318 = vector.extract_strided_slice %316 {offsets = [16, 0], sizes = [1, 32], strides = [1, 1]} : vector<32x32xf32> to vector<1x32xf32>
    %319 = tpu.concatenate %317, %318 in 0 : vector<1x32xf32>, vector<1x32xf32> -> vector<2x32xf32>
    %320 = vector.extract_strided_slice %10 {offsets = [0, 0], sizes = [32, 32], strides = [1, 1]} : vector<33x32xf32> to vector<32x32xf32>
    %cst_86 = arith.constant dense<0.000000e+00> : vector<2x32xf32>
    %321 = tpu.matmul %319, %320, %cst_86 {dimension_numbers = #tpu.dot_dimension_numbers<[1], [0], [0], [1], [0, 0, 1, 1], [], []>} : vector<2x32xf32>, vector<32x32xf32>, vector<2x32xf32> -> vector<2x32xf32>
    %322 = vector.extract_strided_slice %10 {offsets = [32, 0], sizes = [1, 32], strides = [1, 1]} : vector<33x32xf32> to vector<1x32xf32>
    %323 = vector.broadcast %322 : vector<1x32xf32> to vector<2x32xf32>
    %324 = arith.addf %321, %323 : vector<2x32xf32>
    %325 = math.tanh %324 : vector<2x32xf32>
    %c0_87 = arith.constant 0 : index
    %c0_88 = arith.constant 0 : index
    %326 = vector.load %arg11[%c0_87, %c0_88] : memref<2x32xf32, #tpu.memory_space<vmem>>, vector<2x32xf32>
    tpu.vector_store %arg11[%c0_87, %c0_88], %325 {strides = array<i32>} : memref<2x32xf32, #tpu.memory_space<vmem>>, vector<2x32xf32>,
    return
  }
}

</mosaic_0001>

<llo_original>
// kernel: tpu_custom_call.1
$region0: #{tpu_custom_call.1}
  #allocation0 [shape = 'u32[]', space=smem, size = 0x4, offset = 0x4, fixed_abs, tag = 'smem constant byte address 0x4 - core index']
  #allocation1 [shape = 'u32[144,128]{1,0:T(1,128)}', space=vmem, size = 0x12000, scoped, tag = 'internal scratch']
  %s0 = inlined_call_operand.vmem [shape: f32[2,16,1], index: 0, kind: input, shape index: {}]
  %s1 = inlined_call_operand.vmem [shape: f32[2,1,16], index: 1, kind: input, shape index: {}]
  %s2 = inlined_call_operand.vmem [shape: f32[2,16,16], index: 2, kind: input, shape index: {}]
  %s3 = inlined_call_operand.vmem [shape: f32[2,16,32], index: 3, kind: input, shape index: {}]
  %s4 = inlined_call_operand.vmem [shape: f32[2,16,32], index: 4, kind: input, shape index: {}]
  %s5 = inlined_call_operand.vmem [shape: f32[6,33,16], index: 5, kind: input, shape index: {}]
  %s6 = inlined_call_operand.vmem [shape: f32[2,32,16], index: 6, kind: input, shape index: {}]
  %s7 = inlined_call_operand.vmem [shape: f32[7,32], index: 7, kind: input, shape index: {}]
  %s8 = inlined_call_operand.vmem [shape: f32[33,64], index: 8, kind: input, shape index: {}]
  %s9 = inlined_call_operand.vmem [shape: f32[65,32], index: 9, kind: input, shape index: {}]
  %s10 = inlined_call_operand.vmem [shape: f32[33,32], index: 10, kind: input, shape index: {}]
  %s11 = inlined_call_operand.hbm [shape: f32[2,32], index: 11, kind: output, shape index: {}]
  %s12 = sld [smem:[#allocation0]]
  $region54: #{tpu_custom_call.1} parent=0
    _
  %s14 = ssub.s32 1, %s12
  %s15 = scalar_select 0, %s14, %s12
  $region1: #{tpu_custom_call.1} parent=0
    #allocation2 [shape = 'u8[1024]{0}', space=vmem, size = 0x400, scoped, tag = 'output window, operand 0, single buffered']
    #allocation3 [shape = 's32[1]{0}', space=sflag, size = 0x4, scoped, tag = 'scoped memory for tpu_custom_call.1']
    %16 = vsyncpa [#allocation3], 0
    // Predicated region
    $region2: #{tpu_custom_call.1} parent=1 // pred_check
      _
    $region3: #{tpu_custom_call.1} parent=1 // pred_check_branch
      %18 = sbr.rel (0) target = $region5
    $region4: #{tpu_custom_call.1} parent=1 // pred_region
      _
    $region5: #{tpu_custom_call.1} parent=1 // pred_fallthru
      _
    // Predicated region
    $region6: #{tpu_custom_call.1} parent=1 // pred_check
      _
    $region7: #{tpu_custom_call.1} parent=1 // pred_check_branch
      %20 = sbr.rel (0) target = $region9
    $region8: #{tpu_custom_call.1} parent=1 // pred_region
      _
    $region9: #{tpu_custom_call.1} parent=1 // pred_fallthru
      _
    // Predicated region
    $region10: #{tpu_custom_call.1} parent=1 // pred_check
      _
    $region11: #{tpu_custom_call.1} parent=1 // pred_check_branch
      %22 = sbr.rel (0) target = $region13
    $region12: #{tpu_custom_call.1} parent=1 // pred_region
      _
    $region13: #{tpu_custom_call.1} parent=1 // pred_fallthru
      _
    // Predicated region
    $region14: #{tpu_custom_call.1} parent=1 // pred_check
      _
    $region15: #{tpu_custom_call.1} parent=1 // pred_check_branch
      %24 = sbr.rel (0) target = $region17
    $region16: #{tpu_custom_call.1} parent=1 // pred_region
      _
    $region17: #{tpu_custom_call.1} parent=1 // pred_fallthru
      _
    // Predicated region
    $region18: #{tpu_custom_call.1} parent=1 // pred_check
      _
    $region19: #{tpu_custom_call.1} parent=1 // pred_check_branch
      %26 = sbr.rel (0) target = $region21
    $region20: #{tpu_custom_call.1} parent=1 // pred_region
      _
    $region21: #{tpu_custom_call.1} parent=1 // pred_fallthru
      _
    // Predicated region
    $region22: #{tpu_custom_call.1} parent=1 // pred_check
      _
    $region23: #{tpu_custom_call.1} parent=1 // pred_check_branch
      %28 = sbr.rel (0) target = $region25
    $region24: #{tpu_custom_call.1} parent=1 // pred_region
      _
    $region25: #{tpu_custom_call.1} parent=1 // pred_fallthru
      _
    // Predicated region
    $region26: #{tpu_custom_call.1} parent=1 // pred_check
      _
    $region27: #{tpu_custom_call.1} parent=1 // pred_check_branch
      %30 = sbr.rel (0) target = $region29
    $region28: #{tpu_custom_call.1} parent=1 // pred_region
      _
    $region29: #{tpu_custom_call.1} parent=1 // pred_fallthru
      _
    // Predicated region
    $region30: #{tpu_custom_call.1} parent=1 // pred_check
      _
    $region31: #{tpu_custom_call.1} parent=1 // pred_check_branch
      %32 = sbr.rel (0) target = $region33
    $region32: #{tpu_custom_call.1} parent=1 // pred_region
      _
    $region33: #{tpu_custom_call.1} parent=1 // pred_fallthru
      _
    // Predicated region
    $region34: #{tpu_custom_call.1} parent=1 // pred_check
      _
    $region35: #{tpu_custom_call.1} parent=1 // pred_check_branch
      %34 = sbr.rel (0) target = $region37
    $region36: #{tpu_custom_call.1} parent=1 // pred_region
      _
    $region37: #{tpu_custom_call.1} parent=1 // pred_fallthru
      _
    // Predicated region
    $region38: #{tpu_custom_call.1} parent=1 // pred_check
      _
    $region39: #{tpu_custom_call.1} parent=1 // pred_check_branch
      %36 = sbr.rel (0) target = $region41
    $region40: #{tpu_custom_call.1} parent=1 // pred_region
      _
    $region41: #{tpu_custom_call.1} parent=1 // pred_fallthru
      _
    // Predicated region
    $region42: #{tpu_custom_call.1} parent=1 // pred_check
      _
    $region43: #{tpu_custom_call.1} parent=1 // pred_check_branch
      %38 = sbr.rel (0) target = $region45
    $region44: #{tpu_custom_call.1} parent=1 // pred_region
      _
    $region45: #{tpu_custom_call.1} parent=1 // pred_fallthru
      _
    %v39 = vld [vmem:[%s0] sm:$0xff]
    %v40 = vld [vmem:[%s0 + $0x8] sm:$0xff]
    %v41 = vld [vmem:[%s0 + $0x10] sm:$0xff]
    %v42 = vld [vmem:[%s0 + $0x18] sm:$0xff]
    %v43 = vld [vmem:[%s1] sm:$0x1]
    %v44 = vld [vmem:[%s1 + $0x1] sm:$0x1]
    %v45 = vld [vmem:[%s2] sm:$0xff]
    %v46 = vld [vmem:[%s2 + $0x8] sm:$0xff]
    %v47 = vld [vmem:[%s2 + $0x10] sm:$0xff]
    %v48 = vld [vmem:[%s2 + $0x18] sm:$0xff]
    %v49 = vld [vmem:[%s3] sm:$0xff]
    %v50 = vld [vmem:[%s3 + $0x8] sm:$0xff]
    %v51 = vld [vmem:[%s3 + $0x10] sm:$0xff]
    %v52 = vld [vmem:[%s3 + $0x18] sm:$0xff]
    %v53 = vld [vmem:[%s4] sm:$0xff]
    %v54 = vld [vmem:[%s4 + $0x8] sm:$0xff]
    %v55 = vld [vmem:[%s4 + $0x10] sm:$0xff]
    %v56 = vld [vmem:[%s4 + $0x18] sm:$0xff]
    %v57 = vld [vmem:[%s5] sm:$0xff]
    %v58 = vld [vmem:[%s5 + $0x8] sm:$0xff]
    %v59 = vld [vmem:[%s5 + $0x10] sm:$0xff]
    %v60 = vld [vmem:[%s5 + $0x18] sm:$0xff]
    %v61 = vld [vmem:[%s5 + $0x20] sm:$0x1]
    %v62 = vld [vmem:[%s5 + $0x28] sm:$0xff]
    %v63 = vld [vmem:[%s5 + $0x30] sm:$0xff]
    %v64 = vld [vmem:[%s5 + $0x38] sm:$0xff]
    %v65 = vld [vmem:[%s5 + $0x40] sm:$0xff]
    %v66 = vld [vmem:[%s5 + $0x48] sm:$0x1]
    %v67 = vld [vmem:[%s5 + $0x50] sm:$0xff]
    %v68 = vld [vmem:[%s5 + $0x58] sm:$0xff]
    %v69 = vld [vmem:[%s5 + $0x60] sm:$0xff]
    %v70 = vld [vmem:[%s5 + $0x68] sm:$0xff]
    %v71 = vld [vmem:[%s5 + $0x70] sm:$0x1]
    %v72 = vld [vmem:[%s5 + $0x78] sm:$0xff]
    %v73 = vld [vmem:[%s5 + $0x80] sm:$0xff]
    %v74 = vld [vmem:[%s5 + $0x88] sm:$0xff]
    %v75 = vld [vmem:[%s5 + $0x90] sm:$0xff]
    %v76 = vld [vmem:[%s5 + $0x98] sm:$0x1]
    %v77 = vld [vmem:[%s5 + $0xa0] sm:$0xff]
    %v78 = vld [vmem:[%s5 + $0xa8] sm:$0xff]
    %v79 = vld [vmem:[%s5 + $0xb0] sm:$0xff]
    %v80 = vld [vmem:[%s5 + $0xb8] sm:$0xff]
    %v81 = vld [vmem:[%s5 + $0xc0] sm:$0x1]
    %v82 = vld [vmem:[%s5 + $0xc8] sm:$0xff]
    %v83 = vld [vmem:[%s5 + $0xd0] sm:$0xff]
    %v84 = vld [vmem:[%s5 + $0xd8] sm:$0xff]
    %v85 = vld [vmem:[%s5 + $0xe0] sm:$0xff]
    %v86 = vld [vmem:[%s5 + $0xe8] sm:$0x1]
    %v87 = vld [vmem:[%s6] sm:$0xff]
    %v88 = vld [vmem:[%s6 + $0x8] sm:$0xff]
    %v89 = vld [vmem:[%s6 + $0x10] sm:$0xff]
    %v90 = vld [vmem:[%s6 + $0x18] sm:$0xff]
    %v91 = vld [vmem:[%s6 + $0x20] sm:$0xff]
    %v92 = vld [vmem:[%s6 + $0x28] sm:$0xff]
    %v93 = vld [vmem:[%s6 + $0x30] sm:$0xff]
    %v94 = vld [vmem:[%s6 + $0x38] sm:$0xff]
    %v95 = vld [vmem:[%s7] sm:$0x7f]
    %v96 = vld [vmem:[%s8] sm:$0xff]
    %v97 = vld [vmem:[%s8 + $0x8] sm:$0xff]
    %v98 = vld [vmem:[%s8 + $0x10] sm:$0xff]
    %v99 = vld [vmem:[%s8 + $0x18] sm:$0xff]
    %v100 = vld [vmem:[%s8 + $0x20] sm:$0x1]
    %v101 = vld [vmem:[%s9] sm:$0xff]
    %v102 = vld [vmem:[%s9 + $0x8] sm:$0xff]
    %v103 = vld [vmem:[%s9 + $0x10] sm:$0xff]
    %v104 = vld [vmem:[%s9 + $0x18] sm:$0xff]
    %v105 = vld [vmem:[%s9 + $0x20] sm:$0xff]
    %v106 = vld [vmem:[%s9 + $0x28] sm:$0xff]
    %v107 = vld [vmem:[%s9 + $0x30] sm:$0xff]
    %v108 = vld [vmem:[%s9 + $0x38] sm:$0xff]
    %v109 = vld [vmem:[%s9 + $0x40] sm:$0x1]
    %v110 = vld [vmem:[%s10] sm:$0xff]
    %v111 = vld [vmem:[%s10 + $0x8] sm:$0xff]
    %v112 = vld [vmem:[%s10 + $0x10] sm:$0xff]
    %v113 = vld [vmem:[%s10 + $0x18] sm:$0xff]
    %v114 = vld [vmem:[%s10 + $0x20] sm:$0x1]
    %116 = vset.pattern.permute.xlu0 0
    %117 = vperm.xlu0 %116, %v39
    %v118 = vpop.permute.xlu0 %117
    %121 = vset.pattern.permute.xlu0 0
    %122 = vperm.xlu0 %121, %v40
    %v123 = vpop.permute.xlu0 %122
    %v126 = vlaneseq
    %v127 = vshrl.u32 %v126, 7
    %v128 = vsub.s32 0, %v127
    %v129 = vrot.slane %v43, %v128
    %v131 = vmul.f32 %v118, %v129
    %v132 = vmul.f32 %v123, %v129
    %v133 = vmul.f32 %v131, %v45
    %v134 = vmul.f32 %v132, %v46
    %vm135 = vcmask 130048
    %v136 = vsel %vm135, %v133, 0.0
    %137 = vadd.xlane.f32.xlu0 %v136
    %v138 = vpop.xlane.xlu0 %137
    %v139 = vsel %vm135, %v134, 0.0
    %140 = vadd.xlane.f32.xlu0 %v139
    %v141 = vpop.xlane.xlu0 %140
    %v142 = vadd.f32 %v138, 1e-10
    %v143 = vadd.f32 %v141, 1e-10
    %v144 = vrcp.pop %v142
    %v145 = vrcp.pop %v143
    %v146 = vmul.f32 %v133, %v144
    %v147 = vmul.f32 %v134, %v145
    %v149 = vsel %vm135, %v146, 0
    %v152 = vsel %vm135, %v147, 0
    %154 = vmatprep.subr.mxu0 0.0
    %155 = vmatpush1.msra.mxu0 0.0
    %156 = vmatprep.subr.mxu0 0.0
    %157 = vmatpush1.msra.mxu0 0.0
    %158 = vmatprep.subr.mxu0 0.0
    %159 = vmatpush1.msra.mxu0 0.0
    %160 = vmatprep.subr.mxu0 0.0
    %161 = vmatpush1.msra.mxu0 0.0
    %162 = vmatprep.subr.mxu0 0.0
    %163 = vmatpush1.msra.mxu0 0.0
    %164 = vmatprep.subr.mxu0 0.0
    %165 = vmatpush1.msra.mxu0 0.0
    %166 = vmatprep.subr.mxu0 0.0
    %167 = vmatpush1.msra.mxu0 0.0
    %168 = vmatprep.subr.mxu0 0.0
    %169 = vmatpush1.msra.mxu0 0.0
    %170 = vmatprep.subr.mxu0 0.0
    %171 = vmatpush1.msra.mxu0 0.0
    %172 = vmatprep.subr.mxu0 0.0
    %173 = vmatpush1.msra.mxu0 0.0
    %174 = vmatprep.subr.mxu0 0.0
    %175 = vmatpush1.msra.mxu0 0.0
    %176 = vmatprep.subr.mxu0 0.0
    %177 = vmatpush1.msra.mxu0 0.0
    %178 = vmatprep.subr.mxu0 0.0
    %179 = vmatpush1.msra.mxu0 0.0
    %180 = vmatprep.subr.mxu0 0.0
    %181 = vmatpush1.msra.mxu0 0.0
    %182 = vmatprep.subr.mxu0 0.0
    %183 = vmatpush1.msra.mxu0 %v50
    %184 = vmatprep.subr.mxu0 0.0
    %185 = vmatpush1.msra.mxu0 %v49
    %186 = vmatprep.subr.mxu0 0.0
    %187 = vmatpush2.msra.mxu0 0.0
    %188 = vmatprep.subr.mxu0 0.0
    %189 = vmatpush2.msra.mxu0 0.0
    %190 = vmatprep.subr.mxu0 0.0
    %191 = vmatpush2.msra.mxu0 0.0
    %192 = vmatprep.subr.mxu0 0.0
    %193 = vmatpush2.msra.mxu0 0.0
    %194 = vmatprep.subr.mxu0 0.0
    %195 = vmatpush2.msra.mxu0 0.0
    %196 = vmatprep.subr.mxu0 0.0
    %197 = vmatpush2.msra.mxu0 0.0
    %198 = vmatprep.subr.mxu0 0.0
    %199 = vmatpush2.msra.mxu0 0.0
    %200 = vmatprep.subr.mxu0 0.0
    %201 = vmatpush2.msra.mxu0 0.0
    %202 = vmatprep.subr.mxu0 0.0
    %203 = vmatpush2.msra.mxu0 0.0
    %204 = vmatprep.subr.mxu0 0.0
    %205 = vmatpush2.msra.mxu0 0.0
    %206 = vmatprep.subr.mxu0 0.0
    %207 = vmatpush2.msra.mxu0 0.0
    %208 = vmatprep.subr.mxu0 0.0
    %209 = vmatpush2.msra.mxu0 0.0
    %210 = vmatprep.subr.mxu0 0.0
    %211 = vmatpush2.msra.mxu0 0.0
    %212 = vmatprep.subr.mxu0 0.0
    %213 = vmatpush2.msra.mxu0 0.0
    %214 = vmatprep.subr.mxu0 0.0
    %215 = vmatpush2.msra.mxu0 0.0
    %216 = vmatprep.subr.mxu0 0.0
    %217 = vmatpush2.msra.mxu0 0.0
    %218 = vmatprep.mubr.f32.mxu0 0.0
    %219 = vmatmul.mubr.f32.gmra.mxu0 %v149
    %v220 = vpop.f32.mrf.mxu0
    %v221 = vadd.f32 0.0, %v220
    %v222 = vpop.f32.mrf.mxu0
    %223 = vmatprep.mubr.f32.mxu0 0.0
    %224 = vmatmul.mubr.f32.gmra.mxu0 %v152
    %v225 = vpop.f32.mrf.mxu0
    %v226 = vadd.f32 0.0, %v225
    %v227 = vpop.f32.mrf.mxu0
    %228 = vdwg.mxu0
    %v229 = vsub.f32 1.0, %v39
    %v230 = vsub.f32 1.0, %v40
    %232 = vset.pattern.permute.xlu0 0
    %233 = vperm.xlu0 %232, %v229
    %v234 = vpop.permute.xlu0 %233
    %237 = vset.pattern.permute.xlu0 0
    %238 = vperm.xlu0 %237, %v230
    %v239 = vpop.permute.xlu0 %238
    %v241 = vmul.f32 %v49, %v234
    %v242 = vmul.f32 %v50, %v239
    %v243 = vmul.f32 %v221, %v118
    %v244 = vmul.f32 %v226, %v123
    %v245 = vadd.f32 %v241, %v243
    %v246 = vadd.f32 %v242, %v244
    %v247 = vadd.f32 %v245, %v53
    %v248 = vadd.f32 %v246, %v54
    %250 = vset.pattern.permute.xlu0 0
    %251 = vperm.xlu0 %250, %v41
    %v252 = vpop.permute.xlu0 %251
    %255 = vset.pattern.permute.xlu0 0
    %256 = vperm.xlu0 %255, %v42
    %v257 = vpop.permute.xlu0 %256
    %v260 = vlaneseq
    %v261 = vshrl.u32 %v260, 7
    %v262 = vsub.s32 0, %v261
    %v263 = vrot.slane %v44, %v262
    %v265 = vmul.f32 %v252, %v263
    %v266 = vmul.f32 %v257, %v263
    %v267 = vmul.f32 %v265, %v47
    %v268 = vmul.f32 %v266, %v48
    %v269 = vsel %vm135, %v267, 0.0
    %270 = vadd.xlane.f32.xlu0 %v269
    %v271 = vpop.xlane.xlu0 %270
    %v272 = vsel %vm135, %v268, 0.0
    %273 = vadd.xlane.f32.xlu0 %v272
    %v274 = vpop.xlane.xlu0 %273
    %v275 = vadd.f32 %v271, 1e-10
    %v276 = vadd.f32 %v274, 1e-10
    %v277 = vrcp.pop %v275
    %v278 = vrcp.pop %v276
    %v279 = vmul.f32 %v267, %v277
    %v280 = vmul.f32 %v268, %v278
    %v282 = vsel %vm135, %v279, 0
    %v285 = vsel %vm135, %v280, 0
    %287 = vmatprep.subr.mxu0 0.0
    %288 = vmatpush1.msra.mxu0 0.0
    %289 = vmatprep.subr.mxu0 0.0
    %290 = vmatpush1.msra.mxu0 0.0
    %291 = vmatprep.subr.mxu0 0.0
    %292 = vmatpush1.msra.mxu0 0.0
    %293 = vmatprep.subr.mxu0 0.0
    %294 = vmatpush1.msra.mxu0 0.0
    %295 = vmatprep.subr.mxu0 0.0
    %296 = vmatpush1.msra.mxu0 0.0
    %297 = vmatprep.subr.mxu0 0.0
    %298 = vmatpush1.msra.mxu0 0.0
    %299 = vmatprep.subr.mxu0 0.0
    %300 = vmatpush1.msra.mxu0 0.0
    %301 = vmatprep.subr.mxu0 0.0
    %302 = vmatpush1.msra.mxu0 0.0
    %303 = vmatprep.subr.mxu0 0.0
    %304 = vmatpush1.msra.mxu0 0.0
    %305 = vmatprep.subr.mxu0 0.0
    %306 = vmatpush1.msra.mxu0 0.0
    %307 = vmatprep.subr.mxu0 0.0
    %308 = vmatpush1.msra.mxu0 0.0
    %309 = vmatprep.subr.mxu0 0.0
    %310 = vmatpush1.msra.mxu0 0.0
    %311 = vmatprep.subr.mxu0 0.0
    %312 = vmatpush1.msra.mxu0 0.0
    %313 = vmatprep.subr.mxu0 0.0
    %314 = vmatpush1.msra.mxu0 0.0
    %315 = vmatprep.subr.mxu0 0.0
    %316 = vmatpush1.msra.mxu0 %v52
    %317 = vmatprep.subr.mxu0 0.0
    %318 = vmatpush1.msra.mxu0 %v51
    %319 = vmatprep.subr.mxu0 0.0
    %320 = vmatpush2.msra.mxu0 0.0
    %321 = vmatprep.subr.mxu0 0.0
    %322 = vmatpush2.msra.mxu0 0.0
    %323 = vmatprep.subr.mxu0 0.0
    %324 = vmatpush2.msra.mxu0 0.0
    %325 = vmatprep.subr.mxu0 0.0
    %326 = vmatpush2.msra.mxu0 0.0
    %327 = vmatprep.subr.mxu0 0.0
    %328 = vmatpush2.msra.mxu0 0.0
    %329 = vmatprep.subr.mxu0 0.0
    %330 = vmatpush2.msra.mxu0 0.0
    %331 = vmatprep.subr.mxu0 0.0
    %332 = vmatpush2.msra.mxu0 0.0
    %333 = vmatprep.subr.mxu0 0.0
    %334 = vmatpush2.msra.mxu0 0.0
    %335 = vmatprep.subr.mxu0 0.0
    %336 = vmatpush2.msra.mxu0 0.0
    %337 = vmatprep.subr.mxu0 0.0
    %338 = vmatpush2.msra.mxu0 0.0
    %339 = vmatprep.subr.mxu0 0.0
    %340 = vmatpush2.msra.mxu0 0.0
    %341 = vmatprep.subr.mxu0 0.0
    %342 = vmatpush2.msra.mxu0 0.0
    %343 = vmatprep.subr.mxu0 0.0
    %344 = vmatpush2.msra.mxu0 0.0
    %345 = vmatprep.subr.mxu0 0.0
    %346 = vmatpush2.msra.mxu0 0.0
    %347 = vmatprep.subr.mxu0 0.0
    %348 = vmatpush2.msra.mxu0 0.0
    %349 = vmatprep.subr.mxu0 0.0
    %350 = vmatpush2.msra.mxu0 0.0
    %351 = vmatprep.mubr.f32.mxu0 0.0
    %352 = vmatmul.mubr.f32.gmra.mxu0 %v282
    %v353 = vpop.f32.mrf.mxu0
    %v354 = vadd.f32 0.0, %v353
    %v355 = vpop.f32.mrf.mxu0
    %356 = vmatprep.mubr.f32.mxu0 0.0
    %357 = vmatmul.mubr.f32.gmra.mxu0 %v285
    %v358 = vpop.f32.mrf.mxu0
    %v359 = vadd.f32 0.0, %v358
    %v360 = vpop.f32.mrf.mxu0
    %361 = vdwg.mxu0
    %v362 = vsub.f32 1.0, %v41
    %v363 = vsub.f32 1.0, %v42
    %365 = vset.pattern.permute.xlu0 0
    %366 = vperm.xlu0 %365, %v362
    %v367 = vpop.permute.xlu0 %366
    %370 = vset.pattern.permute.xlu0 0
    %371 = vperm.xlu0 %370, %v363
    %v372 = vpop.permute.xlu0 %371
    %v374 = vmul.f32 %v51, %v367
    %v375 = vmul.f32 %v52, %v372
    %v376 = vmul.f32 %v354, %v252
    %v377 = vmul.f32 %v359, %v257
    %v378 = vadd.f32 %v374, %v376
    %v379 = vadd.f32 %v375, %v377
    %v380 = vadd.f32 %v378, %v55
    %v381 = vadd.f32 %v379, %v56
    %vm382 = vcmask 261120
    %v383 = vsel %vm382, %v247, 0.0
    %384 = vadd.xlane.f32.xlu0 %v383
    %v385 = vpop.xlane.xlu0 %384
    %v386 = vsel %vm382, %v248, 0.0
    %387 = vadd.xlane.f32.xlu0 %v386
    %v388 = vpop.xlane.xlu0 %387
    %v389 = vsel %vm382, %v380, 0.0
    %390 = vadd.xlane.f32.xlu0 %v389
    %v391 = vpop.xlane.xlu0 %390
    %v392 = vsel %vm382, %v381, 0.0
    %393 = vadd.xlane.f32.xlu0 %v392
    %v394 = vpop.xlane.xlu0 %393
    %v395 = vrcp.pop 32.0
    %v396 = vmul.f32 %v385, %v395
    %v397 = vmul.f32 %v388, %v395
    %v398 = vmul.f32 %v391, %v395
    %v399 = vmul.f32 %v394, %v395
    %v400 = vsub.f32 %v247, %v396
    %v401 = vsub.f32 %v248, %v397
    %v402 = vsub.f32 %v380, %v398
    %v403 = vsub.f32 %v381, %v399
    %v404 = vmul.f32 %v400, %v400
    %v405 = vmul.f32 %v401, %v401
    %v406 = vmul.f32 %v402, %v402
    %v407 = vmul.f32 %v403, %v403
    %v408 = vsel %vm382, %v404, 0.0
    %409 = vadd.xlane.f32.xlu0 %v408
    %v410 = vpop.xlane.xlu0 %409
    %v411 = vsel %vm382, %v405, 0.0
    %412 = vadd.xlane.f32.xlu0 %v411
    %v413 = vpop.xlane.xlu0 %412
    %v414 = vsel %vm382, %v406, 0.0
    %415 = vadd.xlane.f32.xlu0 %v414
    %v416 = vpop.xlane.xlu0 %415
    %v417 = vsel %vm382, %v407, 0.0
    %418 = vadd.xlane.f32.xlu0 %v417
    %v419 = vpop.xlane.xlu0 %418
    %v420 = vmul.f32 %v410, %v395
    %v421 = vmul.f32 %v413, %v395
    %v422 = vmul.f32 %v416, %v395
    %v423 = vmul.f32 %v419, %v395
    %v424 = vadd.f32 %v420, 1e-05
    %v425 = vadd.f32 %v421, 1e-05
    %v426 = vadd.f32 %v422, 1e-05
    %v427 = vadd.f32 %v423, 1e-05
    %v428 = vrsqrt.pop %v424
    %v429 = vrsqrt.pop %v425
    %v430 = vrsqrt.pop %v426
    %v431 = vrsqrt.pop %v427
    %v432 = vmul.f32 %v400, %v428
    %v433 = vmul.f32 %v401, %v429
    %v434 = vmul.f32 %v402, %v430
    %v435 = vmul.f32 %v403, %v431
    %v436 = vlaneseq
    %v437 = vshrl.u32 %v436, 7
    %v438 = vsub.s32 0, %v437
    %v439 = vrot.slane %v95, %v438
    %v440 = vmul.f32 %v432, %v439
    %v441 = vmul.f32 %v433, %v439
    %v442 = vmul.f32 %v434, %v439
    %v443 = vmul.f32 %v435, %v439
    %v444 = vlaneseq
    %v445 = vshrl.u32 %v444, 7
    %v446 = vsub.s32 1, %v445
    %v447 = vrot.slane %v95, %v446
    %v448 = vadd.f32 %v440, %v447
    %v449 = vadd.f32 %v441, %v447
    %v450 = vadd.f32 %v442, %v447
    %v451 = vadd.f32 %v443, %v447
    %v452 = vlaneseq
    %v453 = vshrl.u32 %v452, 7
    %v454 = vsub.s32 0, %v453
    %v455 = vrot.slane %v61, %v454
    %v457 = vsel %vm382, %v448, 0
    %v460 = vsel %vm382, %v449, 0
    %v463 = vsel %vm382, %v450, 0
    %v466 = vsel %vm382, %v451, 0
    %468 = vmatprep.subr.mxu0 0.0
    %469 = vmatpush1.msra.mxu0 0.0
    %470 = vmatprep.subr.mxu0 0.0
    %471 = vmatpush1.msra.mxu0 0.0
    %472 = vmatprep.subr.mxu0 0.0
    %473 = vmatpush1.msra.mxu0 0.0
    %474 = vmatprep.subr.mxu0 0.0
    %475 = vmatpush1.msra.mxu0 0.0
    %476 = vmatprep.subr.mxu0 0.0
    %477 = vmatpush1.msra.mxu0 0.0
    %478 = vmatprep.subr.mxu0 0.0
    %479 = vmatpush1.msra.mxu0 0.0
    %480 = vmatprep.subr.mxu0 0.0
    %481 = vmatpush1.msra.mxu0 0.0
    %482 = vmatprep.subr.mxu0 0.0
    %483 = vmatpush1.msra.mxu0 0.0
    %484 = vmatprep.subr.mxu0 0.0
    %485 = vmatpush1.msra.mxu0 0.0
    %486 = vmatprep.subr.mxu0 0.0
    %487 = vmatpush1.msra.mxu0 0.0
    %488 = vmatprep.subr.mxu0 0.0
    %489 = vmatpush1.msra.mxu0 0.0
    %490 = vmatprep.subr.mxu0 0.0
    %491 = vmatpush1.msra.mxu0 0.0
    %492 = vmatprep.subr.mxu0 0.0
    %493 = vmatpush1.msra.mxu0 %v60
    %494 = vmatprep.subr.mxu0 0.0
    %495 = vmatpush1.msra.mxu0 %v59
    %496 = vmatprep.subr.mxu0 0.0
    %497 = vmatpush1.msra.mxu0 %v58
    %498 = vmatprep.subr.mxu0 0.0
    %499 = vmatpush1.msra.mxu0 %v57
    %500 = vmatprep.subr.mxu0 0.0
    %501 = vmatpush2.msra.mxu0 0.0
    %502 = vmatprep.subr.mxu0 0.0
    %503 = vmatpush2.msra.mxu0 0.0
    %504 = vmatprep.subr.mxu0 0.0
    %505 = vmatpush2.msra.mxu0 0.0
    %506 = vmatprep.subr.mxu0 0.0
    %507 = vmatpush2.msra.mxu0 0.0
    %508 = vmatprep.subr.mxu0 0.0
    %509 = vmatpush2.msra.mxu0 0.0
    %510 = vmatprep.subr.mxu0 0.0
    %511 = vmatpush2.msra.mxu0 0.0
    %512 = vmatprep.subr.mxu0 0.0
    %513 = vmatpush2.msra.mxu0 0.0
    %514 = vmatprep.subr.mxu0 0.0
    %515 = vmatpush2.msra.mxu0 0.0
    %516 = vmatprep.subr.mxu0 0.0
    %517 = vmatpush2.msra.mxu0 0.0
    %518 = vmatprep.subr.mxu0 0.0
    %519 = vmatpush2.msra.mxu0 0.0
    %520 = vmatprep.subr.mxu0 0.0
    %521 = vmatpush2.msra.mxu0 0.0
    %522 = vmatprep.subr.mxu0 0.0
    %523 = vmatpush2.msra.mxu0 0.0
    %524 = vmatprep.subr.mxu0 0.0
    %525 = vmatpush2.msra.mxu0 0.0
    %526 = vmatprep.subr.mxu0 0.0
    %527 = vmatpush2.msra.mxu0 0.0
    %528 = vmatprep.subr.mxu0 0.0
    %529 = vmatpush2.msra.mxu0 0.0
    %530 = vmatprep.subr.mxu0 0.0
    %531 = vmatpush2.msra.mxu0 0.0
    %532 = vmatprep.mubr.f32.mxu0 0.0
    %533 = vmatmul.mubr.f32.gmra.mxu0 %v457
    %v534 = vpop.f32.mrf.mxu0
    %v535 = vadd.f32 %v455, %v534
    %v536 = vpop.f32.mrf.mxu0
    %537 = vmatprep.mubr.f32.mxu0 0.0
    %538 = vmatmul.mubr.f32.gmra.mxu0 %v460
    %v539 = vpop.f32.mrf.mxu0
    %v540 = vadd.f32 %v455, %v539
    %v541 = vpop.f32.mrf.mxu0
    %542 = vmatprep.mubr.f32.mxu0 0.0
    %543 = vmatmul.mubr.f32.gmra.mxu0 %v463
    %v544 = vpop.f32.mrf.mxu0
    %v545 = vadd.f32 %v455, %v544
    %v546 = vpop.f32.mrf.mxu0
    %547 = vmatprep.mubr.f32.mxu0 0.0
    %548 = vmatmul.mubr.f32.gmra.mxu0 %v466
    %v549 = vpop.f32.mrf.mxu0
    %v550 = vadd.f32 %v455, %v549
    %v551 = vpop.f32.mrf.mxu0
    %552 = vdwg.mxu0
    %v553 = vlaneseq
    %v554 = vshrl.u32 %v553, 7
    %v555 = vsub.s32 0, %v554
    %v556 = vrot.slane %v71, %v555
    %557 = vmatprep.subr.mxu0 0.0
    %558 = vmatpush1.msra.mxu0 0.0
    %559 = vmatprep.subr.mxu0 0.0
    %560 = vmatpush1.msra.mxu0 0.0
    %561 = vmatprep.subr.mxu0 0.0
    %562 = vmatpush1.msra.mxu0 0.0
    %563 = vmatprep.subr.mxu0 0.0
    %564 = vmatpush1.msra.mxu0 0.0
    %565 = vmatprep.subr.mxu0 0.0
    %566 = vmatpush1.msra.mxu0 0.0
    %567 = vmatprep.subr.mxu0 0.0
    %568 = vmatpush1.msra.mxu0 0.0
    %569 = vmatprep.subr.mxu0 0.0
    %570 = vmatpush1.msra.mxu0 0.0
    %571 = vmatprep.subr.mxu0 0.0
    %572 = vmatpush1.msra.mxu0 0.0
    %573 = vmatprep.subr.mxu0 0.0
    %574 = vmatpush1.msra.mxu0 0.0
    %575 = vmatprep.subr.mxu0 0.0
    %576 = vmatpush1.msra.mxu0 0.0
    %577 = vmatprep.subr.mxu0 0.0
    %578 = vmatpush1.msra.mxu0 0.0
    %579 = vmatprep.subr.mxu0 0.0
    %580 = vmatpush1.msra.mxu0 0.0
    %581 = vmatprep.subr.mxu0 0.0
    %582 = vmatpush1.msra.mxu0 %v70
    %583 = vmatprep.subr.mxu0 0.0
    %584 = vmatpush1.msra.mxu0 %v69
    %585 = vmatprep.subr.mxu0 0.0
    %586 = vmatpush1.msra.mxu0 %v68
    %587 = vmatprep.subr.mxu0 0.0
    %588 = vmatpush1.msra.mxu0 %v67
    %589 = vmatprep.subr.mxu0 0.0
    %590 = vmatpush2.msra.mxu0 0.0
    %591 = vmatprep.subr.mxu0 0.0
    %592 = vmatpush2.msra.mxu0 0.0
    %593 = vmatprep.subr.mxu0 0.0
    %594 = vmatpush2.msra.mxu0 0.0
    %595 = vmatprep.subr.mxu0 0.0
    %596 = vmatpush2.msra.mxu0 0.0
    %597 = vmatprep.subr.mxu0 0.0
    %598 = vmatpush2.msra.mxu0 0.0
    %599 = vmatprep.subr.mxu0 0.0
    %600 = vmatpush2.msra.mxu0 0.0
    %601 = vmatprep.subr.mxu0 0.0
    %602 = vmatpush2.msra.mxu0 0.0
    %603 = vmatprep.subr.mxu0 0.0
    %604 = vmatpush2.msra.mxu0 0.0
    %605 = vmatprep.subr.mxu0 0.0
    %606 = vmatpush2.msra.mxu0 0.0
    %607 = vmatprep.subr.mxu0 0.0
    %608 = vmatpush2.msra.mxu0 0.0
    %609 = vmatprep.subr.mxu0 0.0
    %610 = vmatpush2.msra.mxu0 0.0
    %611 = vmatprep.subr.mxu0 0.0
    %612 = vmatpush2.msra.mxu0 0.0
    %613 = vmatprep.subr.mxu0 0.0
    %614 = vmatpush2.msra.mxu0 0.0
    %615 = vmatprep.subr.mxu0 0.0
    %616 = vmatpush2.msra.mxu0 0.0
    %617 = vmatprep.subr.mxu0 0.0
    %618 = vmatpush2.msra.mxu0 0.0
    %619 = vmatprep.subr.mxu0 0.0
    %620 = vmatpush2.msra.mxu0 0.0
    %621 = vmatprep.mubr.f32.mxu0 0.0
    %622 = vmatmul.mubr.f32.gmra.mxu0 %v457
    %v623 = vpop.f32.mrf.mxu0
    %v624 = vadd.f32 %v556, %v623
    %v625 = vpop.f32.mrf.mxu0
    %626 = vmatprep.mubr.f32.mxu0 0.0
    %627 = vmatmul.mubr.f32.gmra.mxu0 %v460
    %v628 = vpop.f32.mrf.mxu0
    %v629 = vadd.f32 %v556, %v628
    %v630 = vpop.f32.mrf.mxu0
    %631 = vmatprep.mubr.f32.mxu0 0.0
    %632 = vmatmul.mubr.f32.gmra.mxu0 %v463
    %v633 = vpop.f32.mrf.mxu0
    %v634 = vadd.f32 %v556, %v633
    %v635 = vpop.f32.mrf.mxu0
    %636 = vmatprep.mubr.f32.mxu0 0.0
    %637 = vmatmul.mubr.f32.gmra.mxu0 %v466
    %v638 = vpop.f32.mrf.mxu0
    %v639 = vadd.f32 %v556, %v638
    %v640 = vpop.f32.mrf.mxu0
    %641 = vdwg.mxu0
    %v642 = vlaneseq
    %v643 = vshrl.u32 %v642, 7
    %v644 = vsub.s32 0, %v643
    %v645 = vrot.slane %v81, %v644
    %646 = vmatprep.subr.mxu0 0.0
    %647 = vmatpush1.msra.mxu0 0.0
    %648 = vmatprep.subr.mxu0 0.0
    %649 = vmatpush1.msra.mxu0 0.0
    %650 = vmatprep.subr.mxu0 0.0
    %651 = vmatpush1.msra.mxu0 0.0
    %652 = vmatprep.subr.mxu0 0.0
    %653 = vmatpush1.msra.mxu0 0.0
    %654 = vmatprep.subr.mxu0 0.0
    %655 = vmatpush1.msra.mxu0 0.0
    %656 = vmatprep.subr.mxu0 0.0
    %657 = vmatpush1.msra.mxu0 0.0
    %658 = vmatprep.subr.mxu0 0.0
    %659 = vmatpush1.msra.mxu0 0.0
    %660 = vmatprep.subr.mxu0 0.0
    %661 = vmatpush1.msra.mxu0 0.0
    %662 = vmatprep.subr.mxu0 0.0
    %663 = vmatpush1.msra.mxu0 0.0
    %664 = vmatprep.subr.mxu0 0.0
    %665 = vmatpush1.msra.mxu0 0.0
    %666 = vmatprep.subr.mxu0 0.0
    %667 = vmatpush1.msra.mxu0 0.0
    %668 = vmatprep.subr.mxu0 0.0
    %669 = vmatpush1.msra.mxu0 0.0
    %670 = vmatprep.subr.mxu0 0.0
    %671 = vmatpush1.msra.mxu0 %v80
    %672 = vmatprep.subr.mxu0 0.0
    %673 = vmatpush1.msra.mxu0 %v79
    %674 = vmatprep.subr.mxu0 0.0
    %675 = vmatpush1.msra.mxu0 %v78
    %676 = vmatprep.subr.mxu0 0.0
    %677 = vmatpush1.msra.mxu0 %v77
    %678 = vmatprep.subr.mxu0 0.0
    %679 = vmatpush2.msra.mxu0 0.0
    %680 = vmatprep.subr.mxu0 0.0
    %681 = vmatpush2.msra.mxu0 0.0
    %682 = vmatprep.subr.mxu0 0.0
    %683 = vmatpush2.msra.mxu0 0.0
    %684 = vmatprep.subr.mxu0 0.0
    %685 = vmatpush2.msra.mxu0 0.0
    %686 = vmatprep.subr.mxu0 0.0
    %687 = vmatpush2.msra.mxu0 0.0
    %688 = vmatprep.subr.mxu0 0.0
    %689 = vmatpush2.msra.mxu0 0.0
    %690 = vmatprep.subr.mxu0 0.0
    %691 = vmatpush2.msra.mxu0 0.0
    %692 = vmatprep.subr.mxu0 0.0
    %693 = vmatpush2.msra.mxu0 0.0
    %694 = vmatprep.subr.mxu0 0.0
    %695 = vmatpush2.msra.mxu0 0.0
    %696 = vmatprep.subr.mxu0 0.0
    %697 = vmatpush2.msra.mxu0 0.0
    %698 = vmatprep.subr.mxu0 0.0
    %699 = vmatpush2.msra.mxu0 0.0
    %700 = vmatprep.subr.mxu0 0.0
    %701 = vmatpush2.msra.mxu0 0.0
    %702 = vmatprep.subr.mxu0 0.0
    %703 = vmatpush2.msra.mxu0 0.0
    %704 = vmatprep.subr.mxu0 0.0
    %705 = vmatpush2.msra.mxu0 0.0
    %706 = vmatprep.subr.mxu0 0.0
    %707 = vmatpush2.msra.mxu0 0.0
    %708 = vmatprep.subr.mxu0 0.0
    %709 = vmatpush2.msra.mxu0 0.0
    %710 = vmatprep.mubr.f32.mxu0 0.0
    %711 = vmatmul.mubr.f32.gmra.mxu0 %v457
    %v712 = vpop.f32.mrf.mxu0
    %v713 = vadd.f32 %v645, %v712
    %v714 = vpop.f32.mrf.mxu0
    %715 = vmatprep.mubr.f32.mxu0 0.0
    %716 = vmatmul.mubr.f32.gmra.mxu0 %v460
    %v717 = vpop.f32.mrf.mxu0
    %v718 = vadd.f32 %v645, %v717
    %v719 = vpop.f32.mrf.mxu0
    %720 = vmatprep.mubr.f32.mxu0 0.0
    %721 = vmatmul.mubr.f32.gmra.mxu0 %v463
    %v722 = vpop.f32.mrf.mxu0
    %v723 = vadd.f32 %v645, %v722
    %v724 = vpop.f32.mrf.mxu0
    %725 = vmatprep.mubr.f32.mxu0 0.0
    %726 = vmatmul.mubr.f32.gmra.mxu0 %v466
    %v727 = vpop.f32.mrf.mxu0
    %v728 = vadd.f32 %v645, %v727
    %v729 = vpop.f32.mrf.mxu0
    %730 = vdwg.mxu0
    %v731 = vlaneseq
    %v732 = vshrl.u32 %v731, 7
    %v733 = vsub.s32 0, %v732
    %v734 = vrot.slane %v66, %v733
    %735 = vmatprep.subr.mxu0 0.0
    %736 = vmatpush1.msra.mxu0 0.0
    %737 = vmatprep.subr.mxu0 0.0
    %738 = vmatpush1.msra.mxu0 0.0
    %739 = vmatprep.subr.mxu0 0.0
    %740 = vmatpush1.msra.mxu0 0.0
    %741 = vmatprep.subr.mxu0 0.0
    %742 = vmatpush1.msra.mxu0 0.0
    %743 = vmatprep.subr.mxu0 0.0
    %744 = vmatpush1.msra.mxu0 0.0
    %745 = vmatprep.subr.mxu0 0.0
    %746 = vmatpush1.msra.mxu0 0.0
    %747 = vmatprep.subr.mxu0 0.0
    %748 = vmatpush1.msra.mxu0 0.0
    %749 = vmatprep.subr.mxu0 0.0
    %750 = vmatpush1.msra.mxu0 0.0
    %751 = vmatprep.subr.mxu0 0.0
    %752 = vmatpush1.msra.mxu0 0.0
    %753 = vmatprep.subr.mxu0 0.0
    %754 = vmatpush1.msra.mxu0 0.0
    %755 = vmatprep.subr.mxu0 0.0
    %756 = vmatpush1.msra.mxu0 0.0
    %757 = vmatprep.subr.mxu0 0.0
    %758 = vmatpush1.msra.mxu0 0.0
    %759 = vmatprep.subr.mxu0 0.0
    %760 = vmatpush1.msra.mxu0 %v65
    %761 = vmatprep.subr.mxu0 0.0
    %762 = vmatpush1.msra.mxu0 %v64
    %763 = vmatprep.subr.mxu0 0.0
    %764 = vmatpush1.msra.mxu0 %v63
    %765 = vmatprep.subr.mxu0 0.0
    %766 = vmatpush1.msra.mxu0 %v62
    %767 = vmatprep.subr.mxu0 0.0
    %768 = vmatpush2.msra.mxu0 0.0
    %769 = vmatprep.subr.mxu0 0.0
    %770 = vmatpush2.msra.mxu0 0.0
    %771 = vmatprep.subr.mxu0 0.0
    %772 = vmatpush2.msra.mxu0 0.0
    %773 = vmatprep.subr.mxu0 0.0
    %774 = vmatpush2.msra.mxu0 0.0
    %775 = vmatprep.subr.mxu0 0.0
    %776 = vmatpush2.msra.mxu0 0.0
    %777 = vmatprep.subr.mxu0 0.0
    %778 = vmatpush2.msra.mxu0 0.0
    %779 = vmatprep.subr.mxu0 0.0
    %780 = vmatpush2.msra.mxu0 0.0
    %781 = vmatprep.subr.mxu0 0.0
    %782 = vmatpush2.msra.mxu0 0.0
    %783 = vmatprep.subr.mxu0 0.0
    %784 = vmatpush2.msra.mxu0 0.0
    %785 = vmatprep.subr.mxu0 0.0
    %786 = vmatpush2.msra.mxu0 0.0
    %787 = vmatprep.subr.mxu0 0.0
    %788 = vmatpush2.msra.mxu0 0.0
    %789 = vmatprep.subr.mxu0 0.0
    %790 = vmatpush2.msra.mxu0 0.0
    %791 = vmatprep.subr.mxu0 0.0
    %792 = vmatpush2.msra.mxu0 0.0
    %793 = vmatprep.subr.mxu0 0.0
    %794 = vmatpush2.msra.mxu0 0.0
    %795 = vmatprep.subr.mxu0 0.0
    %796 = vmatpush2.msra.mxu0 0.0
    %797 = vmatprep.subr.mxu0 0.0
    %798 = vmatpush2.msra.mxu0 0.0
    %799 = vmatprep.mubr.f32.mxu0 0.0
    %800 = vmatmul.mubr.f32.gmra.mxu0 %v457
    %v801 = vpop.f32.mrf.mxu0
    %v802 = vadd.f32 %v734, %v801
    %v803 = vpop.f32.mrf.mxu0
    %804 = vmatprep.mubr.f32.mxu0 0.0
    %805 = vmatmul.mubr.f32.gmra.mxu0 %v460
    %v806 = vpop.f32.mrf.mxu0
    %v807 = vadd.f32 %v734, %v806
    %v808 = vpop.f32.mrf.mxu0
    %809 = vmatprep.mubr.f32.mxu0 0.0
    %810 = vmatmul.mubr.f32.gmra.mxu0 %v463
    %v811 = vpop.f32.mrf.mxu0
    %v812 = vadd.f32 %v734, %v811
    %v813 = vpop.f32.mrf.mxu0
    %814 = vmatprep.mubr.f32.mxu0 0.0
    %815 = vmatmul.mubr.f32.gmra.mxu0 %v466
    %v816 = vpop.f32.mrf.mxu0
    %v817 = vadd.f32 %v734, %v816
    %v818 = vpop.f32.mrf.mxu0
    %819 = vdwg.mxu0
    %v820 = vlaneseq
    %v821 = vshrl.u32 %v820, 7
    %v822 = vsub.s32 0, %v821
    %v823 = vrot.slane %v76, %v822
    %824 = vmatprep.subr.mxu0 0.0
    %825 = vmatpush1.msra.mxu0 0.0
    %826 = vmatprep.subr.mxu0 0.0
    %827 = vmatpush1.msra.mxu0 0.0
    %828 = vmatprep.subr.mxu0 0.0
    %829 = vmatpush1.msra.mxu0 0.0
    %830 = vmatprep.subr.mxu0 0.0
    %831 = vmatpush1.msra.mxu0 0.0
    %832 = vmatprep.subr.mxu0 0.0
    %833 = vmatpush1.msra.mxu0 0.0
    %834 = vmatprep.subr.mxu0 0.0
    %835 = vmatpush1.msra.mxu0 0.0
    %836 = vmatprep.subr.mxu0 0.0
    %837 = vmatpush1.msra.mxu0 0.0
    %838 = vmatprep.subr.mxu0 0.0
    %839 = vmatpush1.msra.mxu0 0.0
    %840 = vmatprep.subr.mxu0 0.0
    %841 = vmatpush1.msra.mxu0 0.0
    %842 = vmatprep.subr.mxu0 0.0
    %843 = vmatpush1.msra.mxu0 0.0
    %844 = vmatprep.subr.mxu0 0.0
    %845 = vmatpush1.msra.mxu0 0.0
    %846 = vmatprep.subr.mxu0 0.0
    %847 = vmatpush1.msra.mxu0 0.0
    %848 = vmatprep.subr.mxu0 0.0
    %849 = vmatpush1.msra.mxu0 %v75
    %850 = vmatprep.subr.mxu0 0.0
    %851 = vmatpush1.msra.mxu0 %v74
    %852 = vmatprep.subr.mxu0 0.0
    %853 = vmatpush1.msra.mxu0 %v73
    %854 = vmatprep.subr.mxu0 0.0
    %855 = vmatpush1.msra.mxu0 %v72
    %856 = vmatprep.subr.mxu0 0.0
    %857 = vmatpush2.msra.mxu0 0.0
    %858 = vmatprep.subr.mxu0 0.0
    %859 = vmatpush2.msra.mxu0 0.0
    %860 = vmatprep.subr.mxu0 0.0
    %861 = vmatpush2.msra.mxu0 0.0
    %862 = vmatprep.subr.mxu0 0.0
    %863 = vmatpush2.msra.mxu0 0.0
    %864 = vmatprep.subr.mxu0 0.0
    %865 = vmatpush2.msra.mxu0 0.0
    %866 = vmatprep.subr.mxu0 0.0
    %867 = vmatpush2.msra.mxu0 0.0
    %868 = vmatprep.subr.mxu0 0.0
    %869 = vmatpush2.msra.mxu0 0.0
    %870 = vmatprep.subr.mxu0 0.0
    %871 = vmatpush2.msra.mxu0 0.0
    %872 = vmatprep.subr.mxu0 0.0
    %873 = vmatpush2.msra.mxu0 0.0
    %874 = vmatprep.subr.mxu0 0.0
    %875 = vmatpush2.msra.mxu0 0.0
    %876 = vmatprep.subr.mxu0 0.0
    %877 = vmatpush2.msra.mxu0 0.0
    %878 = vmatprep.subr.mxu0 0.0
    %879 = vmatpush2.msra.mxu0 0.0
    %880 = vmatprep.subr.mxu0 0.0
    %881 = vmatpush2.msra.mxu0 0.0
    %882 = vmatprep.subr.mxu0 0.0
    %883 = vmatpush2.msra.mxu0 0.0
    %884 = vmatprep.subr.mxu0 0.0
    %885 = vmatpush2.msra.mxu0 0.0
    %886 = vmatprep.subr.mxu0 0.0
    %887 = vmatpush2.msra.mxu0 0.0
    %888 = vmatprep.mubr.f32.mxu0 0.0
    %889 = vmatmul.mubr.f32.gmra.mxu0 %v457
    %v890 = vpop.f32.mrf.mxu0
    %v891 = vadd.f32 %v823, %v890
    %v892 = vpop.f32.mrf.mxu0
    %893 = vmatprep.mubr.f32.mxu0 0.0
    %894 = vmatmul.mubr.f32.gmra.mxu0 %v460
    %v895 = vpop.f32.mrf.mxu0
    %v896 = vadd.f32 %v823, %v895
    %v897 = vpop.f32.mrf.mxu0
    %898 = vmatprep.mubr.f32.mxu0 0.0
    %899 = vmatmul.mubr.f32.gmra.mxu0 %v463
    %v900 = vpop.f32.mrf.mxu0
    %v901 = vadd.f32 %v823, %v900
    %v902 = vpop.f32.mrf.mxu0
    %903 = vmatprep.mubr.f32.mxu0 0.0
    %904 = vmatmul.mubr.f32.gmra.mxu0 %v466
    %v905 = vpop.f32.mrf.mxu0
    %v906 = vadd.f32 %v823, %v905
    %v907 = vpop.f32.mrf.mxu0
    %908 = vdwg.mxu0
    %v909 = vlaneseq
    %v910 = vshrl.u32 %v909, 7
    %v911 = vsub.s32 0, %v910
    %v912 = vrot.slane %v86, %v911
    %913 = vmatprep.subr.mxu0 0.0
    %914 = vmatpush1.msra.mxu0 0.0
    %915 = vmatprep.subr.mxu0 0.0
    %916 = vmatpush1.msra.mxu0 0.0
    %917 = vmatprep.subr.mxu0 0.0
    %918 = vmatpush1.msra.mxu0 0.0
    %919 = vmatprep.subr.mxu0 0.0
    %920 = vmatpush1.msra.mxu0 0.0
    %921 = vmatprep.subr.mxu0 0.0
    %922 = vmatpush1.msra.mxu0 0.0
    %923 = vmatprep.subr.mxu0 0.0
    %924 = vmatpush1.msra.mxu0 0.0
    %925 = vmatprep.subr.mxu0 0.0
    %926 = vmatpush1.msra.mxu0 0.0
    %927 = vmatprep.subr.mxu0 0.0
    %928 = vmatpush1.msra.mxu0 0.0
    %929 = vmatprep.subr.mxu0 0.0
    %930 = vmatpush1.msra.mxu0 0.0
    %931 = vmatprep.subr.mxu0 0.0
    %932 = vmatpush1.msra.mxu0 0.0
    %933 = vmatprep.subr.mxu0 0.0
    %934 = vmatpush1.msra.mxu0 0.0
    %935 = vmatprep.subr.mxu0 0.0
    %936 = vmatpush1.msra.mxu0 0.0
    %937 = vmatprep.subr.mxu0 0.0
    %938 = vmatpush1.msra.mxu0 %v85
    %939 = vmatprep.subr.mxu0 0.0
    %940 = vmatpush1.msra.mxu0 %v84
    %941 = vmatprep.subr.mxu0 0.0
    %942 = vmatpush1.msra.mxu0 %v83
    %943 = vmatprep.subr.mxu0 0.0
    %944 = vmatpush1.msra.mxu0 %v82
    %945 = vmatprep.subr.mxu0 0.0
    %946 = vmatpush2.msra.mxu0 0.0
    %947 = vmatprep.subr.mxu0 0.0
    %948 = vmatpush2.msra.mxu0 0.0
    %949 = vmatprep.subr.mxu0 0.0
    %950 = vmatpush2.msra.mxu0 0.0
    %951 = vmatprep.subr.mxu0 0.0
    %952 = vmatpush2.msra.mxu0 0.0
    %953 = vmatprep.subr.mxu0 0.0
    %954 = vmatpush2.msra.mxu0 0.0
    %955 = vmatprep.subr.mxu0 0.0
    %956 = vmatpush2.msra.mxu0 0.0
    %957 = vmatprep.subr.mxu0 0.0
    %958 = vmatpush2.msra.mxu0 0.0
    %959 = vmatprep.subr.mxu0 0.0
    %960 = vmatpush2.msra.mxu0 0.0
    %961 = vmatprep.subr.mxu0 0.0
    %962 = vmatpush2.msra.mxu0 0.0
    %963 = vmatprep.subr.mxu0 0.0
    %964 = vmatpush2.msra.mxu0 0.0
    %965 = vmatprep.subr.mxu0 0.0
    %966 = vmatpush2.msra.mxu0 0.0
    %967 = vmatprep.subr.mxu0 0.0
    %968 = vmatpush2.msra.mxu0 0.0
    %969 = vmatprep.subr.mxu0 0.0
    %970 = vmatpush2.msra.mxu0 0.0
    %971 = vmatprep.subr.mxu0 0.0
    %972 = vmatpush2.msra.mxu0 0.0
    %973 = vmatprep.subr.mxu0 0.0
    %974 = vmatpush2.msra.mxu0 0.0
    %975 = vmatprep.subr.mxu0 0.0
    %976 = vmatpush2.msra.mxu0 0.0
    %977 = vmatprep.mubr.f32.mxu0 0.0
    %978 = vmatmul.mubr.f32.gmra.mxu0 %v457
    %v979 = vpop.f32.mrf.mxu0
    %v980 = vadd.f32 %v912, %v979
    %v981 = vpop.f32.mrf.mxu0
    %982 = vmatprep.mubr.f32.mxu0 0.0
    %983 = vmatmul.mubr.f32.gmra.mxu0 %v460
    %v984 = vpop.f32.mrf.mxu0
    %v985 = vadd.f32 %v912, %v984
    %v986 = vpop.f32.mrf.mxu0
    %987 = vmatprep.mubr.f32.mxu0 0.0
    %988 = vmatmul.mubr.f32.gmra.mxu0 %v463
    %v989 = vpop.f32.mrf.mxu0
    %v990 = vadd.f32 %v912, %v989
    %v991 = vpop.f32.mrf.mxu0
    %992 = vmatprep.mubr.f32.mxu0 0.0
    %993 = vmatmul.mubr.f32.gmra.mxu0 %v466
    %v994 = vpop.f32.mrf.mxu0
    %v995 = vadd.f32 %v912, %v994
    %v996 = vpop.f32.mrf.mxu0
    %997 = vdwg.mxu0
    %v998 = vsub.f32 %v45, 1.0
    %v999 = vsub.f32 %v46, 1.0
    %v1000 = vmul.f32 %v998, 1e+09
    %v1001 = vmul.f32 %v999, 1e+09
    %v1003 = vsel %vm135, %v535, 0
    %v1006 = vsel %vm135, %v540, 0
    %v1009 = vsel %vm135, %v624, 0
    %v1012 = vsel %vm135, %v629, 0
    %1014 = vmatprep.subr.mxu0 0.0
    %1015 = vmatpush1.xpose.msra.mxu0 0.0
    %1016 = vmatprep.subr.mxu0 0.0
    %1017 = vmatpush1.xpose.msra.mxu0 0.0
    %1018 = vmatprep.subr.mxu0 0.0
    %1019 = vmatpush1.xpose.msra.mxu0 0.0
    %1020 = vmatprep.subr.mxu0 0.0
    %1021 = vmatpush1.xpose.msra.mxu0 0.0
    %1022 = vmatprep.subr.mxu0 0.0
    %1023 = vmatpush1.xpose.msra.mxu0 0.0
    %1024 = vmatprep.subr.mxu0 0.0
    %1025 = vmatpush1.xpose.msra.mxu0 0.0
    %1026 = vmatprep.subr.mxu0 0.0
    %1027 = vmatpush1.xpose.msra.mxu0 0.0
    %1028 = vmatprep.subr.mxu0 0.0
    %1029 = vmatpush1.xpose.msra.mxu0 0.0
    %1030 = vmatprep.subr.mxu0 0.0
    %1031 = vmatpush1.xpose.msra.mxu0 0.0
    %1032 = vmatprep.subr.mxu0 0.0
    %1033 = vmatpush1.xpose.msra.mxu0 0.0
    %1034 = vmatprep.subr.mxu0 0.0
    %1035 = vmatpush1.xpose.msra.mxu0 0.0
    %1036 = vmatprep.subr.mxu0 0.0
    %1037 = vmatpush1.xpose.msra.mxu0 0.0
    %1038 = vmatprep.subr.mxu0 0.0
    %1039 = vmatpush1.xpose.msra.mxu0 0.0
    %1040 = vmatprep.subr.mxu0 0.0
    %1041 = vmatpush1.xpose.msra.mxu0 0.0
    %1042 = vmatprep.subr.mxu0 0.0
    %1043 = vmatpush1.xpose.msra.mxu0 %v1012
    %1044 = vmatprep.subr.mxu0 0.0
    %1045 = vmatpush1.xpose.msra.mxu0 %v1009
    %1046 = vmatprep.subr.mxu0 0.0
    %1047 = vmatpush2.xpose.msra.mxu0 0.0
    %1048 = vmatprep.subr.mxu0 0.0
    %1049 = vmatpush2.xpose.msra.mxu0 0.0
    %1050 = vmatprep.subr.mxu0 0.0
    %1051 = vmatpush2.xpose.msra.mxu0 0.0
    %1052 = vmatprep.subr.mxu0 0.0
    %1053 = vmatpush2.xpose.msra.mxu0 0.0
    %1054 = vmatprep.subr.mxu0 0.0
    %1055 = vmatpush2.xpose.msra.mxu0 0.0
    %1056 = vmatprep.subr.mxu0 0.0
    %1057 = vmatpush2.xpose.msra.mxu0 0.0
    %1058 = vmatprep.subr.mxu0 0.0
    %1059 = vmatpush2.xpose.msra.mxu0 0.0
    %1060 = vmatprep.subr.mxu0 0.0
    %1061 = vmatpush2.xpose.msra.mxu0 0.0
    %1062 = vmatprep.subr.mxu0 0.0
    %1063 = vmatpush2.xpose.msra.mxu0 0.0
    %1064 = vmatprep.subr.mxu0 0.0
    %1065 = vmatpush2.xpose.msra.mxu0 0.0
    %1066 = vmatprep.subr.mxu0 0.0
    %1067 = vmatpush2.xpose.msra.mxu0 0.0
    %1068 = vmatprep.subr.mxu0 0.0
    %1069 = vmatpush2.xpose.msra.mxu0 0.0
    %1070 = vmatprep.subr.mxu0 0.0
    %1071 = vmatpush2.xpose.msra.mxu0 0.0
    %1072 = vmatprep.subr.mxu0 0.0
    %1073 = vmatpush2.xpose.msra.mxu0 0.0
    %1074 = vmatprep.subr.mxu0 0.0
    %1075 = vmatpush2.xpose.msra.mxu0 0.0
    %1076 = vmatprep.subr.mxu0 0.0
    %1077 = vmatpush2.xpose.msra.mxu0 0.0
    %1078 = vmatprep.mubr.f32.mxu0 0.0
    %1079 = vmatmul.mubr.f32.gmra.mxu0 %v1003
    %v1080 = vpop.f32.mrf.mxu0
    %v1081 = vadd.f32 %v1000, %v1080
    %v1082 = vpop.f32.mrf.mxu0
    %1083 = vmatprep.mubr.f32.mxu0 0.0
    %1084 = vmatmul.mubr.f32.gmra.mxu0 %v1006
    %v1085 = vpop.f32.mrf.mxu0
    %v1086 = vadd.f32 %v1001, %v1085
    %v1087 = vpop.f32.mrf.mxu0
    %1088 = vdwg.mxu0
    %v1089 = vsel %vm135, %v1081, -inf
    %1090 = vmax.xlane.f32.xlu0 %v1089
    %v1091 = vpop.xlane.xlu0 %1090
    %v1092 = vsel %vm135, %v1086, -inf
    %1093 = vmax.xlane.f32.xlu0 %v1092
    %v1094 = vpop.xlane.xlu0 %1093
    %v1095 = vsub.f32 %v1081, %v1091
    %v1096 = vsub.f32 %v1086, %v1094
    %v1097 = vmul.f32 %v1095, 1.442695
    %v1098 = vpow.pop %v1097
    %v1099 = vmul.f32 %v1096, 1.442695
    %v1100 = vpow.pop %v1099
    %v1101 = vsel %vm135, %v1098, 0.0
    %1102 = vadd.xlane.f32.xlu0 %v1101
    %v1103 = vpop.xlane.xlu0 %1102
    %v1104 = vsel %vm135, %v1100, 0.0
    %1105 = vadd.xlane.f32.xlu0 %v1104
    %v1106 = vpop.xlane.xlu0 %1105
    %v1107 = vrcp.pop %v1103
    %v1108 = vrcp.pop %v1106
    %v1109 = vmul.f32 %v1098, %v1107
    %v1110 = vmul.f32 %v1100, %v1108
    %v1112 = vsel %vm135, %v1109, 0
    %v1115 = vsel %vm135, %v1110, 0
    %1117 = vmatprep.subr.mxu0 0.0
    %1118 = vmatpush1.msra.mxu0 0.0
    %1119 = vmatprep.subr.mxu0 0.0
    %1120 = vmatpush1.msra.mxu0 0.0
    %1121 = vmatprep.subr.mxu0 0.0
    %1122 = vmatpush1.msra.mxu0 0.0
    %1123 = vmatprep.subr.mxu0 0.0
    %1124 = vmatpush1.msra.mxu0 0.0
    %1125 = vmatprep.subr.mxu0 0.0
    %1126 = vmatpush1.msra.mxu0 0.0
    %1127 = vmatprep.subr.mxu0 0.0
    %1128 = vmatpush1.msra.mxu0 0.0
    %1129 = vmatprep.subr.mxu0 0.0
    %1130 = vmatpush1.msra.mxu0 0.0
    %1131 = vmatprep.subr.mxu0 0.0
    %1132 = vmatpush1.msra.mxu0 0.0
    %1133 = vmatprep.subr.mxu0 0.0
    %1134 = vmatpush1.msra.mxu0 0.0
    %1135 = vmatprep.subr.mxu0 0.0
    %1136 = vmatpush1.msra.mxu0 0.0
    %1137 = vmatprep.subr.mxu0 0.0
    %1138 = vmatpush1.msra.mxu0 0.0
    %1139 = vmatprep.subr.mxu0 0.0
    %1140 = vmatpush1.msra.mxu0 0.0
    %1141 = vmatprep.subr.mxu0 0.0
    %1142 = vmatpush1.msra.mxu0 0.0
    %1143 = vmatprep.subr.mxu0 0.0
    %1144 = vmatpush1.msra.mxu0 0.0
    %1145 = vmatprep.subr.mxu0 0.0
    %1146 = vmatpush1.msra.mxu0 %v718
    %1147 = vmatprep.subr.mxu0 0.0
    %1148 = vmatpush1.msra.mxu0 %v713
    %1149 = vmatprep.subr.mxu0 0.0
    %1150 = vmatpush2.msra.mxu0 0.0
    %1151 = vmatprep.subr.mxu0 0.0
    %1152 = vmatpush2.msra.mxu0 0.0
    %1153 = vmatprep.subr.mxu0 0.0
    %1154 = vmatpush2.msra.mxu0 0.0
    %1155 = vmatprep.subr.mxu0 0.0
    %1156 = vmatpush2.msra.mxu0 0.0
    %1157 = vmatprep.subr.mxu0 0.0
    %1158 = vmatpush2.msra.mxu0 0.0
    %1159 = vmatprep.subr.mxu0 0.0
    %1160 = vmatpush2.msra.mxu0 0.0
    %1161 = vmatprep.subr.mxu0 0.0
    %1162 = vmatpush2.msra.mxu0 0.0
    %1163 = vmatprep.subr.mxu0 0.0
    %1164 = vmatpush2.msra.mxu0 0.0
    %1165 = vmatprep.subr.mxu0 0.0
    %1166 = vmatpush2.msra.mxu0 0.0
    %1167 = vmatprep.subr.mxu0 0.0
    %1168 = vmatpush2.msra.mxu0 0.0
    %1169 = vmatprep.subr.mxu0 0.0
    %1170 = vmatpush2.msra.mxu0 0.0
    %1171 = vmatprep.subr.mxu0 0.0
    %1172 = vmatpush2.msra.mxu0 0.0
    %1173 = vmatprep.subr.mxu0 0.0
    %1174 = vmatpush2.msra.mxu0 0.0
    %1175 = vmatprep.subr.mxu0 0.0
    %1176 = vmatpush2.msra.mxu0 0.0
    %1177 = vmatprep.subr.mxu0 0.0
    %1178 = vmatpush2.msra.mxu0 0.0
    %1179 = vmatprep.subr.mxu0 0.0
    %1180 = vmatpush2.msra.mxu0 0.0
    %1181 = vmatprep.mubr.f32.mxu0 0.0
    %1182 = vmatmul.mubr.f32.gmra.mxu0 %v1112
    %v1183 = vpop.f32.mrf.mxu0
    %v1184 = vadd.f32 0.0, %v1183
    %v1185 = vpop.f32.mrf.mxu0
    %1186 = vmatprep.mubr.f32.mxu0 0.0
    %1187 = vmatmul.mubr.f32.gmra.mxu0 %v1115
    %v1188 = vpop.f32.mrf.mxu0
    %v1189 = vadd.f32 0.0, %v1188
    %v1190 = vpop.f32.mrf.mxu0
    %1191 = vdwg.mxu0
    %v1193 = vsel %vm135, %v802, 0
    %v1196 = vsel %vm135, %v807, 0
    %v1199 = vsel %vm135, %v891, 0
    %v1202 = vsel %vm135, %v896, 0
    %1204 = vmatprep.subr.mxu0 0.0
    %1205 = vmatpush1.xpose.msra.mxu0 0.0
    %1206 = vmatprep.subr.mxu0 0.0
    %1207 = vmatpush1.xpose.msra.mxu0 0.0
    %1208 = vmatprep.subr.mxu0 0.0
    %1209 = vmatpush1.xpose.msra.mxu0 0.0
    %1210 = vmatprep.subr.mxu0 0.0
    %1211 = vmatpush1.xpose.msra.mxu0 0.0
    %1212 = vmatprep.subr.mxu0 0.0
    %1213 = vmatpush1.xpose.msra.mxu0 0.0
    %1214 = vmatprep.subr.mxu0 0.0
    %1215 = vmatpush1.xpose.msra.mxu0 0.0
    %1216 = vmatprep.subr.mxu0 0.0
    %1217 = vmatpush1.xpose.msra.mxu0 0.0
    %1218 = vmatprep.subr.mxu0 0.0
    %1219 = vmatpush1.xpose.msra.mxu0 0.0
    %1220 = vmatprep.subr.mxu0 0.0
    %1221 = vmatpush1.xpose.msra.mxu0 0.0
    %1222 = vmatprep.subr.mxu0 0.0
    %1223 = vmatpush1.xpose.msra.mxu0 0.0
    %1224 = vmatprep.subr.mxu0 0.0
    %1225 = vmatpush1.xpose.msra.mxu0 0.0
    %1226 = vmatprep.subr.mxu0 0.0
    %1227 = vmatpush1.xpose.msra.mxu0 0.0
    %1228 = vmatprep.subr.mxu0 0.0
    %1229 = vmatpush1.xpose.msra.mxu0 0.0
    %1230 = vmatprep.subr.mxu0 0.0
    %1231 = vmatpush1.xpose.msra.mxu0 0.0
    %1232 = vmatprep.subr.mxu0 0.0
    %1233 = vmatpush1.xpose.msra.mxu0 %v1202
    %1234 = vmatprep.subr.mxu0 0.0
    %1235 = vmatpush1.xpose.msra.mxu0 %v1199
    %1236 = vmatprep.subr.mxu0 0.0
    %1237 = vmatpush2.xpose.msra.mxu0 0.0
    %1238 = vmatprep.subr.mxu0 0.0
    %1239 = vmatpush2.xpose.msra.mxu0 0.0
    %1240 = vmatprep.subr.mxu0 0.0
    %1241 = vmatpush2.xpose.msra.mxu0 0.0
    %1242 = vmatprep.subr.mxu0 0.0
    %1243 = vmatpush2.xpose.msra.mxu0 0.0
    %1244 = vmatprep.subr.mxu0 0.0
    %1245 = vmatpush2.xpose.msra.mxu0 0.0
    %1246 = vmatprep.subr.mxu0 0.0
    %1247 = vmatpush2.xpose.msra.mxu0 0.0
    %1248 = vmatprep.subr.mxu0 0.0
    %1249 = vmatpush2.xpose.msra.mxu0 0.0
    %1250 = vmatprep.subr.mxu0 0.0
    %1251 = vmatpush2.xpose.msra.mxu0 0.0
    %1252 = vmatprep.subr.mxu0 0.0
    %1253 = vmatpush2.xpose.msra.mxu0 0.0
    %1254 = vmatprep.subr.mxu0 0.0
    %1255 = vmatpush2.xpose.msra.mxu0 0.0
    %1256 = vmatprep.subr.mxu0 0.0
    %1257 = vmatpush2.xpose.msra.mxu0 0.0
    %1258 = vmatprep.subr.mxu0 0.0
    %1259 = vmatpush2.xpose.msra.mxu0 0.0
    %1260 = vmatprep.subr.mxu0 0.0
    %1261 = vmatpush2.xpose.msra.mxu0 0.0
    %1262 = vmatprep.subr.mxu0 0.0
    %1263 = vmatpush2.xpose.msra.mxu0 0.0
    %1264 = vmatprep.subr.mxu0 0.0
    %1265 = vmatpush2.xpose.msra.mxu0 0.0
    %1266 = vmatprep.subr.mxu0 0.0
    %1267 = vmatpush2.xpose.msra.mxu0 0.0
    %1268 = vmatprep.mubr.f32.mxu0 0.0
    %1269 = vmatmul.mubr.f32.gmra.mxu0 %v1193
    %v1270 = vpop.f32.mrf.mxu0
    %v1271 = vadd.f32 %v1000, %v1270
    %v1272 = vpop.f32.mrf.mxu0
    %1273 = vmatprep.mubr.f32.mxu0 0.0
    %1274 = vmatmul.mubr.f32.gmra.mxu0 %v1196
    %v1275 = vpop.f32.mrf.mxu0
    %v1276 = vadd.f32 %v1001, %v1275
    %v1277 = vpop.f32.mrf.mxu0
    %1278 = vdwg.mxu0
    %v1279 = vsel %vm135, %v1271, -inf
    %1280 = vmax.xlane.f32.xlu0 %v1279
    %v1281 = vpop.xlane.xlu0 %1280
    %v1282 = vsel %vm135, %v1276, -inf
    %1283 = vmax.xlane.f32.xlu0 %v1282
    %v1284 = vpop.xlane.xlu0 %1283
    %v1285 = vsub.f32 %v1271, %v1281
    %v1286 = vsub.f32 %v1276, %v1284
    %v1287 = vmul.f32 %v1285, 1.442695
    %v1288 = vpow.pop %v1287
    %v1289 = vmul.f32 %v1286, 1.442695
    %v1290 = vpow.pop %v1289
    %v1291 = vsel %vm135, %v1288, 0.0
    %1292 = vadd.xlane.f32.xlu0 %v1291
    %v1293 = vpop.xlane.xlu0 %1292
    %v1294 = vsel %vm135, %v1290, 0.0
    %1295 = vadd.xlane.f32.xlu0 %v1294
    %v1296 = vpop.xlane.xlu0 %1295
    %v1297 = vrcp.pop %v1293
    %v1298 = vrcp.pop %v1296
    %v1299 = vmul.f32 %v1288, %v1297
    %v1300 = vmul.f32 %v1290, %v1298
    %v1302 = vsel %vm135, %v1299, 0
    %v1305 = vsel %vm135, %v1300, 0
    %1307 = vmatprep.subr.mxu0 0.0
    %1308 = vmatpush1.msra.mxu0 0.0
    %1309 = vmatprep.subr.mxu0 0.0
    %1310 = vmatpush1.msra.mxu0 0.0
    %1311 = vmatprep.subr.mxu0 0.0
    %1312 = vmatpush1.msra.mxu0 0.0
    %1313 = vmatprep.subr.mxu0 0.0
    %1314 = vmatpush1.msra.mxu0 0.0
    %1315 = vmatprep.subr.mxu0 0.0
    %1316 = vmatpush1.msra.mxu0 0.0
    %1317 = vmatprep.subr.mxu0 0.0
    %1318 = vmatpush1.msra.mxu0 0.0
    %1319 = vmatprep.subr.mxu0 0.0
    %1320 = vmatpush1.msra.mxu0 0.0
    %1321 = vmatprep.subr.mxu0 0.0
    %1322 = vmatpush1.msra.mxu0 0.0
    %1323 = vmatprep.subr.mxu0 0.0
    %1324 = vmatpush1.msra.mxu0 0.0
    %1325 = vmatprep.subr.mxu0 0.0
    %1326 = vmatpush1.msra.mxu0 0.0
    %1327 = vmatprep.subr.mxu0 0.0
    %1328 = vmatpush1.msra.mxu0 0.0
    %1329 = vmatprep.subr.mxu0 0.0
    %1330 = vmatpush1.msra.mxu0 0.0
    %1331 = vmatprep.subr.mxu0 0.0
    %1332 = vmatpush1.msra.mxu0 0.0
    %1333 = vmatprep.subr.mxu0 0.0
    %1334 = vmatpush1.msra.mxu0 0.0
    %1335 = vmatprep.subr.mxu0 0.0
    %1336 = vmatpush1.msra.mxu0 %v985
    %1337 = vmatprep.subr.mxu0 0.0
    %1338 = vmatpush1.msra.mxu0 %v980
    %1339 = vmatprep.subr.mxu0 0.0
    %1340 = vmatpush2.msra.mxu0 0.0
    %1341 = vmatprep.subr.mxu0 0.0
    %1342 = vmatpush2.msra.mxu0 0.0
    %1343 = vmatprep.subr.mxu0 0.0
    %1344 = vmatpush2.msra.mxu0 0.0
    %1345 = vmatprep.subr.mxu0 0.0
    %1346 = vmatpush2.msra.mxu0 0.0
    %1347 = vmatprep.subr.mxu0 0.0
    %1348 = vmatpush2.msra.mxu0 0.0
    %1349 = vmatprep.subr.mxu0 0.0
    %1350 = vmatpush2.msra.mxu0 0.0
    %1351 = vmatprep.subr.mxu0 0.0
    %1352 = vmatpush2.msra.mxu0 0.0
    %1353 = vmatprep.subr.mxu0 0.0
    %1354 = vmatpush2.msra.mxu0 0.0
    %1355 = vmatprep.subr.mxu0 0.0
    %1356 = vmatpush2.msra.mxu0 0.0
    %1357 = vmatprep.subr.mxu0 0.0
    %1358 = vmatpush2.msra.mxu0 0.0
    %1359 = vmatprep.subr.mxu0 0.0
    %1360 = vmatpush2.msra.mxu0 0.0
    %1361 = vmatprep.subr.mxu0 0.0
    %1362 = vmatpush2.msra.mxu0 0.0
    %1363 = vmatprep.subr.mxu0 0.0
    %1364 = vmatpush2.msra.mxu0 0.0
    %1365 = vmatprep.subr.mxu0 0.0
    %1366 = vmatpush2.msra.mxu0 0.0
    %1367 = vmatprep.subr.mxu0 0.0
    %1368 = vmatpush2.msra.mxu0 0.0
    %1369 = vmatprep.subr.mxu0 0.0
    %1370 = vmatpush2.msra.mxu0 0.0
    %1371 = vmatprep.mubr.f32.mxu0 0.0
    %1372 = vmatmul.mubr.f32.gmra.mxu0 %v1302
    %v1373 = vpop.f32.mrf.mxu0
    %v1374 = vadd.f32 0.0, %v1373
    %v1375 = vpop.f32.mrf.mxu0
    %1376 = vmatprep.mubr.f32.mxu0 0.0
    %1377 = vmatmul.mubr.f32.gmra.mxu0 %v1305
    %v1378 = vpop.f32.mrf.mxu0
    %v1379 = vadd.f32 0.0, %v1378
    %v1380 = vpop.f32.mrf.mxu0
    %1381 = vdwg.mxu0
    %v1383 = vsel %vm135, %v1374, 0
    %v1386 = vsel %vm135, %v1379, 0
    %v1389 = vsel %vm135, %v91, 0
    %v1392 = vsel %vm135, %v92, 0
    %v1395 = vsel %vm135, %v93, 0
    %v1398 = vsel %vm135, %v94, 0
    %1400 = vmatprep.subr.mxu0 0.0
    %1401 = vmatpush1.xpose.msra.mxu0 0.0
    %1402 = vmatprep.subr.mxu0 0.0
    %1403 = vmatpush1.xpose.msra.mxu0 0.0
    %1404 = vmatprep.subr.mxu0 0.0
    %1405 = vmatpush1.xpose.msra.mxu0 0.0
    %1406 = vmatprep.subr.mxu0 0.0
    %1407 = vmatpush1.xpose.msra.mxu0 0.0
    %1408 = vmatprep.subr.mxu0 0.0
    %1409 = vmatpush1.xpose.msra.mxu0 0.0
    %1410 = vmatprep.subr.mxu0 0.0
    %1411 = vmatpush1.xpose.msra.mxu0 0.0
    %1412 = vmatprep.subr.mxu0 0.0
    %1413 = vmatpush1.xpose.msra.mxu0 0.0
    %1414 = vmatprep.subr.mxu0 0.0
    %1415 = vmatpush1.xpose.msra.mxu0 0.0
    %1416 = vmatprep.subr.mxu0 0.0
    %1417 = vmatpush1.xpose.msra.mxu0 0.0
    %1418 = vmatprep.subr.mxu0 0.0
    %1419 = vmatpush1.xpose.msra.mxu0 0.0
    %1420 = vmatprep.subr.mxu0 0.0
    %1421 = vmatpush1.xpose.msra.mxu0 0.0
    %1422 = vmatprep.subr.mxu0 0.0
    %1423 = vmatpush1.xpose.msra.mxu0 0.0
    %1424 = vmatprep.subr.mxu0 0.0
    %1425 = vmatpush1.xpose.msra.mxu0 %v1398
    %1426 = vmatprep.subr.mxu0 0.0
    %1427 = vmatpush1.xpose.msra.mxu0 %v1395
    %1428 = vmatprep.subr.mxu0 0.0
    %1429 = vmatpush1.xpose.msra.mxu0 %v1392
    %1430 = vmatprep.subr.mxu0 0.0
    %1431 = vmatpush1.xpose.msra.mxu0 %v1389
    %1432 = vmatprep.subr.mxu0 0.0
    %1433 = vmatpush2.xpose.msra.mxu0 0.0
    %1434 = vmatprep.subr.mxu0 0.0
    %1435 = vmatpush2.xpose.msra.mxu0 0.0
    %1436 = vmatprep.subr.mxu0 0.0
    %1437 = vmatpush2.xpose.msra.mxu0 0.0
    %1438 = vmatprep.subr.mxu0 0.0
    %1439 = vmatpush2.xpose.msra.mxu0 0.0
    %1440 = vmatprep.subr.mxu0 0.0
    %1441 = vmatpush2.xpose.msra.mxu0 0.0
    %1442 = vmatprep.subr.mxu0 0.0
    %1443 = vmatpush2.xpose.msra.mxu0 0.0
    %1444 = vmatprep.subr.mxu0 0.0
    %1445 = vmatpush2.xpose.msra.mxu0 0.0
    %1446 = vmatprep.subr.mxu0 0.0
    %1447 = vmatpush2.xpose.msra.mxu0 0.0
    %1448 = vmatprep.subr.mxu0 0.0
    %1449 = vmatpush2.xpose.msra.mxu0 0.0
    %1450 = vmatprep.subr.mxu0 0.0
    %1451 = vmatpush2.xpose.msra.mxu0 0.0
    %1452 = vmatprep.subr.mxu0 0.0
    %1453 = vmatpush2.xpose.msra.mxu0 0.0
    %1454 = vmatprep.subr.mxu0 0.0
    %1455 = vmatpush2.xpose.msra.mxu0 0.0
    %1456 = vmatprep.subr.mxu0 0.0
    %1457 = vmatpush2.xpose.msra.mxu0 0.0
    %1458 = vmatprep.subr.mxu0 0.0
    %1459 = vmatpush2.xpose.msra.mxu0 0.0
    %1460 = vmatprep.subr.mxu0 0.0
    %1461 = vmatpush2.xpose.msra.mxu0 0.0
    %1462 = vmatprep.subr.mxu0 0.0
    %1463 = vmatpush2.xpose.msra.mxu0 0.0
    %1464 = vmatprep.mubr.f32.mxu0 0.0
    %1465 = vmatmul.mubr.f32.gmra.mxu0 %v1383
    %v1466 = vpop.f32.mrf.mxu0
    %v1467 = vadd.f32 0.0, %v1466
    %v1468 = vpop.f32.mrf.mxu0
    %1469 = vmatprep.mubr.f32.mxu0 0.0
    %1470 = vmatmul.mubr.f32.gmra.mxu0 %v1386
    %v1471 = vpop.f32.mrf.mxu0
    %v1472 = vadd.f32 0.0, %v1471
    %v1473 = vpop.f32.mrf.mxu0
    %1474 = vdwg.mxu0
    %v1476 = vsel %vm135, %v1184, 0
    %v1479 = vsel %vm135, %v1189, 0
    %v1482 = vsel %vm135, %v87, 0
    %v1485 = vsel %vm135, %v88, 0
    %v1488 = vsel %vm135, %v89, 0
    %v1491 = vsel %vm135, %v90, 0
    %1493 = vmatprep.subr.mxu0 0.0
    %1494 = vmatpush1.xpose.msra.mxu0 0.0
    %1495 = vmatprep.subr.mxu0 0.0
    %1496 = vmatpush1.xpose.msra.mxu0 0.0
    %1497 = vmatprep.subr.mxu0 0.0
    %1498 = vmatpush1.xpose.msra.mxu0 0.0
    %1499 = vmatprep.subr.mxu0 0.0
    %1500 = vmatpush1.xpose.msra.mxu0 0.0
    %1501 = vmatprep.subr.mxu0 0.0
    %1502 = vmatpush1.xpose.msra.mxu0 0.0
    %1503 = vmatprep.subr.mxu0 0.0
    %1504 = vmatpush1.xpose.msra.mxu0 0.0
    %1505 = vmatprep.subr.mxu0 0.0
    %1506 = vmatpush1.xpose.msra.mxu0 0.0
    %1507 = vmatprep.subr.mxu0 0.0
    %1508 = vmatpush1.xpose.msra.mxu0 0.0
    %1509 = vmatprep.subr.mxu0 0.0
    %1510 = vmatpush1.xpose.msra.mxu0 0.0
    %1511 = vmatprep.subr.mxu0 0.0
    %1512 = vmatpush1.xpose.msra.mxu0 0.0
    %1513 = vmatprep.subr.mxu0 0.0
    %1514 = vmatpush1.xpose.msra.mxu0 0.0
    %1515 = vmatprep.subr.mxu0 0.0
    %1516 = vmatpush1.xpose.msra.mxu0 0.0
    %1517 = vmatprep.subr.mxu0 0.0
    %1518 = vmatpush1.xpose.msra.mxu0 %v1491
    %1519 = vmatprep.subr.mxu0 0.0
    %1520 = vmatpush1.xpose.msra.mxu0 %v1488
    %1521 = vmatprep.subr.mxu0 0.0
    %1522 = vmatpush1.xpose.msra.mxu0 %v1485
    %1523 = vmatprep.subr.mxu0 0.0
    %1524 = vmatpush1.xpose.msra.mxu0 %v1482
    %1525 = vmatprep.subr.mxu0 0.0
    %1526 = vmatpush2.xpose.msra.mxu0 0.0
    %1527 = vmatprep.subr.mxu0 0.0
    %1528 = vmatpush2.xpose.msra.mxu0 0.0
    %1529 = vmatprep.subr.mxu0 0.0
    %1530 = vmatpush2.xpose.msra.mxu0 0.0
    %1531 = vmatprep.subr.mxu0 0.0
    %1532 = vmatpush2.xpose.msra.mxu0 0.0
    %1533 = vmatprep.subr.mxu0 0.0
    %1534 = vmatpush2.xpose.msra.mxu0 0.0
    %1535 = vmatprep.subr.mxu0 0.0
    %1536 = vmatpush2.xpose.msra.mxu0 0.0
    %1537 = vmatprep.subr.mxu0 0.0
    %1538 = vmatpush2.xpose.msra.mxu0 0.0
    %1539 = vmatprep.subr.mxu0 0.0
    %1540 = vmatpush2.xpose.msra.mxu0 0.0
    %1541 = vmatprep.subr.mxu0 0.0
    %1542 = vmatpush2.xpose.msra.mxu0 0.0
    %1543 = vmatprep.subr.mxu0 0.0
    %1544 = vmatpush2.xpose.msra.mxu0 0.0
    %1545 = vmatprep.subr.mxu0 0.0
    %1546 = vmatpush2.xpose.msra.mxu0 0.0
    %1547 = vmatprep.subr.mxu0 0.0
    %1548 = vmatpush2.xpose.msra.mxu0 0.0
    %1549 = vmatprep.subr.mxu0 0.0
    %1550 = vmatpush2.xpose.msra.mxu0 0.0
    %1551 = vmatprep.subr.mxu0 0.0
    %1552 = vmatpush2.xpose.msra.mxu0 0.0
    %1553 = vmatprep.subr.mxu0 0.0
    %1554 = vmatpush2.xpose.msra.mxu0 0.0
    %1555 = vmatprep.subr.mxu0 0.0
    %1556 = vmatpush2.xpose.msra.mxu0 0.0
    %1557 = vmatprep.mubr.f32.mxu0 0.0
    %1558 = vmatmul.mubr.f32.gmra.mxu0 %v1476
    %v1559 = vpop.f32.mrf.mxu0
    %v1560 = vadd.f32 %v1467, %v1559
    %v1561 = vpop.f32.mrf.mxu0
    %1562 = vmatprep.mubr.f32.mxu0 0.0
    %1563 = vmatmul.mubr.f32.gmra.mxu0 %v1479
    %v1564 = vpop.f32.mrf.mxu0
    %v1565 = vadd.f32 %v1472, %v1564
    %v1566 = vpop.f32.mrf.mxu0
    %1567 = vdwg.mxu0
    %v1568 = vsub.f32 %v47, 1.0
    %v1569 = vsub.f32 %v48, 1.0
    %v1570 = vmul.f32 %v1568, 1e+09
    %v1571 = vmul.f32 %v1569, 1e+09
    %v1573 = vsel %vm135, %v545, 0
    %v1576 = vsel %vm135, %v550, 0
    %v1579 = vsel %vm135, %v634, 0
    %v1582 = vsel %vm135, %v639, 0
    %1584 = vmatprep.subr.mxu0 0.0
    %1585 = vmatpush1.xpose.msra.mxu0 0.0
    %1586 = vmatprep.subr.mxu0 0.0
    %1587 = vmatpush1.xpose.msra.mxu0 0.0
    %1588 = vmatprep.subr.mxu0 0.0
    %1589 = vmatpush1.xpose.msra.mxu0 0.0
    %1590 = vmatprep.subr.mxu0 0.0
    %1591 = vmatpush1.xpose.msra.mxu0 0.0
    %1592 = vmatprep.subr.mxu0 0.0
    %1593 = vmatpush1.xpose.msra.mxu0 0.0
    %1594 = vmatprep.subr.mxu0 0.0
    %1595 = vmatpush1.xpose.msra.mxu0 0.0
    %1596 = vmatprep.subr.mxu0 0.0
    %1597 = vmatpush1.xpose.msra.mxu0 0.0
    %1598 = vmatprep.subr.mxu0 0.0
    %1599 = vmatpush1.xpose.msra.mxu0 0.0
    %1600 = vmatprep.subr.mxu0 0.0
    %1601 = vmatpush1.xpose.msra.mxu0 0.0
    %1602 = vmatprep.subr.mxu0 0.0
    %1603 = vmatpush1.xpose.msra.mxu0 0.0
    %1604 = vmatprep.subr.mxu0 0.0
    %1605 = vmatpush1.xpose.msra.mxu0 0.0
    %1606 = vmatprep.subr.mxu0 0.0
    %1607 = vmatpush1.xpose.msra.mxu0 0.0
    %1608 = vmatprep.subr.mxu0 0.0
    %1609 = vmatpush1.xpose.msra.mxu0 0.0
    %1610 = vmatprep.subr.mxu0 0.0
    %1611 = vmatpush1.xpose.msra.mxu0 0.0
    %1612 = vmatprep.subr.mxu0 0.0
    %1613 = vmatpush1.xpose.msra.mxu0 %v1582
    %1614 = vmatprep.subr.mxu0 0.0
    %1615 = vmatpush1.xpose.msra.mxu0 %v1579
    %1616 = vmatprep.subr.mxu0 0.0
    %1617 = vmatpush2.xpose.msra.mxu0 0.0
    %1618 = vmatprep.subr.mxu0 0.0
    %1619 = vmatpush2.xpose.msra.mxu0 0.0
    %1620 = vmatprep.subr.mxu0 0.0
    %1621 = vmatpush2.xpose.msra.mxu0 0.0
    %1622 = vmatprep.subr.mxu0 0.0
    %1623 = vmatpush2.xpose.msra.mxu0 0.0
    %1624 = vmatprep.subr.mxu0 0.0
    %1625 = vmatpush2.xpose.msra.mxu0 0.0
    %1626 = vmatprep.subr.mxu0 0.0
    %1627 = vmatpush2.xpose.msra.mxu0 0.0
    %1628 = vmatprep.subr.mxu0 0.0
    %1629 = vmatpush2.xpose.msra.mxu0 0.0
    %1630 = vmatprep.subr.mxu0 0.0
    %1631 = vmatpush2.xpose.msra.mxu0 0.0
    %1632 = vmatprep.subr.mxu0 0.0
    %1633 = vmatpush2.xpose.msra.mxu0 0.0
    %1634 = vmatprep.subr.mxu0 0.0
    %1635 = vmatpush2.xpose.msra.mxu0 0.0
    %1636 = vmatprep.subr.mxu0 0.0
    %1637 = vmatpush2.xpose.msra.mxu0 0.0
    %1638 = vmatprep.subr.mxu0 0.0
    %1639 = vmatpush2.xpose.msra.mxu0 0.0
    %1640 = vmatprep.subr.mxu0 0.0
    %1641 = vmatpush2.xpose.msra.mxu0 0.0
    %1642 = vmatprep.subr.mxu0 0.0
    %1643 = vmatpush2.xpose.msra.mxu0 0.0
    %1644 = vmatprep.subr.mxu0 0.0
    %1645 = vmatpush2.xpose.msra.mxu0 0.0
    %1646 = vmatprep.subr.mxu0 0.0
    %1647 = vmatpush2.xpose.msra.mxu0 0.0
    %1648 = vmatprep.mubr.f32.mxu0 0.0
    %1649 = vmatmul.mubr.f32.gmra.mxu0 %v1573
    %v1650 = vpop.f32.mrf.mxu0
    %v1651 = vadd.f32 %v1570, %v1650
    %v1652 = vpop.f32.mrf.mxu0
    %1653 = vmatprep.mubr.f32.mxu0 0.0
    %1654 = vmatmul.mubr.f32.gmra.mxu0 %v1576
    %v1655 = vpop.f32.mrf.mxu0
    %v1656 = vadd.f32 %v1571, %v1655
    %v1657 = vpop.f32.mrf.mxu0
    %1658 = vdwg.mxu0
    %v1659 = vsel %vm135, %v1651, -inf
    %1660 = vmax.xlane.f32.xlu0 %v1659
    %v1661 = vpop.xlane.xlu0 %1660
    %v1662 = vsel %vm135, %v1656, -inf
    %1663 = vmax.xlane.f32.xlu0 %v1662
    %v1664 = vpop.xlane.xlu0 %1663
    %v1665 = vsub.f32 %v1651, %v1661
    %v1666 = vsub.f32 %v1656, %v1664
    %v1667 = vmul.f32 %v1665, 1.442695
    %v1668 = vpow.pop %v1667
    %v1669 = vmul.f32 %v1666, 1.442695
    %v1670 = vpow.pop %v1669
    %v1671 = vsel %vm135, %v1668, 0.0
    %1672 = vadd.xlane.f32.xlu0 %v1671
    %v1673 = vpop.xlane.xlu0 %1672
    %v1674 = vsel %vm135, %v1670, 0.0
    %1675 = vadd.xlane.f32.xlu0 %v1674
    %v1676 = vpop.xlane.xlu0 %1675
    %v1677 = vrcp.pop %v1673
    %v1678 = vrcp.pop %v1676
    %v1679 = vmul.f32 %v1668, %v1677
    %v1680 = vmul.f32 %v1670, %v1678
    %v1682 = vsel %vm135, %v1679, 0
    %v1685 = vsel %vm135, %v1680, 0
    %1687 = vmatprep.subr.mxu0 0.0
    %1688 = vmatpush1.msra.mxu0 0.0
    %1689 = vmatprep.subr.mxu0 0.0
    %1690 = vmatpush1.msra.mxu0 0.0
    %1691 = vmatprep.subr.mxu0 0.0
    %1692 = vmatpush1.msra.mxu0 0.0
    %1693 = vmatprep.subr.mxu0 0.0
    %1694 = vmatpush1.msra.mxu0 0.0
    %1695 = vmatprep.subr.mxu0 0.0
    %1696 = vmatpush1.msra.mxu0 0.0
    %1697 = vmatprep.subr.mxu0 0.0
    %1698 = vmatpush1.msra.mxu0 0.0
    %1699 = vmatprep.subr.mxu0 0.0
    %1700 = vmatpush1.msra.mxu0 0.0
    %1701 = vmatprep.subr.mxu0 0.0
    %1702 = vmatpush1.msra.mxu0 0.0
    %1703 = vmatprep.subr.mxu0 0.0
    %1704 = vmatpush1.msra.mxu0 0.0
    %1705 = vmatprep.subr.mxu0 0.0
    %1706 = vmatpush1.msra.mxu0 0.0
    %1707 = vmatprep.subr.mxu0 0.0
    %1708 = vmatpush1.msra.mxu0 0.0
    %1709 = vmatprep.subr.mxu0 0.0
    %1710 = vmatpush1.msra.mxu0 0.0
    %1711 = vmatprep.subr.mxu0 0.0
    %1712 = vmatpush1.msra.mxu0 0.0
    %1713 = vmatprep.subr.mxu0 0.0
    %1714 = vmatpush1.msra.mxu0 0.0
    %1715 = vmatprep.subr.mxu0 0.0
    %1716 = vmatpush1.msra.mxu0 %v728
    %1717 = vmatprep.subr.mxu0 0.0
    %1718 = vmatpush1.msra.mxu0 %v723
    %1719 = vmatprep.subr.mxu0 0.0
    %1720 = vmatpush2.msra.mxu0 0.0
    %1721 = vmatprep.subr.mxu0 0.0
    %1722 = vmatpush2.msra.mxu0 0.0
    %1723 = vmatprep.subr.mxu0 0.0
    %1724 = vmatpush2.msra.mxu0 0.0
    %1725 = vmatprep.subr.mxu0 0.0
    %1726 = vmatpush2.msra.mxu0 0.0
    %1727 = vmatprep.subr.mxu0 0.0
    %1728 = vmatpush2.msra.mxu0 0.0
    %1729 = vmatprep.subr.mxu0 0.0
    %1730 = vmatpush2.msra.mxu0 0.0
    %1731 = vmatprep.subr.mxu0 0.0
    %1732 = vmatpush2.msra.mxu0 0.0
    %1733 = vmatprep.subr.mxu0 0.0
    %1734 = vmatpush2.msra.mxu0 0.0
    %1735 = vmatprep.subr.mxu0 0.0
    %1736 = vmatpush2.msra.mxu0 0.0
    %1737 = vmatprep.subr.mxu0 0.0
    %1738 = vmatpush2.msra.mxu0 0.0
    %1739 = vmatprep.subr.mxu0 0.0
    %1740 = vmatpush2.msra.mxu0 0.0
    %1741 = vmatprep.subr.mxu0 0.0
    %1742 = vmatpush2.msra.mxu0 0.0
    %1743 = vmatprep.subr.mxu0 0.0
    %1744 = vmatpush2.msra.mxu0 0.0
    %1745 = vmatprep.subr.mxu0 0.0
    %1746 = vmatpush2.msra.mxu0 0.0
    %1747 = vmatprep.subr.mxu0 0.0
    %1748 = vmatpush2.msra.mxu0 0.0
    %1749 = vmatprep.subr.mxu0 0.0
    %1750 = vmatpush2.msra.mxu0 0.0
    %1751 = vmatprep.mubr.f32.mxu0 0.0
    %1752 = vmatmul.mubr.f32.gmra.mxu0 %v1682
    %v1753 = vpop.f32.mrf.mxu0
    %v1754 = vadd.f32 0.0, %v1753
    %v1755 = vpop.f32.mrf.mxu0
    %1756 = vmatprep.mubr.f32.mxu0 0.0
    %1757 = vmatmul.mubr.f32.gmra.mxu0 %v1685
    %v1758 = vpop.f32.mrf.mxu0
    %v1759 = vadd.f32 0.0, %v1758
    %v1760 = vpop.f32.mrf.mxu0
    %1761 = vdwg.mxu0
    %v1763 = vsel %vm135, %v812, 0
    %v1766 = vsel %vm135, %v817, 0
    %v1769 = vsel %vm135, %v901, 0
    %v1772 = vsel %vm135, %v906, 0
    %1774 = vmatprep.subr.mxu0 0.0
    %1775 = vmatpush1.xpose.msra.mxu0 0.0
    %1776 = vmatprep.subr.mxu0 0.0
    %1777 = vmatpush1.xpose.msra.mxu0 0.0
    %1778 = vmatprep.subr.mxu0 0.0
    %1779 = vmatpush1.xpose.msra.mxu0 0.0
    %1780 = vmatprep.subr.mxu0 0.0
    %1781 = vmatpush1.xpose.msra.mxu0 0.0
    %1782 = vmatprep.subr.mxu0 0.0
    %1783 = vmatpush1.xpose.msra.mxu0 0.0
    %1784 = vmatprep.subr.mxu0 0.0
    %1785 = vmatpush1.xpose.msra.mxu0 0.0
    %1786 = vmatprep.subr.mxu0 0.0
    %1787 = vmatpush1.xpose.msra.mxu0 0.0
    %1788 = vmatprep.subr.mxu0 0.0
    %1789 = vmatpush1.xpose.msra.mxu0 0.0
    %1790 = vmatprep.subr.mxu0 0.0
    %1791 = vmatpush1.xpose.msra.mxu0 0.0
    %1792 = vmatprep.subr.mxu0 0.0
    %1793 = vmatpush1.xpose.msra.mxu0 0.0
    %1794 = vmatprep.subr.mxu0 0.0
    %1795 = vmatpush1.xpose.msra.mxu0 0.0
    %1796 = vmatprep.subr.mxu0 0.0
    %1797 = vmatpush1.xpose.msra.mxu0 0.0
    %1798 = vmatprep.subr.mxu0 0.0
    %1799 = vmatpush1.xpose.msra.mxu0 0.0
    %1800 = vmatprep.subr.mxu0 0.0
    %1801 = vmatpush1.xpose.msra.mxu0 0.0
    %1802 = vmatprep.subr.mxu0 0.0
    %1803 = vmatpush1.xpose.msra.mxu0 %v1772
    %1804 = vmatprep.subr.mxu0 0.0
    %1805 = vmatpush1.xpose.msra.mxu0 %v1769
    %1806 = vmatprep.subr.mxu0 0.0
    %1807 = vmatpush2.xpose.msra.mxu0 0.0
    %1808 = vmatprep.subr.mxu0 0.0
    %1809 = vmatpush2.xpose.msra.mxu0 0.0
    %1810 = vmatprep.subr.mxu0 0.0
    %1811 = vmatpush2.xpose.msra.mxu0 0.0
    %1812 = vmatprep.subr.mxu0 0.0
    %1813 = vmatpush2.xpose.msra.mxu0 0.0
    %1814 = vmatprep.subr.mxu0 0.0
    %1815 = vmatpush2.xpose.msra.mxu0 0.0
    %1816 = vmatprep.subr.mxu0 0.0
    %1817 = vmatpush2.xpose.msra.mxu0 0.0
    %1818 = vmatprep.subr.mxu0 0.0
    %1819 = vmatpush2.xpose.msra.mxu0 0.0
    %1820 = vmatprep.subr.mxu0 0.0
    %1821 = vmatpush2.xpose.msra.mxu0 0.0
    %1822 = vmatprep.subr.mxu0 0.0
    %1823 = vmatpush2.xpose.msra.mxu0 0.0
    %1824 = vmatprep.subr.mxu0 0.0
    %1825 = vmatpush2.xpose.msra.mxu0 0.0
    %1826 = vmatprep.subr.mxu0 0.0
    %1827 = vmatpush2.xpose.msra.mxu0 0.0
    %1828 = vmatprep.subr.mxu0 0.0
    %1829 = vmatpush2.xpose.msra.mxu0 0.0
    %1830 = vmatprep.subr.mxu0 0.0
    %1831 = vmatpush2.xpose.msra.mxu0 0.0
    %1832 = vmatprep.subr.mxu0 0.0
    %1833 = vmatpush2.xpose.msra.mxu0 0.0
    %1834 = vmatprep.subr.mxu0 0.0
    %1835 = vmatpush2.xpose.msra.mxu0 0.0
    %1836 = vmatprep.subr.mxu0 0.0
    %1837 = vmatpush2.xpose.msra.mxu0 0.0
    %1838 = vmatprep.mubr.f32.mxu0 0.0
    %1839 = vmatmul.mubr.f32.gmra.mxu0 %v1763
    %v1840 = vpop.f32.mrf.mxu0
    %v1841 = vadd.f32 %v1570, %v1840
    %v1842 = vpop.f32.mrf.mxu0
    %1843 = vmatprep.mubr.f32.mxu0 0.0
    %1844 = vmatmul.mubr.f32.gmra.mxu0 %v1766
    %v1845 = vpop.f32.mrf.mxu0
    %v1846 = vadd.f32 %v1571, %v1845
    %v1847 = vpop.f32.mrf.mxu0
    %1848 = vdwg.mxu0
    %v1849 = vsel %vm135, %v1841, -inf
    %1850 = vmax.xlane.f32.xlu0 %v1849
    %v1851 = vpop.xlane.xlu0 %1850
    %v1852 = vsel %vm135, %v1846, -inf
    %1853 = vmax.xlane.f32.xlu0 %v1852
    %v1854 = vpop.xlane.xlu0 %1853
    %v1855 = vsub.f32 %v1841, %v1851
    %v1856 = vsub.f32 %v1846, %v1854
    %v1857 = vmul.f32 %v1855, 1.442695
    %v1858 = vpow.pop %v1857
    %v1859 = vmul.f32 %v1856, 1.442695
    %v1860 = vpow.pop %v1859
    %v1861 = vsel %vm135, %v1858, 0.0
    %1862 = vadd.xlane.f32.xlu0 %v1861
    %v1863 = vpop.xlane.xlu0 %1862
    %v1864 = vsel %vm135, %v1860, 0.0
    %1865 = vadd.xlane.f32.xlu0 %v1864
    %v1866 = vpop.xlane.xlu0 %1865
    %v1867 = vrcp.pop %v1863
    %v1868 = vrcp.pop %v1866
    %v1869 = vmul.f32 %v1858, %v1867
    %v1870 = vmul.f32 %v1860, %v1868
    %v1872 = vsel %vm135, %v1869, 0
    %v1875 = vsel %vm135, %v1870, 0
    %1877 = vmatprep.subr.mxu0 0.0
    %1878 = vmatpush1.msra.mxu0 0.0
    %1879 = vmatprep.subr.mxu0 0.0
    %1880 = vmatpush1.msra.mxu0 0.0
    %1881 = vmatprep.subr.mxu0 0.0
    %1882 = vmatpush1.msra.mxu0 0.0
    %1883 = vmatprep.subr.mxu0 0.0
    %1884 = vmatpush1.msra.mxu0 0.0
    %1885 = vmatprep.subr.mxu0 0.0
    %1886 = vmatpush1.msra.mxu0 0.0
    %1887 = vmatprep.subr.mxu0 0.0
    %1888 = vmatpush1.msra.mxu0 0.0
    %1889 = vmatprep.subr.mxu0 0.0
    %1890 = vmatpush1.msra.mxu0 0.0
    %1891 = vmatprep.subr.mxu0 0.0
    %1892 = vmatpush1.msra.mxu0 0.0
    %1893 = vmatprep.subr.mxu0 0.0
    %1894 = vmatpush1.msra.mxu0 0.0
    %1895 = vmatprep.subr.mxu0 0.0
    %1896 = vmatpush1.msra.mxu0 0.0
    %1897 = vmatprep.subr.mxu0 0.0
    %1898 = vmatpush1.msra.mxu0 0.0
    %1899 = vmatprep.subr.mxu0 0.0
    %1900 = vmatpush1.msra.mxu0 0.0
    %1901 = vmatprep.subr.mxu0 0.0
    %1902 = vmatpush1.msra.mxu0 0.0
    %1903 = vmatprep.subr.mxu0 0.0
    %1904 = vmatpush1.msra.mxu0 0.0
    %1905 = vmatprep.subr.mxu0 0.0
    %1906 = vmatpush1.msra.mxu0 %v995
    %1907 = vmatprep.subr.mxu0 0.0
    %1908 = vmatpush1.msra.mxu0 %v990
    %1909 = vmatprep.subr.mxu0 0.0
    %1910 = vmatpush2.msra.mxu0 0.0
    %1911 = vmatprep.subr.mxu0 0.0
    %1912 = vmatpush2.msra.mxu0 0.0
    %1913 = vmatprep.subr.mxu0 0.0
    %1914 = vmatpush2.msra.mxu0 0.0
    %1915 = vmatprep.subr.mxu0 0.0
    %1916 = vmatpush2.msra.mxu0 0.0
    %1917 = vmatprep.subr.mxu0 0.0
    %1918 = vmatpush2.msra.mxu0 0.0
    %1919 = vmatprep.subr.mxu0 0.0
    %1920 = vmatpush2.msra.mxu0 0.0
    %1921 = vmatprep.subr.mxu0 0.0
    %1922 = vmatpush2.msra.mxu0 0.0
    %1923 = vmatprep.subr.mxu0 0.0
    %1924 = vmatpush2.msra.mxu0 0.0
    %1925 = vmatprep.subr.mxu0 0.0
    %1926 = vmatpush2.msra.mxu0 0.0
    %1927 = vmatprep.subr.mxu0 0.0
    %1928 = vmatpush2.msra.mxu0 0.0
    %1929 = vmatprep.subr.mxu0 0.0
    %1930 = vmatpush2.msra.mxu0 0.0
    %1931 = vmatprep.subr.mxu0 0.0
    %1932 = vmatpush2.msra.mxu0 0.0
    %1933 = vmatprep.subr.mxu0 0.0
    %1934 = vmatpush2.msra.mxu0 0.0
    %1935 = vmatprep.subr.mxu0 0.0
    %1936 = vmatpush2.msra.mxu0 0.0
    %1937 = vmatprep.subr.mxu0 0.0
    %1938 = vmatpush2.msra.mxu0 0.0
    %1939 = vmatprep.subr.mxu0 0.0
    %1940 = vmatpush2.msra.mxu0 0.0
    %1941 = vmatprep.mubr.f32.mxu0 0.0
    %1942 = vmatmul.mubr.f32.gmra.mxu0 %v1872
    %v1943 = vpop.f32.mrf.mxu0
    %v1944 = vadd.f32 0.0, %v1943
    %v1945 = vpop.f32.mrf.mxu0
    %1946 = vmatprep.mubr.f32.mxu0 0.0
    %1947 = vmatmul.mubr.f32.gmra.mxu0 %v1875
    %v1948 = vpop.f32.mrf.mxu0
    %v1949 = vadd.f32 0.0, %v1948
    %v1950 = vpop.f32.mrf.mxu0
    %1951 = vdwg.mxu0
    %v1953 = vsel %vm135, %v1944, 0
    %v1956 = vsel %vm135, %v1949, 0
    %1958 = vmatprep.subr.mxu0 0.0
    %1959 = vmatpush1.xpose.msra.mxu0 0.0
    %1960 = vmatprep.subr.mxu0 0.0
    %1961 = vmatpush1.xpose.msra.mxu0 0.0
    %1962 = vmatprep.subr.mxu0 0.0
    %1963 = vmatpush1.xpose.msra.mxu0 0.0
    %1964 = vmatprep.subr.mxu0 0.0
    %1965 = vmatpush1.xpose.msra.mxu0 0.0
    %1966 = vmatprep.subr.mxu0 0.0
    %1967 = vmatpush1.xpose.msra.mxu0 0.0
    %1968 = vmatprep.subr.mxu0 0.0
    %1969 = vmatpush1.xpose.msra.mxu0 0.0
    %1970 = vmatprep.subr.mxu0 0.0
    %1971 = vmatpush1.xpose.msra.mxu0 0.0
    %1972 = vmatprep.subr.mxu0 0.0
    %1973 = vmatpush1.xpose.msra.mxu0 0.0
    %1974 = vmatprep.subr.mxu0 0.0
    %1975 = vmatpush1.xpose.msra.mxu0 0.0
    %1976 = vmatprep.subr.mxu0 0.0
    %1977 = vmatpush1.xpose.msra.mxu0 0.0
    %1978 = vmatprep.subr.mxu0 0.0
    %1979 = vmatpush1.xpose.msra.mxu0 0.0
    %1980 = vmatprep.subr.mxu0 0.0
    %1981 = vmatpush1.xpose.msra.mxu0 0.0
    %1982 = vmatprep.subr.mxu0 0.0
    %1983 = vmatpush1.xpose.msra.mxu0 %v1398
    %1984 = vmatprep.subr.mxu0 0.0
    %1985 = vmatpush1.xpose.msra.mxu0 %v1395
    %1986 = vmatprep.subr.mxu0 0.0
    %1987 = vmatpush1.xpose.msra.mxu0 %v1392
    %1988 = vmatprep.subr.mxu0 0.0
    %1989 = vmatpush1.xpose.msra.mxu0 %v1389
    %1990 = vmatprep.subr.mxu0 0.0
    %1991 = vmatpush2.xpose.msra.mxu0 0.0
    %1992 = vmatprep.subr.mxu0 0.0
    %1993 = vmatpush2.xpose.msra.mxu0 0.0
    %1994 = vmatprep.subr.mxu0 0.0
    %1995 = vmatpush2.xpose.msra.mxu0 0.0
    %1996 = vmatprep.subr.mxu0 0.0
    %1997 = vmatpush2.xpose.msra.mxu0 0.0
    %1998 = vmatprep.subr.mxu0 0.0
    %1999 = vmatpush2.xpose.msra.mxu0 0.0
    %2000 = vmatprep.subr.mxu0 0.0
    %2001 = vmatpush2.xpose.msra.mxu0 0.0
    %2002 = vmatprep.subr.mxu0 0.0
    %2003 = vmatpush2.xpose.msra.mxu0 0.0
    %2004 = vmatprep.subr.mxu0 0.0
    %2005 = vmatpush2.xpose.msra.mxu0 0.0
    %2006 = vmatprep.subr.mxu0 0.0
    %2007 = vmatpush2.xpose.msra.mxu0 0.0
    %2008 = vmatprep.subr.mxu0 0.0
    %2009 = vmatpush2.xpose.msra.mxu0 0.0
    %2010 = vmatprep.subr.mxu0 0.0
    %2011 = vmatpush2.xpose.msra.mxu0 0.0
    %2012 = vmatprep.subr.mxu0 0.0
    %2013 = vmatpush2.xpose.msra.mxu0 0.0
    %2014 = vmatprep.subr.mxu0 0.0
    %2015 = vmatpush2.xpose.msra.mxu0 0.0
    %2016 = vmatprep.subr.mxu0 0.0
    %2017 = vmatpush2.xpose.msra.mxu0 0.0
    %2018 = vmatprep.subr.mxu0 0.0
    %2019 = vmatpush2.xpose.msra.mxu0 0.0
    %2020 = vmatprep.subr.mxu0 0.0
    %2021 = vmatpush2.xpose.msra.mxu0 0.0
    %2022 = vmatprep.mubr.f32.mxu0 0.0
    %2023 = vmatmul.mubr.f32.gmra.mxu0 %v1953
    %v2024 = vpop.f32.mrf.mxu0
    %v2025 = vadd.f32 0.0, %v2024
    %v2026 = vpop.f32.mrf.mxu0
    %2027 = vmatprep.mubr.f32.mxu0 0.0
    %2028 = vmatmul.mubr.f32.gmra.mxu0 %v1956
    %v2029 = vpop.f32.mrf.mxu0
    %v2030 = vadd.f32 0.0, %v2029
    %v2031 = vpop.f32.mrf.mxu0
    %2032 = vdwg.mxu0
    %v2034 = vsel %vm135, %v1754, 0
    %v2037 = vsel %vm135, %v1759, 0
    %2039 = vmatprep.subr.mxu0 0.0
    %2040 = vmatpush1.xpose.msra.mxu0 0.0
    %2041 = vmatprep.subr.mxu0 0.0
    %2042 = vmatpush1.xpose.msra.mxu0 0.0
    %2043 = vmatprep.subr.mxu0 0.0
    %2044 = vmatpush1.xpose.msra.mxu0 0.0
    %2045 = vmatprep.subr.mxu0 0.0
    %2046 = vmatpush1.xpose.msra.mxu0 0.0
    %2047 = vmatprep.subr.mxu0 0.0
    %2048 = vmatpush1.xpose.msra.mxu0 0.0
    %2049 = vmatprep.subr.mxu0 0.0
    %2050 = vmatpush1.xpose.msra.mxu0 0.0
    %2051 = vmatprep.subr.mxu0 0.0
    %2052 = vmatpush1.xpose.msra.mxu0 0.0
    %2053 = vmatprep.subr.mxu0 0.0
    %2054 = vmatpush1.xpose.msra.mxu0 0.0
    %2055 = vmatprep.subr.mxu0 0.0
    %2056 = vmatpush1.xpose.msra.mxu0 0.0
    %2057 = vmatprep.subr.mxu0 0.0
    %2058 = vmatpush1.xpose.msra.mxu0 0.0
    %2059 = vmatprep.subr.mxu0 0.0
    %2060 = vmatpush1.xpose.msra.mxu0 0.0
    %2061 = vmatprep.subr.mxu0 0.0
    %2062 = vmatpush1.xpose.msra.mxu0 0.0
    %2063 = vmatprep.subr.mxu0 0.0
    %2064 = vmatpush1.xpose.msra.mxu0 %v1491
    %2065 = vmatprep.subr.mxu0 0.0
    %2066 = vmatpush1.xpose.msra.mxu0 %v1488
    %2067 = vmatprep.subr.mxu0 0.0
    %2068 = vmatpush1.xpose.msra.mxu0 %v1485
    %2069 = vmatprep.subr.mxu0 0.0
    %2070 = vmatpush1.xpose.msra.mxu0 %v1482
    %2071 = vmatprep.subr.mxu0 0.0
    %2072 = vmatpush2.xpose.msra.mxu0 0.0
    %2073 = vmatprep.subr.mxu0 0.0
    %2074 = vmatpush2.xpose.msra.mxu0 0.0
    %2075 = vmatprep.subr.mxu0 0.0
    %2076 = vmatpush2.xpose.msra.mxu0 0.0
    %2077 = vmatprep.subr.mxu0 0.0
    %2078 = vmatpush2.xpose.msra.mxu0 0.0
    %2079 = vmatprep.subr.mxu0 0.0
    %2080 = vmatpush2.xpose.msra.mxu0 0.0
    %2081 = vmatprep.subr.mxu0 0.0
    %2082 = vmatpush2.xpose.msra.mxu0 0.0
    %2083 = vmatprep.subr.mxu0 0.0
    %2084 = vmatpush2.xpose.msra.mxu0 0.0
    %2085 = vmatprep.subr.mxu0 0.0
    %2086 = vmatpush2.xpose.msra.mxu0 0.0
    %2087 = vmatprep.subr.mxu0 0.0
    %2088 = vmatpush2.xpose.msra.mxu0 0.0
    %2089 = vmatprep.subr.mxu0 0.0
    %2090 = vmatpush2.xpose.msra.mxu0 0.0
    %2091 = vmatprep.subr.mxu0 0.0
    %2092 = vmatpush2.xpose.msra.mxu0 0.0
    %2093 = vmatprep.subr.mxu0 0.0
    %2094 = vmatpush2.xpose.msra.mxu0 0.0
    %2095 = vmatprep.subr.mxu0 0.0
    %2096 = vmatpush2.xpose.msra.mxu0 0.0
    %2097 = vmatprep.subr.mxu0 0.0
    %2098 = vmatpush2.xpose.msra.mxu0 0.0
    %2099 = vmatprep.subr.mxu0 0.0
    %2100 = vmatpush2.xpose.msra.mxu0 0.0
    %2101 = vmatprep.subr.mxu0 0.0
    %2102 = vmatpush2.xpose.msra.mxu0 0.0
    %2103 = vmatprep.mubr.f32.mxu0 0.0
    %2104 = vmatmul.mubr.f32.gmra.mxu0 %v2034
    %v2105 = vpop.f32.mrf.mxu0
    %v2106 = vadd.f32 %v2025, %v2105
    %v2107 = vpop.f32.mrf.mxu0
    %2108 = vmatprep.mubr.f32.mxu0 0.0
    %2109 = vmatmul.mubr.f32.gmra.mxu0 %v2037
    %v2110 = vpop.f32.mrf.mxu0
    %v2111 = vadd.f32 %v2030, %v2110
    %v2112 = vpop.f32.mrf.mxu0
    %2113 = vdwg.mxu0
    %v2114 = vlaneseq
    %v2115 = vshrl.u32 %v2114, 7
    %v2116 = vsub.s32 2, %v2115
    %v2117 = vrot.slane %v95, %v2116
    %v2118 = vadd.f32 %v1560, %v2117
    %v2119 = vadd.f32 %v1565, %v2117
    %v2120 = vadd.f32 %v2106, %v2117
    %v2121 = vadd.f32 %v2111, %v2117
    %v2122 = vadd.f32 %v448, %v2118
    %v2123 = vadd.f32 %v449, %v2119
    %v2124 = vadd.f32 %v450, %v2120
    %v2125 = vadd.f32 %v451, %v2121
    %v2126 = vsel %vm382, %v2122, 0.0
    %2127 = vadd.xlane.f32.xlu0 %v2126
    %v2128 = vpop.xlane.xlu0 %2127
    %v2129 = vsel %vm382, %v2123, 0.0
    %2130 = vadd.xlane.f32.xlu0 %v2129
    %v2131 = vpop.xlane.xlu0 %2130
    %v2132 = vsel %vm382, %v2124, 0.0
    %2133 = vadd.xlane.f32.xlu0 %v2132
    %v2134 = vpop.xlane.xlu0 %2133
    %v2135 = vsel %vm382, %v2125, 0.0
    %2136 = vadd.xlane.f32.xlu0 %v2135
    %v2137 = vpop.xlane.xlu0 %2136
    %v2138 = vmul.f32 %v2128, %v395
    %v2139 = vmul.f32 %v2131, %v395
    %v2140 = vmul.f32 %v2134, %v395
    %v2141 = vmul.f32 %v2137, %v395
    %v2142 = vsub.f32 %v2122, %v2138
    %v2143 = vsub.f32 %v2123, %v2139
    %v2144 = vsub.f32 %v2124, %v2140
    %v2145 = vsub.f32 %v2125, %v2141
    %v2146 = vmul.f32 %v2142, %v2142
    %v2147 = vmul.f32 %v2143, %v2143
    %v2148 = vmul.f32 %v2144, %v2144
    %v2149 = vmul.f32 %v2145, %v2145
    %v2150 = vsel %vm382, %v2146, 0.0
    %2151 = vadd.xlane.f32.xlu0 %v2150
    %v2152 = vpop.xlane.xlu0 %2151
    %v2153 = vsel %vm382, %v2147, 0.0
    %2154 = vadd.xlane.f32.xlu0 %v2153
    %v2155 = vpop.xlane.xlu0 %2154
    %v2156 = vsel %vm382, %v2148, 0.0
    %2157 = vadd.xlane.f32.xlu0 %v2156
    %v2158 = vpop.xlane.xlu0 %2157
    %v2159 = vsel %vm382, %v2149, 0.0
    %2160 = vadd.xlane.f32.xlu0 %v2159
    %v2161 = vpop.xlane.xlu0 %2160
    %v2162 = vmul.f32 %v2152, %v395
    %v2163 = vmul.f32 %v2155, %v395
    %v2164 = vmul.f32 %v2158, %v395
    %v2165 = vmul.f32 %v2161, %v395
    %v2166 = vadd.f32 %v2162, 1e-05
    %v2167 = vadd.f32 %v2163, 1e-05
    %v2168 = vadd.f32 %v2164, 1e-05
    %v2169 = vadd.f32 %v2165, 1e-05
    %v2170 = vrsqrt.pop %v2166
    %v2171 = vrsqrt.pop %v2167
    %v2172 = vrsqrt.pop %v2168
    %v2173 = vrsqrt.pop %v2169
    %v2174 = vmul.f32 %v2142, %v2170
    %v2175 = vmul.f32 %v2143, %v2171
    %v2176 = vmul.f32 %v2144, %v2172
    %v2177 = vmul.f32 %v2145, %v2173
    %v2178 = vlaneseq
    %v2179 = vshrl.u32 %v2178, 7
    %v2180 = vsub.s32 3, %v2179
    %v2181 = vrot.slane %v95, %v2180
    %v2182 = vmul.f32 %v2174, %v2181
    %v2183 = vmul.f32 %v2175, %v2181
    %v2184 = vmul.f32 %v2176, %v2181
    %v2185 = vmul.f32 %v2177, %v2181
    %v2186 = vlaneseq
    %v2187 = vshrl.u32 %v2186, 7
    %v2188 = vsub.s32 4, %v2187
    %v2189 = vrot.slane %v95, %v2188
    %v2190 = vadd.f32 %v2182, %v2189
    %v2191 = vadd.f32 %v2183, %v2189
    %v2192 = vadd.f32 %v2184, %v2189
    %v2193 = vadd.f32 %v2185, %v2189
    %v2194 = vlaneseq
    %v2195 = vshrl.u32 %v2194, 7
    %v2196 = vsub.s32 0, %v2195
    %v2197 = vrot.slane %v100, %v2196
    %v2199 = vsel %vm382, %v2190, 0
    %v2202 = vsel %vm382, %v2191, 0
    %v2205 = vsel %vm382, %v2192, 0
    %v2208 = vsel %vm382, %v2193, 0
    %2210 = vmatprep.subr.mxu0 0.0
    %2211 = vmatpush1.msra.mxu0 0.0
    %2212 = vmatprep.subr.mxu0 0.0
    %2213 = vmatpush1.msra.mxu0 0.0
    %2214 = vmatprep.subr.mxu0 0.0
    %2215 = vmatpush1.msra.mxu0 0.0
    %2216 = vmatprep.subr.mxu0 0.0
    %2217 = vmatpush1.msra.mxu0 0.0
    %2218 = vmatprep.subr.mxu0 0.0
    %2219 = vmatpush1.msra.mxu0 0.0
    %2220 = vmatprep.subr.mxu0 0.0
    %2221 = vmatpush1.msra.mxu0 0.0
    %2222 = vmatprep.subr.mxu0 0.0
    %2223 = vmatpush1.msra.mxu0 0.0
    %2224 = vmatprep.subr.mxu0 0.0
    %2225 = vmatpush1.msra.mxu0 0.0
    %2226 = vmatprep.subr.mxu0 0.0
    %2227 = vmatpush1.msra.mxu0 0.0
    %2228 = vmatprep.subr.mxu0 0.0
    %2229 = vmatpush1.msra.mxu0 0.0
    %2230 = vmatprep.subr.mxu0 0.0
    %2231 = vmatpush1.msra.mxu0 0.0
    %2232 = vmatprep.subr.mxu0 0.0
    %2233 = vmatpush1.msra.mxu0 0.0
    %2234 = vmatprep.subr.mxu0 0.0
    %2235 = vmatpush1.msra.mxu0 %v99
    %2236 = vmatprep.subr.mxu0 0.0
    %2237 = vmatpush1.msra.mxu0 %v98
    %2238 = vmatprep.subr.mxu0 0.0
    %2239 = vmatpush1.msra.mxu0 %v97
    %2240 = vmatprep.subr.mxu0 0.0
    %2241 = vmatpush1.msra.mxu0 %v96
    %2242 = vmatprep.subr.mxu0 0.0
    %2243 = vmatpush2.msra.mxu0 0.0
    %2244 = vmatprep.subr.mxu0 0.0
    %2245 = vmatpush2.msra.mxu0 0.0
    %2246 = vmatprep.subr.mxu0 0.0
    %2247 = vmatpush2.msra.mxu0 0.0
    %2248 = vmatprep.subr.mxu0 0.0
    %2249 = vmatpush2.msra.mxu0 0.0
    %2250 = vmatprep.subr.mxu0 0.0
    %2251 = vmatpush2.msra.mxu0 0.0
    %2252 = vmatprep.subr.mxu0 0.0
    %2253 = vmatpush2.msra.mxu0 0.0
    %2254 = vmatprep.subr.mxu0 0.0
    %2255 = vmatpush2.msra.mxu0 0.0
    %2256 = vmatprep.subr.mxu0 0.0
    %2257 = vmatpush2.msra.mxu0 0.0
    %2258 = vmatprep.subr.mxu0 0.0
    %2259 = vmatpush2.msra.mxu0 0.0
    %2260 = vmatprep.subr.mxu0 0.0
    %2261 = vmatpush2.msra.mxu0 0.0
    %2262 = vmatprep.subr.mxu0 0.0
    %2263 = vmatpush2.msra.mxu0 0.0
    %2264 = vmatprep.subr.mxu0 0.0
    %2265 = vmatpush2.msra.mxu0 0.0
    %2266 = vmatprep.subr.mxu0 0.0
    %2267 = vmatpush2.msra.mxu0 0.0
    %2268 = vmatprep.subr.mxu0 0.0
    %2269 = vmatpush2.msra.mxu0 0.0
    %2270 = vmatprep.subr.mxu0 0.0
    %2271 = vmatpush2.msra.mxu0 0.0
    %2272 = vmatprep.subr.mxu0 0.0
    %2273 = vmatpush2.msra.mxu0 0.0
    %2274 = vmatprep.mubr.f32.mxu0 0.0
    %2275 = vmatmul.mubr.f32.gmra.mxu0 %v2199
    %v2276 = vpop.f32.mrf.mxu0
    %v2277 = vadd.f32 %v2197, %v2276
    %v2278 = vpop.f32.mrf.mxu0
    %2279 = vmatprep.mubr.f32.mxu0 0.0
    %2280 = vmatmul.mubr.f32.gmra.mxu0 %v2202
    %v2281 = vpop.f32.mrf.mxu0
    %v2282 = vadd.f32 %v2197, %v2281
    %v2283 = vpop.f32.mrf.mxu0
    %2284 = vmatprep.mubr.f32.mxu0 0.0
    %2285 = vmatmul.mubr.f32.gmra.mxu0 %v2205
    %v2286 = vpop.f32.mrf.mxu0
    %v2287 = vadd.f32 %v2197, %v2286
    %v2288 = vpop.f32.mrf.mxu0
    %2289 = vmatprep.mubr.f32.mxu0 0.0
    %2290 = vmatmul.mubr.f32.gmra.mxu0 %v2208
    %v2291 = vpop.f32.mrf.mxu0
    %v2292 = vadd.f32 %v2197, %v2291
    %v2293 = vpop.f32.mrf.mxu0
    %2294 = vdwg.mxu0
    %v2295 = vmul.f32 %v2277, %v2277
    %v2296 = vmul.f32 %v2282, %v2282
    %v2297 = vmul.f32 %v2287, %v2287
    %v2298 = vmul.f32 %v2292, %v2292
    %v2299 = vmul.f32 %v2277, %v2295
    %v2300 = vmul.f32 %v2282, %v2296
    %v2301 = vmul.f32 %v2287, %v2297
    %v2302 = vmul.f32 %v2292, %v2298
    %v2303 = vmul.f32 %v2299, 0.044715
    %v2304 = vmul.f32 %v2300, 0.044715
    %v2305 = vmul.f32 %v2301, 0.044715
    %v2306 = vmul.f32 %v2302, 0.044715
    %v2307 = vadd.f32 %v2277, %v2303
    %v2308 = vadd.f32 %v2282, %v2304
    %v2309 = vadd.f32 %v2287, %v2305
    %v2310 = vadd.f32 %v2292, %v2306
    %v2311 = vmul.f32 %v2307, 0.7978846
    %v2312 = vmul.f32 %v2308, 0.7978846
    %v2313 = vmul.f32 %v2309, 0.7978846
    %v2314 = vmul.f32 %v2310, 0.7978846
    %v2315 = vtanh.pop %v2311
    %v2316 = vtanh.pop %v2312
    %v2317 = vtanh.pop %v2313
    %v2318 = vtanh.pop %v2314
    %v2319 = vadd.f32 %v2315, 1.0
    %v2320 = vadd.f32 %v2316, 1.0
    %v2321 = vadd.f32 %v2317, 1.0
    %v2322 = vadd.f32 %v2318, 1.0
    %v2323 = vmul.f32 %v2319, 0.5
    %v2324 = vmul.f32 %v2320, 0.5
    %v2325 = vmul.f32 %v2321, 0.5
    %v2326 = vmul.f32 %v2322, 0.5
    %v2327 = vmul.f32 %v2277, %v2323
    %v2328 = vmul.f32 %v2282, %v2324
    %v2329 = vmul.f32 %v2287, %v2325
    %v2330 = vmul.f32 %v2292, %v2326
    %v2331 = vlaneseq
    %v2332 = vshrl.u32 %v2331, 7
    %v2333 = vsub.s32 0, %v2332
    %v2334 = vrot.slane %v109, %v2333
    %vm2335 = vcmask 523264
    %v2337 = vsel %vm2335, %v2327, 0
    %v2340 = vsel %vm2335, %v2328, 0
    %v2343 = vsel %vm2335, %v2329, 0
    %v2346 = vsel %vm2335, %v2330, 0
    %2348 = vmatprep.subr.mxu0 0.0
    %2349 = vmatpush1.msra.mxu0 0.0
    %2350 = vmatprep.subr.mxu0 0.0
    %2351 = vmatpush1.msra.mxu0 0.0
    %2352 = vmatprep.subr.mxu0 0.0
    %2353 = vmatpush1.msra.mxu0 0.0
    %2354 = vmatprep.subr.mxu0 0.0
    %2355 = vmatpush1.msra.mxu0 0.0
    %2356 = vmatprep.subr.mxu0 0.0
    %2357 = vmatpush1.msra.mxu0 0.0
    %2358 = vmatprep.subr.mxu0 0.0
    %2359 = vmatpush1.msra.mxu0 0.0
    %2360 = vmatprep.subr.mxu0 0.0
    %2361 = vmatpush1.msra.mxu0 0.0
    %2362 = vmatprep.subr.mxu0 0.0
    %2363 = vmatpush1.msra.mxu0 0.0
    %2364 = vmatprep.subr.mxu0 0.0
    %2365 = vmatpush1.msra.mxu0 %v108
    %2366 = vmatprep.subr.mxu0 0.0
    %2367 = vmatpush1.msra.mxu0 %v107
    %2368 = vmatprep.subr.mxu0 0.0
    %2369 = vmatpush1.msra.mxu0 %v106
    %2370 = vmatprep.subr.mxu0 0.0
    %2371 = vmatpush1.msra.mxu0 %v105
    %2372 = vmatprep.subr.mxu0 0.0
    %2373 = vmatpush1.msra.mxu0 %v104
    %2374 = vmatprep.subr.mxu0 0.0
    %2375 = vmatpush1.msra.mxu0 %v103
    %2376 = vmatprep.subr.mxu0 0.0
    %2377 = vmatpush1.msra.mxu0 %v102
    %2378 = vmatprep.subr.mxu0 0.0
    %2379 = vmatpush1.msra.mxu0 %v101
    %2380 = vmatprep.subr.mxu0 0.0
    %2381 = vmatpush2.msra.mxu0 0.0
    %2382 = vmatprep.subr.mxu0 0.0
    %2383 = vmatpush2.msra.mxu0 0.0
    %2384 = vmatprep.subr.mxu0 0.0
    %2385 = vmatpush2.msra.mxu0 0.0
    %2386 = vmatprep.subr.mxu0 0.0
    %2387 = vmatpush2.msra.mxu0 0.0
    %2388 = vmatprep.subr.mxu0 0.0
    %2389 = vmatpush2.msra.mxu0 0.0
    %2390 = vmatprep.subr.mxu0 0.0
    %2391 = vmatpush2.msra.mxu0 0.0
    %2392 = vmatprep.subr.mxu0 0.0
    %2393 = vmatpush2.msra.mxu0 0.0
    %2394 = vmatprep.subr.mxu0 0.0
    %2395 = vmatpush2.msra.mxu0 0.0
    %2396 = vmatprep.subr.mxu0 0.0
    %2397 = vmatpush2.msra.mxu0 0.0
    %2398 = vmatprep.subr.mxu0 0.0
    %2399 = vmatpush2.msra.mxu0 0.0
    %2400 = vmatprep.subr.mxu0 0.0
    %2401 = vmatpush2.msra.mxu0 0.0
    %2402 = vmatprep.subr.mxu0 0.0
    %2403 = vmatpush2.msra.mxu0 0.0
    %2404 = vmatprep.subr.mxu0 0.0
    %2405 = vmatpush2.msra.mxu0 0.0
    %2406 = vmatprep.subr.mxu0 0.0
    %2407 = vmatpush2.msra.mxu0 0.0
    %2408 = vmatprep.subr.mxu0 0.0
    %2409 = vmatpush2.msra.mxu0 0.0
    %2410 = vmatprep.subr.mxu0 0.0
    %2411 = vmatpush2.msra.mxu0 0.0
    %2412 = vmatprep.mubr.f32.mxu0 0.0
    %2413 = vmatmul.mubr.f32.gmra.mxu0 %v2337
    %v2414 = vpop.f32.mrf.mxu0
    %v2415 = vadd.f32 %v2334, %v2414
    %v2416 = vpop.f32.mrf.mxu0
    %2417 = vmatprep.mubr.f32.mxu0 0.0
    %2418 = vmatmul.mubr.f32.gmra.mxu0 %v2340
    %v2419 = vpop.f32.mrf.mxu0
    %v2420 = vpop.f32.mrf.mxu0
    %2421 = vmatprep.mubr.f32.mxu0 0.0
    %2422 = vmatmul.mubr.f32.gmra.mxu0 %v2343
    %v2423 = vpop.f32.mrf.mxu0
    %v2424 = vadd.f32 %v2334, %v2423
    %v2425 = vpop.f32.mrf.mxu0
    %2426 = vmatprep.mubr.f32.mxu0 0.0
    %2427 = vmatmul.mubr.f32.gmra.mxu0 %v2346
    %v2428 = vpop.f32.mrf.mxu0
    %v2429 = vpop.f32.mrf.mxu0
    %2430 = vdwg.mxu0
    %v2431 = vadd.f32 %v2190, %v2415
    %v2432 = vadd.f32 %v2192, %v2424
    %v2433 = vsel %vm382, %v2431, 0.0
    %2434 = vadd.xlane.f32.xlu0 %v2433
    %v2435 = vpop.xlane.xlu0 %2434
    %v2436 = vsel %vm382, %v2432, 0.0
    %2437 = vadd.xlane.f32.xlu0 %v2436
    %v2438 = vpop.xlane.xlu0 %2437
    %v2439 = vmul.f32 %v2435, %v395
    %v2440 = vmul.f32 %v2438, %v395
    %v2441 = vsub.f32 %v2431, %v2439
    %v2442 = vsub.f32 %v2432, %v2440
    %v2443 = vmul.f32 %v2441, %v2441
    %v2444 = vmul.f32 %v2442, %v2442
    %v2445 = vsel %vm382, %v2443, 0.0
    %2446 = vadd.xlane.f32.xlu0 %v2445
    %v2447 = vpop.xlane.xlu0 %2446
    %v2448 = vsel %vm382, %v2444, 0.0
    %2449 = vadd.xlane.f32.xlu0 %v2448
    %v2450 = vpop.xlane.xlu0 %2449
    %v2451 = vmul.f32 %v2447, %v395
    %v2452 = vmul.f32 %v2450, %v395
    %v2453 = vadd.f32 %v2451, 1e-05
    %v2454 = vadd.f32 %v2452, 1e-05
    %v2455 = vrsqrt.pop %v2453
    %v2456 = vrsqrt.pop %v2454
    %v2457 = vmul.f32 %v2441, %v2455
    %v2458 = vmul.f32 %v2442, %v2456
    %v2459 = vlaneseq
    %v2460 = vshrl.u32 %v2459, 7
    %v2461 = vsub.s32 5, %v2460
    %v2462 = vrot.slane %v95, %v2461
    %v2463 = vmul.f32 %v2457, %v2462
    %v2464 = vmul.f32 %v2458, %v2462
    %v2465 = vlaneseq
    %v2466 = vshrl.u32 %v2465, 7
    %v2467 = vsub.s32 6, %v2466
    %v2468 = vrot.slane %v95, %v2467
    %v2469 = vadd.f32 %v2463, %v2468
    %v2470 = vadd.f32 %v2464, %v2468
    %v2472 = vrot.slane %v2470, 7
    %vm2474 = vcmask 1040384
    %v2475 = vsel %vm2474, %v2469, %v2472
    %v2476 = vlaneseq
    %v2477 = vshrl.u32 %v2476, 7
    %v2478 = vsub.s32 0, %v2477
    %v2479 = vrot.slane %v114, %v2478
    %v2481 = vsel %vm382, %v2475, 0
    %2483 = vmatprep.subr.mxu0 0.0
    %2484 = vmatpush1.msra.mxu0 0.0
    %2485 = vmatprep.subr.mxu0 0.0
    %2486 = vmatpush1.msra.mxu0 0.0
    %2487 = vmatprep.subr.mxu0 0.0
    %2488 = vmatpush1.msra.mxu0 0.0
    %2489 = vmatprep.subr.mxu0 0.0
    %2490 = vmatpush1.msra.mxu0 0.0
    %2491 = vmatprep.subr.mxu0 0.0
    %2492 = vmatpush1.msra.mxu0 0.0
    %2493 = vmatprep.subr.mxu0 0.0
    %2494 = vmatpush1.msra.mxu0 0.0
    %2495 = vmatprep.subr.mxu0 0.0
    %2496 = vmatpush1.msra.mxu0 0.0
    %2497 = vmatprep.subr.mxu0 0.0
    %2498 = vmatpush1.msra.mxu0 0.0
    %2499 = vmatprep.subr.mxu0 0.0
    %2500 = vmatpush1.msra.mxu0 0.0
    %2501 = vmatprep.subr.mxu0 0.0
    %2502 = vmatpush1.msra.mxu0 0.0
    %2503 = vmatprep.subr.mxu0 0.0
    %2504 = vmatpush1.msra.mxu0 0.0
    %2505 = vmatprep.subr.mxu0 0.0
    %2506 = vmatpush1.msra.mxu0 0.0
    %2507 = vmatprep.subr.mxu0 0.0
    %2508 = vmatpush1.msra.mxu0 %v113
    %2509 = vmatprep.subr.mxu0 0.0
    %2510 = vmatpush1.msra.mxu0 %v112
    %2511 = vmatprep.subr.mxu0 0.0
    %2512 = vmatpush1.msra.mxu0 %v111
    %2513 = vmatprep.subr.mxu0 0.0
    %2514 = vmatpush1.msra.mxu0 %v110
    %2515 = vmatprep.subr.mxu0 0.0
    %2516 = vmatpush2.msra.mxu0 0.0
    %2517 = vmatprep.subr.mxu0 0.0
    %2518 = vmatpush2.msra.mxu0 0.0
    %2519 = vmatprep.subr.mxu0 0.0
    %2520 = vmatpush2.msra.mxu0 0.0
    %2521 = vmatprep.subr.mxu0 0.0
    %2522 = vmatpush2.msra.mxu0 0.0
    %2523 = vmatprep.subr.mxu0 0.0
    %2524 = vmatpush2.msra.mxu0 0.0
    %2525 = vmatprep.subr.mxu0 0.0
    %2526 = vmatpush2.msra.mxu0 0.0
    %2527 = vmatprep.subr.mxu0 0.0
    %2528 = vmatpush2.msra.mxu0 0.0
    %2529 = vmatprep.subr.mxu0 0.0
    %2530 = vmatpush2.msra.mxu0 0.0
    %2531 = vmatprep.subr.mxu0 0.0
    %2532 = vmatpush2.msra.mxu0 0.0
    %2533 = vmatprep.subr.mxu0 0.0
    %2534 = vmatpush2.msra.mxu0 0.0
    %2535 = vmatprep.subr.mxu0 0.0
    %2536 = vmatpush2.msra.mxu0 0.0
    %2537 = vmatprep.subr.mxu0 0.0
    %2538 = vmatpush2.msra.mxu0 0.0
    %2539 = vmatprep.subr.mxu0 0.0
    %2540 = vmatpush2.msra.mxu0 0.0
    %2541 = vmatprep.subr.mxu0 0.0
    %2542 = vmatpush2.msra.mxu0 0.0
    %2543 = vmatprep.subr.mxu0 0.0
    %2544 = vmatpush2.msra.mxu0 0.0
    %2545 = vmatprep.subr.mxu0 0.0
    %2546 = vmatpush2.msra.mxu0 0.0
    %2547 = vmatprep.mubr.f32.mxu0 0.0
    %2548 = vmatmul.mubr.f32.gmra.mxu0 %v2481
    %v2549 = vpop.f32.mrf.mxu0
    %v2550 = vadd.f32 %v2479, %v2549
    %v2551 = vpop.f32.mrf.mxu0
    %2552 = vdwg.mxu0
    %v2553 = vtanh.pop %v2550
    %vm2554 = vcmask 254976
    %2555 = vst.msk [vmem:[#allocation2] sm:$0x3] %vm2554, %v2553
    // Predicated region
    $region46: #{tpu_custom_call.1} parent=1 // pred_check
      _
    $region47: #{tpu_custom_call.1} parent=1 // pred_check_branch
      %2557 = sbr.rel (0) target = $region49
    $region48: #{tpu_custom_call.1} parent=1 // pred_region
      %s2559 = ssub.s32 32, 32
      %2560 = vsyncadd [#allocation3], %s2559
      %s2562 = sshll.u32 [#allocation2], 4
      %s2563 = int_to_ptr.vmem [resolvable:$true] %s2562
      %2565 = dma.vmem_to_hbm [thread:$0]  %s2563, 32, %s11, [#allocation3]
    $region49: #{tpu_custom_call.1} parent=1 // pred_fallthru
      _
    // Predicated region
    $region50: #{tpu_custom_call.1} parent=1 // pred_check
      _
    $region51: #{tpu_custom_call.1} parent=1 // pred_check_branch
      %2567 = sbr.rel (0) target = $region53
    $region52: #{tpu_custom_call.1} parent=1 // pred_region
      %2568 = dma.done [#allocation3], 32
    $region53: #{tpu_custom_call.1} parent=1 // pred_fallthru
      _
    %2569 = vsyncpa [#allocation3], 1

</llo_original>
